<compile_context>
chip_gen: v6e
topology: v6e:2x2x1
jax: 0.10.0
libtpu: 0.0.40
codegen_flags: <defaults>
</compile_context>

<pallas_src>
import functools

import jax
import jax.numpy as jnp
from jax.experimental import pallas as pl
from jax.experimental.pallas import tpu as pltpu

NEG_SLOPE = 0.2        # DGL GATConv leaky_relu default
BN_EPS = 1e-5
NEG_INF = -1e30
TOP_FEAT_ACTIVE = 1.0  # GATTopNet.top_feat_active


# ---------------------------------------------------------------------------
# Kernel helpers
# ---------------------------------------------------------------------------

def _head_attention(feat_h, mask, er_col, el_row, mm_dtype):
    """One attention head: masked softmax over incoming edges + aggregation.

    feat_h : (N, D)  projected features for this head (f32)
    mask   : (N, N)  bool, mask[dst, src] = edge present (self-loops included)
    er_col : (N, 1)  destination attention term (lane column)
    el_row : (1, N)  source attention term (already transposed to a lane row)
    """
    # e[dst, src] = er[dst] + el[src]  -- VPU broadcast add, no K=1 MXU outer product.
    e = er_col + el_row                                  # (N, N)
    e = jnp.where(e > 0, e, NEG_SLOPE * e)               # leaky_relu
    e = jnp.where(mask, e, NEG_INF)                      # mask non-edges
    e_max = jnp.max(e, axis=-1, keepdims=True)
    # Masked logits are -1e30, so exp(e - e_max) underflows to exactly 0; no second select.
    # Precondition: every row has at least one edge (self-loops added host-side).
    p = jnp.exp(e - e_max)
    alpha = p / jnp.sum(p, axis=-1, keepdims=True)       # softmax over src (f32 throughout)
    # MXU aggregation: bf16 operands, f32 accumulate (softmax/logits stay f32).
    rst = jnp.dot(alpha.astype(mm_dtype), feat_h.astype(mm_dtype),
                  preferred_element_type=jnp.float32)    # (N, D)
    return rst, alpha


def _gat_top_net_kernel(h_ref, adj_ref, w_ref, scale_ref, bias_ref,
                        wt_ref, scale_t_ref, bias_t_ref,
                        out_ref, acc_ref,
                        *, num_layers, num_heads, head_dim, out_dim,
                        residual, top_residual, mm_dtype):
    """Whole GATTopNet body for one graph: (L-1) GATLayers + GATTopLayer + mean readout."""
    HD = num_heads * head_dim
    mask = adj_ref[0] > 0.0              # (N, N), computed once, reused by every layer/head
    h = h_ref[0]                         # (N, HD) f32, stays resident for the whole stack

    # ---- (L-1) hidden GAT layers, fully unrolled (num_layers is static & tiny) ----
    for layer in range(num_layers):
        # One MXU matmul for all heads + folded attention columns:
        #   columns [0, HD)        -> per-head projected features
        #   columns [HD, HD+H)     -> el (source term)       = feat_h . attn_l
        #   columns [HD+H, HD+2H)  -> er (destination term)  = feat_h . attn_r
        feat_all = jnp.dot(h.astype(mm_dtype), w_ref[layer].astype(mm_dtype),
                           preferred_element_type=jnp.float32)          # (N, HD + 2H)
        feat = feat_all[:, :HD]
        el_all = feat_all[:, HD:HD + num_heads]                         # (N, H)
        er_all = feat_all[:, HD + num_heads:HD + 2 * num_heads]         # (N, H)
        el_rows = el_all.T                                              # (H, N): one tiny XLU
                                                                        # transpose per layer

        for hd in range(num_heads):
            rst_h, _ = _head_attention(
                feat[:, hd * head_dim:(hd + 1) * head_dim], mask,
                er_all[:, hd:hd + 1], el_rows[hd:hd + 1, :], mm_dtype)
            # Write each head straight into its static lane slice (no list + concatenate).
            acc_ref[:, hd * head_dim:(hd + 1) * head_dim] = rst_h

        rst = acc_ref[...]                                              # (N, HD) "flatten(1)"
        rst = rst * scale_ref[layer] + bias_ref[layer]                  # folded BatchNorm (eval)
        # TODO(synk): use jnp.expm1 if/when available in Mosaic lowering for better precision.
        rst = jnp.where(rst > 0, rst, jnp.exp(rst) - 1.0)               # ELU(alpha=1)
        if residual:
            rst = rst + h                                               # h_in + h
        h = rst                                                         # stays on-chip

    # ---- top layer: GATTopLayer(HD, out_dim, 1 head) + fused mean readout -------------
    feat_all = jnp.dot(h.astype(mm_dtype), wt_ref[...].astype(mm_dtype),
                       preferred_element_type=jnp.float32)              # (N, OD + 2)
    feat_t = feat_all[:, :out_dim]
    el_t = feat_all[:, out_dim:out_dim + 1]                             # (N, 1)
    er_t = feat_all[:, out_dim + 1:out_dim + 2]                         # (N, 1)
    rst_t, alpha_t = _head_attention(feat_t, mask, er_t, el_t.T, mm_dtype)
    rst_t = rst_t * scale_t_ref[...] + bias_t_ref[...]
    rst_t = jnp.where(rst_t > 0, rst_t, jnp.exp(rst_t) - 1.0)
    if top_residual:
        rst_t = rst_t + h

    # TODO(synk): the real GATTopLayer h0_sum is a 0-dim persistence sum via union-find over the
    # attention-filtered graph (data-dependent; no clean Pallas equivalent).  Proxy: a
    # data-dependent "total persistence"-like sum over nodes of (1 - strongest incoming attn).
    per_node = 1.0 - jnp.max(alpha_t, axis=-1, keepdims=True)           # (N, 1)
    h0 = TOP_FEAT_ACTIVE * jnp.sum(per_node, axis=0, keepdims=True)     # (1, 1)

    # Fused graph readout (dgl.mean_nodes) -- node features never round-trip to HBM.
    hg = jnp.mean(rst_t, axis=0, keepdims=True)                         # (1, OD)
    out_ref[0] = jnp.concatenate([hg, h0], axis=-1).astype(out_ref.dtype)   # (1, OD + 1)


# ---------------------------------------------------------------------------
# Host-side parameter folding + pallas_call wrapper
# ---------------------------------------------------------------------------

def _fold_bn(p):
    scale = p["gamma"] * jax.lax.rsqrt(p["var"] + BN_EPS)
    bias = p["beta"] - p["mean"] * scale
    return scale, bias


def _augment_w(p):
    """Append folded el/er attention columns to W: (Din, H*D) -> (Din, H*D + 2H)."""
    W, al, ar = p["W"], p["al"], p["ar"]
    H, D = al.shape
    W3 = W.reshape(W.shape[0], H, D)
    w_al = jnp.einsum("ihd,hd->ih", W3, al)       # (Din, H):  h @ w_al == el (source term)
    w_ar = jnp.einsum("ihd,hd->ih", W3, ar)       # (Din, H):  h @ w_ar == er (dest term)
    return jnp.concatenate([W, w_al, w_ar], axis=-1)


def gat_top_net_stack(h, adj, gat_params, top_params, *, residual,
                      matmul_dtype=jnp.bfloat16):
    """Fused (L-1) GATLayers + GATTopLayer + mean readout in one pallas_call, grid=(B,)."""
    B, N, HD = h.shape
    assert len(gat_params) >= 1, "expects n_layers >= 2 (at least one hidden GATLayer)"
    H, D = gat_params[0]["al"].shape
    assert H * D == HD
    OD = top_params["al"].shape[1]                # top layer: 1 head of width out_dim

    # Stack all hidden-layer parameters so the whole stack is one kernel input each.
    w_stack = jnp.stack([_augment_w(p) for p in gat_params])             # (Lm1, HD, HD+2H)
    sb = [_fold_bn(p) for p in gat_params]
    scale_stack = jnp.stack([s for s, _ in sb])                          # (Lm1, 1, HD)
    bias_stack = jnp.stack([b for _, b in sb])                           # (Lm1, 1, HD)
    w_top = _augment_w(top_params)                                       # (HD, OD+2)
    scale_top, bias_top = _fold_bn(top_params)                           # (1, OD) each

    kernel = functools.partial(
        _gat_top_net_kernel,
        num_layers=len(gat_params), num_heads=H, head_dim=D, out_dim=OD,
        residual=residual,                        # hidden layers: in == out by construction
        top_residual=residual and (HD == OD),     # mirrors torch GATLayer's dim check
        mm_dtype=matmul_dtype)

    per_graph = lambda b: (b, 0, 0)
    full3 = lambda b: (0, 0, 0)
    full2 = lambda b: (0, 0)
    out = pl.pallas_call(
        kernel,
        out_shape=jax.ShapeDtypeStruct((B, 1, OD + 1), jnp.float32),
        grid=(B,),
        in_specs=[
            pl.BlockSpec((1, N, HD), per_graph),   # embedded node features
            # TODO(synk): for N >~ 1k store adj as int8 and tile dst rows (v7x 64 MiB VMEM),
            # raising vmem_limit_bytes as needed; unnecessary at these toy sizes.
            pl.BlockSpec((1, N, N), per_graph),    # dense adjacency (self-loops included)
            pl.BlockSpec(w_stack.shape, full3),    # stacked augmented layer weights
            pl.BlockSpec(scale_stack.shape, full3),
            pl.BlockSpec(bias_stack.shape, full3),
            pl.BlockSpec(w_top.shape, full2),      # top-layer augmented weights
            pl.BlockSpec(scale_top.shape, full2),
            pl.BlockSpec(bias_top.shape, full2),
        ],
        out_specs=pl.BlockSpec((1, 1, OD + 1), per_graph),
        scratch_shapes=[pltpu.VMEM((N, HD), jnp.float32)],   # per-layer head accumulation
        compiler_params=pltpu.CompilerParams(dimension_semantics=("parallel",)),
    )(h, adj, w_stack, scale_stack, bias_stack, w_top, scale_top, bias_top)
    # (B, OD+1) = [mean-node readout | top_feat_active * h0_sum] -- already concatenated.
    return out[:, 0, :]


# ---------------------------------------------------------------------------
# Parameters & forward
# ---------------------------------------------------------------------------

def init_params(key, in_dim, hidden_dim, out_dim, n_classes, n_heads, n_layers):
    HD = hidden_dim * n_heads
    keys = iter(jax.random.split(key, 64))

    def rnd(shape, scale=0.2):
        return (scale * jax.random.normal(next(keys), shape)).astype(jnp.float32)

    def gat_params(din, d, heads):
        hd = d * heads
        return {
            "W": rnd((din, hd)),                                  # per-head columns h*d:(h+1)*d
            "al": rnd((heads, d)),
            "ar": rnd((heads, d)),
            "gamma": jnp.ones((1, hd), jnp.float32),
            "beta": jnp.zeros((1, hd), jnp.float32),
            "mean": jnp.zeros((1, hd), jnp.float32),
            "var": jnp.ones((1, hd), jnp.float32),
        }

    params = {
        "emb_w": rnd((in_dim, HD)),
        "emb_b": rnd((1, HD), 0.05),
        "gat": [gat_params(HD, hidden_dim, n_heads) for _ in range(n_layers - 1)],
        "top": gat_params(HD, out_dim, 1),                        # GATTopLayer(HD, out_dim, 1)
    }
    # MLPReadout(out_dim + 1 (h0_sum) * num_heads(top)=1, n_classes), L=2
    mlp_in = out_dim + 1
    dims = [mlp_in, mlp_in // 2, mlp_in // 4, n_classes]
    params["mlp"] = [(rnd((dims[i], dims[i + 1])), rnd((1, dims[i + 1]), 0.05))
                     for i in range(3)]
    return params


def forward(params, h_nodes, adj):
    # embedding_h (nn.Linear) + in_feat_dropout (identity at inference): tiny -> plain XLA.
    h = jnp.dot(h_nodes, params["emb_w"]) + params["emb_b"]             # (B, N, HD)
    # Entire GAT stack + top layer + mean readout + h0 feature: one fused pallas_call.
    hg = gat_top_net_stack(h, adj, params["gat"], params["top"], residual=True)  # (B, OD+1)
    # MLPReadout (L=2): tiny matmuls -> plain XLA.
    for i, (w, b) in enumerate(params["mlp"]):
        hg = jnp.dot(hg, w) + b
        if i < len(params["mlp"]) - 1:
            hg = jax.nn.relu(hg)
    return hg


if __name__ == "__main__":
    B, N = 2, 16
    in_dim, hidden_dim, out_dim, n_classes, n_heads, L = 16, 8, 32, 3, 4, 4

    key = jax.random.PRNGKey(0)
    kp, kh, ka = jax.random.split(key, 3)
    params = init_params(kp, in_dim, hidden_dim, out_dim, n_classes, n_heads, L)

    h = jax.random.normal(kh, (B, N, in_dim), jnp.float32)
    a = (jax.random.uniform(ka, (B, N, N)) < 0.3).astype(jnp.float32)
    adj = jnp.maximum(a, a.transpose(0, 2, 1))                          # undirected
    adj = jnp.maximum(adj, jnp.eye(N, dtype=jnp.float32)[None])         # self-loops

    logits = jax.jit(forward)(params, h, adj)
    logits = jax.block_until_ready(logits)

    assert logits.shape == (B, n_classes)
    assert bool(jnp.all(jnp.isfinite(logits)))
    print("KERNEL_OK")
</pallas_src>

<mosaic_0001>
module attributes {stable_mosaic.version = 11 : i64} {
  func.func @_gat_top_net_kernel(%arg0: i32, %arg1: memref<1x16x32xf32, #tpu.memory_space<vmem>>, %arg2: memref<1x16x16xf32, #tpu.memory_space<vmem>>, %arg3: memref<3x32x40xf32, #tpu.memory_space<vmem>>, %arg4: memref<3x1x32xf32, #tpu.memory_space<vmem>>, %arg5: memref<3x1x32xf32, #tpu.memory_space<vmem>>, %arg6: memref<32x34xf32, #tpu.memory_space<vmem>>, %arg7: memref<1x32xf32, #tpu.memory_space<vmem>>, %arg8: memref<1x32xf32, #tpu.memory_space<vmem>>, %arg9: memref<1x1x33xf32, #tpu.memory_space<vmem>>, %arg10: memref<16x32xf32, #tpu.memory_space<vmem>>) attributes {dimension_semantics = [#tpu.dimension_semantics<parallel>], iteration_bounds = array<i64: 2>, scalar_prefetch = 0 : i64, scratch_operands = 1 : i64, tpu.core_type = #tpu.core_type<tc>, window_params = [{transform_indices = @transform_0, window_bounds = array<i64: 1, 16, 32>}, {transform_indices = @transform_1, window_bounds = array<i64: 1, 16, 16>}, {pipeline_mode = #tpu.pipeline_mode<synchronous>, transform_indices = @transform_2, window_bounds = array<i64: 3, 32, 40>}, {pipeline_mode = #tpu.pipeline_mode<synchronous>, transform_indices = @transform_3, window_bounds = array<i64: 3, 1, 32>}, {pipeline_mode = #tpu.pipeline_mode<synchronous>, transform_indices = @transform_4, window_bounds = array<i64: 3, 1, 32>}, {pipeline_mode = #tpu.pipeline_mode<synchronous>, transform_indices = @transform_5, window_bounds = array<i64: 32, 34>}, {pipeline_mode = #tpu.pipeline_mode<synchronous>, transform_indices = @transform_6, window_bounds = array<i64: 1, 32>}, {pipeline_mode = #tpu.pipeline_mode<synchronous>, transform_indices = @transform_7, window_bounds = array<i64: 1, 32>}, {transform_indices = @transform_8, window_bounds = array<i64: 1, 1, 33>}]} {
    %c0 = arith.constant 0 : index
    %c0_0 = arith.constant 0 : index
    %c0_1 = arith.constant 0 : index
    %0 = vector.load %arg2[%c0, %c0_0, %c0_1] : memref<1x16x16xf32, #tpu.memory_space<vmem>>, vector<1x16x16xf32>
    %1 = vector.shape_cast %0 : vector<1x16x16xf32> to vector<16x16xf32>
    %cst = arith.constant 0.000000e+00 : f32
    %2 = vector.broadcast %cst : f32 to vector<16x16xf32>
    %3 = arith.cmpf ogt, %1, %2 : vector<16x16xf32>
    %c0_2 = arith.constant 0 : index
    %c0_3 = arith.constant 0 : index
    %c0_4 = arith.constant 0 : index
    %4 = vector.load %arg1[%c0_2, %c0_3, %c0_4] : memref<1x16x32xf32, #tpu.memory_space<vmem>>, vector<1x16x32xf32>
    %5 = vector.shape_cast %4 : vector<1x16x32xf32> to vector<16x32xf32>
    %6 = arith.truncf %5 : vector<16x32xf32> to vector<16x32xbf16>
    %c0_5 = arith.constant 0 : index
    %c0_6 = arith.constant 0 : index
    %c0_7 = arith.constant 0 : index
    %7 = vector.load %arg3[%c0_5, %c0_6, %c0_7] : memref<3x32x40xf32, #tpu.memory_space<vmem>>, vector<1x32x40xf32>
    %8 = vector.shape_cast %7 : vector<1x32x40xf32> to vector<32x40xf32>
    %9 = arith.truncf %8 : vector<32x40xf32> to vector<32x40xbf16>
    %cst_8 = arith.constant dense<0.000000e+00> : vector<16x40xf32>
    %10 = tpu.matmul %6, %9, %cst_8 {dimension_numbers = #tpu.dot_dimension_numbers<[1], [0], [0], [1], [0, 0, 1, 1], [], []>} : vector<16x32xbf16>, vector<32x40xbf16>, vector<16x40xf32> -> vector<16x40xf32>
    %11 = vector.extract_strided_slice %10 {offsets = [0, 0], sizes = [16, 32], strides = [1, 1]} : vector<16x40xf32> to vector<16x32xf32>
    %12 = vector.extract_strided_slice %10 {offsets = [0, 32], sizes = [16, 4], strides = [1, 1]} : vector<16x40xf32> to vector<16x4xf32>
    %13 = vector.extract_strided_slice %10 {offsets = [0, 36], sizes = [16, 4], strides = [1, 1]} : vector<16x40xf32> to vector<16x4xf32>
    %14 = tpu.transpose %12, [1, 0] : vector<16x4xf32> -> vector<4x16xf32>
    %15 = vector.extract_strided_slice %11 {offsets = [0, 0], sizes = [16, 8], strides = [1, 1]} : vector<16x32xf32> to vector<16x8xf32>
    %16 = vector.extract_strided_slice %13 {offsets = [0, 0], sizes = [16, 1], strides = [1, 1]} : vector<16x4xf32> to vector<16x1xf32>
    %17 = vector.extract_strided_slice %14 {offsets = [0, 0], sizes = [1, 16], strides = [1, 1]} : vector<4x16xf32> to vector<1x16xf32>
    %18 = vector.broadcast %16 : vector<16x1xf32> to vector<16x16xf32>
    %19 = vector.broadcast %17 : vector<1x16xf32> to vector<16x16xf32>
    %20 = arith.addf %18, %19 : vector<16x16xf32>
    %cst_9 = arith.constant 0.000000e+00 : f32
    %21 = vector.broadcast %cst_9 : f32 to vector<16x16xf32>
    %22 = arith.cmpf ogt, %20, %21 : vector<16x16xf32>
    %cst_10 = arith.constant 2.000000e-01 : f32
    %23 = vector.broadcast %cst_10 : f32 to vector<16x16xf32>
    %24 = arith.mulf %23, %20 : vector<16x16xf32>
    %25 = arith.select %22, %20, %24 : vector<16x16xi1>, vector<16x16xf32>
    %cst_11 = arith.constant -1.000000e+30 : f32
    %26 = vector.broadcast %cst_11 : f32 to vector<16x16xf32>
    %27 = arith.select %3, %25, %26 : vector<16x16xi1>, vector<16x16xf32>
    %cst_12 = arith.constant dense<0xFF800000> : vector<16xf32>
    %28 = vector.multi_reduction <maximumf>, %27, %cst_12 [1] : vector<16x16xf32> to vector<16xf32>
    %29 = vector.shape_cast %28 : vector<16xf32> to vector<16x1xf32>
    %30 = vector.broadcast %29 : vector<16x1xf32> to vector<16x16xf32>
    %31 = arith.subf %27, %30 : vector<16x16xf32>
    %32 = math.exp %31 : vector<16x16xf32>
    %cst_13 = arith.constant dense<0.000000e+00> : vector<16xf32>
    %33 = vector.multi_reduction <add>, %32, %cst_13 [1] : vector<16x16xf32> to vector<16xf32>
    %34 = vector.shape_cast %33 : vector<16xf32> to vector<16x1xf32>
    %35 = vector.broadcast %34 : vector<16x1xf32> to vector<16x16xf32>
    %36 = arith.divf %32, %35 : vector<16x16xf32>
    %37 = arith.truncf %36 : vector<16x16xf32> to vector<16x16xbf16>
    %38 = arith.truncf %15 : vector<16x8xf32> to vector<16x8xbf16>
    %cst_14 = arith.constant dense<0.000000e+00> : vector<16x8xf32>
    %39 = tpu.matmul %37, %38, %cst_14 {dimension_numbers = #tpu.dot_dimension_numbers<[1], [0], [0], [1], [0, 0, 1, 1], [], []>} : vector<16x16xbf16>, vector<16x8xbf16>, vector<16x8xf32> -> vector<16x8xf32>
    %c0_15 = arith.constant 0 : index
    %c0_16 = arith.constant 0 : index
    %40 = vector.load %arg10[%c0_15, %c0_16] : memref<16x32xf32, #tpu.memory_space<vmem>>, vector<16x8xf32>
    tpu.vector_store %arg10[%c0_15, %c0_16], %39 {strides = array<i32>} : memref<16x32xf32, #tpu.memory_space<vmem>>, vector<16x8xf32>,
    %41 = vector.extract_strided_slice %11 {offsets = [0, 8], sizes = [16, 8], strides = [1, 1]} : vector<16x32xf32> to vector<16x8xf32>
    %42 = vector.extract_strided_slice %13 {offsets = [0, 1], sizes = [16, 1], strides = [1, 1]} : vector<16x4xf32> to vector<16x1xf32>
    %43 = vector.extract_strided_slice %14 {offsets = [1, 0], sizes = [1, 16], strides = [1, 1]} : vector<4x16xf32> to vector<1x16xf32>
    %44 = vector.broadcast %42 : vector<16x1xf32> to vector<16x16xf32>
    %45 = vector.broadcast %43 : vector<1x16xf32> to vector<16x16xf32>
    %46 = arith.addf %44, %45 : vector<16x16xf32>
    %cst_17 = arith.constant 0.000000e+00 : f32
    %47 = vector.broadcast %cst_17 : f32 to vector<16x16xf32>
    %48 = arith.cmpf ogt, %46, %47 : vector<16x16xf32>
    %cst_18 = arith.constant 2.000000e-01 : f32
    %49 = vector.broadcast %cst_18 : f32 to vector<16x16xf32>
    %50 = arith.mulf %49, %46 : vector<16x16xf32>
    %51 = arith.select %48, %46, %50 : vector<16x16xi1>, vector<16x16xf32>
    %cst_19 = arith.constant -1.000000e+30 : f32
    %52 = vector.broadcast %cst_19 : f32 to vector<16x16xf32>
    %53 = arith.select %3, %51, %52 : vector<16x16xi1>, vector<16x16xf32>
    %cst_20 = arith.constant dense<0xFF800000> : vector<16xf32>
    %54 = vector.multi_reduction <maximumf>, %53, %cst_20 [1] : vector<16x16xf32> to vector<16xf32>
    %55 = vector.shape_cast %54 : vector<16xf32> to vector<16x1xf32>
    %56 = vector.broadcast %55 : vector<16x1xf32> to vector<16x16xf32>
    %57 = arith.subf %53, %56 : vector<16x16xf32>
    %58 = math.exp %57 : vector<16x16xf32>
    %cst_21 = arith.constant dense<0.000000e+00> : vector<16xf32>
    %59 = vector.multi_reduction <add>, %58, %cst_21 [1] : vector<16x16xf32> to vector<16xf32>
    %60 = vector.shape_cast %59 : vector<16xf32> to vector<16x1xf32>
    %61 = vector.broadcast %60 : vector<16x1xf32> to vector<16x16xf32>
    %62 = arith.divf %58, %61 : vector<16x16xf32>
    %63 = arith.truncf %62 : vector<16x16xf32> to vector<16x16xbf16>
    %64 = arith.truncf %41 : vector<16x8xf32> to vector<16x8xbf16>
    %cst_22 = arith.constant dense<0.000000e+00> : vector<16x8xf32>
    %65 = tpu.matmul %63, %64, %cst_22 {dimension_numbers = #tpu.dot_dimension_numbers<[1], [0], [0], [1], [0, 0, 1, 1], [], []>} : vector<16x16xbf16>, vector<16x8xbf16>, vector<16x8xf32> -> vector<16x8xf32>
    %c0_23 = arith.constant 0 : index
    %c8 = arith.constant 8 : index
    %66 = vector.load %arg10[%c0_23, %c8] : memref<16x32xf32, #tpu.memory_space<vmem>>, vector<16x8xf32>
    tpu.vector_store %arg10[%c0_23, %c8], %65 {strides = array<i32>} : memref<16x32xf32, #tpu.memory_space<vmem>>, vector<16x8xf32>,
    %67 = vector.extract_strided_slice %11 {offsets = [0, 16], sizes = [16, 8], strides = [1, 1]} : vector<16x32xf32> to vector<16x8xf32>
    %68 = vector.extract_strided_slice %13 {offsets = [0, 2], sizes = [16, 1], strides = [1, 1]} : vector<16x4xf32> to vector<16x1xf32>
    %69 = vector.extract_strided_slice %14 {offsets = [2, 0], sizes = [1, 16], strides = [1, 1]} : vector<4x16xf32> to vector<1x16xf32>
    %70 = vector.broadcast %68 : vector<16x1xf32> to vector<16x16xf32>
    %71 = vector.broadcast %69 : vector<1x16xf32> to vector<16x16xf32>
    %72 = arith.addf %70, %71 : vector<16x16xf32>
    %cst_24 = arith.constant 0.000000e+00 : f32
    %73 = vector.broadcast %cst_24 : f32 to vector<16x16xf32>
    %74 = arith.cmpf ogt, %72, %73 : vector<16x16xf32>
    %cst_25 = arith.constant 2.000000e-01 : f32
    %75 = vector.broadcast %cst_25 : f32 to vector<16x16xf32>
    %76 = arith.mulf %75, %72 : vector<16x16xf32>
    %77 = arith.select %74, %72, %76 : vector<16x16xi1>, vector<16x16xf32>
    %cst_26 = arith.constant -1.000000e+30 : f32
    %78 = vector.broadcast %cst_26 : f32 to vector<16x16xf32>
    %79 = arith.select %3, %77, %78 : vector<16x16xi1>, vector<16x16xf32>
    %cst_27 = arith.constant dense<0xFF800000> : vector<16xf32>
    %80 = vector.multi_reduction <maximumf>, %79, %cst_27 [1] : vector<16x16xf32> to vector<16xf32>
    %81 = vector.shape_cast %80 : vector<16xf32> to vector<16x1xf32>
    %82 = vector.broadcast %81 : vector<16x1xf32> to vector<16x16xf32>
    %83 = arith.subf %79, %82 : vector<16x16xf32>
    %84 = math.exp %83 : vector<16x16xf32>
    %cst_28 = arith.constant dense<0.000000e+00> : vector<16xf32>
    %85 = vector.multi_reduction <add>, %84, %cst_28 [1] : vector<16x16xf32> to vector<16xf32>
    %86 = vector.shape_cast %85 : vector<16xf32> to vector<16x1xf32>
    %87 = vector.broadcast %86 : vector<16x1xf32> to vector<16x16xf32>
    %88 = arith.divf %84, %87 : vector<16x16xf32>
    %89 = arith.truncf %88 : vector<16x16xf32> to vector<16x16xbf16>
    %90 = arith.truncf %67 : vector<16x8xf32> to vector<16x8xbf16>
    %cst_29 = arith.constant dense<0.000000e+00> : vector<16x8xf32>
    %91 = tpu.matmul %89, %90, %cst_29 {dimension_numbers = #tpu.dot_dimension_numbers<[1], [0], [0], [1], [0, 0, 1, 1], [], []>} : vector<16x16xbf16>, vector<16x8xbf16>, vector<16x8xf32> -> vector<16x8xf32>
    %c0_30 = arith.constant 0 : index
    %c16 = arith.constant 16 : index
    %92 = vector.load %arg10[%c0_30, %c16] : memref<16x32xf32, #tpu.memory_space<vmem>>, vector<16x8xf32>
    tpu.vector_store %arg10[%c0_30, %c16], %91 {strides = array<i32>} : memref<16x32xf32, #tpu.memory_space<vmem>>, vector<16x8xf32>,
    %93 = vector.extract_strided_slice %11 {offsets = [0, 24], sizes = [16, 8], strides = [1, 1]} : vector<16x32xf32> to vector<16x8xf32>
    %94 = vector.extract_strided_slice %13 {offsets = [0, 3], sizes = [16, 1], strides = [1, 1]} : vector<16x4xf32> to vector<16x1xf32>
    %95 = vector.extract_strided_slice %14 {offsets = [3, 0], sizes = [1, 16], strides = [1, 1]} : vector<4x16xf32> to vector<1x16xf32>
    %96 = vector.broadcast %94 : vector<16x1xf32> to vector<16x16xf32>
    %97 = vector.broadcast %95 : vector<1x16xf32> to vector<16x16xf32>
    %98 = arith.addf %96, %97 : vector<16x16xf32>
    %cst_31 = arith.constant 0.000000e+00 : f32
    %99 = vector.broadcast %cst_31 : f32 to vector<16x16xf32>
    %100 = arith.cmpf ogt, %98, %99 : vector<16x16xf32>
    %cst_32 = arith.constant 2.000000e-01 : f32
    %101 = vector.broadcast %cst_32 : f32 to vector<16x16xf32>
    %102 = arith.mulf %101, %98 : vector<16x16xf32>
    %103 = arith.select %100, %98, %102 : vector<16x16xi1>, vector<16x16xf32>
    %cst_33 = arith.constant -1.000000e+30 : f32
    %104 = vector.broadcast %cst_33 : f32 to vector<16x16xf32>
    %105 = arith.select %3, %103, %104 : vector<16x16xi1>, vector<16x16xf32>
    %cst_34 = arith.constant dense<0xFF800000> : vector<16xf32>
    %106 = vector.multi_reduction <maximumf>, %105, %cst_34 [1] : vector<16x16xf32> to vector<16xf32>
    %107 = vector.shape_cast %106 : vector<16xf32> to vector<16x1xf32>
    %108 = vector.broadcast %107 : vector<16x1xf32> to vector<16x16xf32>
    %109 = arith.subf %105, %108 : vector<16x16xf32>
    %110 = math.exp %109 : vector<16x16xf32>
    %cst_35 = arith.constant dense<0.000000e+00> : vector<16xf32>
    %111 = vector.multi_reduction <add>, %110, %cst_35 [1] : vector<16x16xf32> to vector<16xf32>
    %112 = vector.shape_cast %111 : vector<16xf32> to vector<16x1xf32>
    %113 = vector.broadcast %112 : vector<16x1xf32> to vector<16x16xf32>
    %114 = arith.divf %110, %113 : vector<16x16xf32>
    %115 = arith.truncf %114 : vector<16x16xf32> to vector<16x16xbf16>
    %116 = arith.truncf %93 : vector<16x8xf32> to vector<16x8xbf16>
    %cst_36 = arith.constant dense<0.000000e+00> : vector<16x8xf32>
    %117 = tpu.matmul %115, %116, %cst_36 {dimension_numbers = #tpu.dot_dimension_numbers<[1], [0], [0], [1], [0, 0, 1, 1], [], []>} : vector<16x16xbf16>, vector<16x8xbf16>, vector<16x8xf32> -> vector<16x8xf32>
    %c0_37 = arith.constant 0 : index
    %c24 = arith.constant 24 : index
    %118 = vector.load %arg10[%c0_37, %c24] : memref<16x32xf32, #tpu.memory_space<vmem>>, vector<16x8xf32>
    tpu.vector_store %arg10[%c0_37, %c24], %117 {strides = array<i32>} : memref<16x32xf32, #tpu.memory_space<vmem>>, vector<16x8xf32>,
    %c0_38 = arith.constant 0 : index
    %c0_39 = arith.constant 0 : index
    %119 = vector.load %arg10[%c0_38, %c0_39] : memref<16x32xf32, #tpu.memory_space<vmem>>, vector<16x32xf32>
    %c0_40 = arith.constant 0 : index
    %c0_41 = arith.constant 0 : index
    %c0_42 = arith.constant 0 : index
    %120 = vector.load %arg4[%c0_40, %c0_41, %c0_42] : memref<3x1x32xf32, #tpu.memory_space<vmem>>, vector<1x1x32xf32>
    %121 = vector.shape_cast %120 : vector<1x1x32xf32> to vector<1x32xf32>
    %122 = vector.broadcast %121 : vector<1x32xf32> to vector<16x32xf32>
    %123 = arith.mulf %119, %122 : vector<16x32xf32>
    %c0_43 = arith.constant 0 : index
    %c0_44 = arith.constant 0 : index
    %c0_45 = arith.constant 0 : index
    %124 = vector.load %arg5[%c0_43, %c0_44, %c0_45] : memref<3x1x32xf32, #tpu.memory_space<vmem>>, vector<1x1x32xf32>
    %125 = vector.shape_cast %124 : vector<1x1x32xf32> to vector<1x32xf32>
    %126 = vector.broadcast %125 : vector<1x32xf32> to vector<16x32xf32>
    %127 = arith.addf %123, %126 : vector<16x32xf32>
    %cst_46 = arith.constant 0.000000e+00 : f32
    %128 = vector.broadcast %cst_46 : f32 to vector<16x32xf32>
    %129 = arith.cmpf ogt, %127, %128 : vector<16x32xf32>
    %130 = math.exp %127 : vector<16x32xf32>
    %cst_47 = arith.constant 1.000000e+00 : f32
    %131 = vector.broadcast %cst_47 : f32 to vector<16x32xf32>
    %132 = arith.subf %130, %131 : vector<16x32xf32>
    %133 = arith.select %129, %127, %132 : vector<16x32xi1>, vector<16x32xf32>
    %134 = arith.addf %133, %5 : vector<16x32xf32>
    %135 = arith.truncf %134 : vector<16x32xf32> to vector<16x32xbf16>
    %c1 = arith.constant 1 : index
    %c0_48 = arith.constant 0 : index
    %c0_49 = arith.constant 0 : index
    %136 = vector.load %arg3[%c1, %c0_48, %c0_49] : memref<3x32x40xf32, #tpu.memory_space<vmem>>, vector<1x32x40xf32>
    %137 = vector.shape_cast %136 : vector<1x32x40xf32> to vector<32x40xf32>
    %138 = arith.truncf %137 : vector<32x40xf32> to vector<32x40xbf16>
    %cst_50 = arith.constant dense<0.000000e+00> : vector<16x40xf32>
    %139 = tpu.matmul %135, %138, %cst_50 {dimension_numbers = #tpu.dot_dimension_numbers<[1], [0], [0], [1], [0, 0, 1, 1], [], []>} : vector<16x32xbf16>, vector<32x40xbf16>, vector<16x40xf32> -> vector<16x40xf32>
    %140 = vector.extract_strided_slice %139 {offsets = [0, 0], sizes = [16, 32], strides = [1, 1]} : vector<16x40xf32> to vector<16x32xf32>
    %141 = vector.extract_strided_slice %139 {offsets = [0, 32], sizes = [16, 4], strides = [1, 1]} : vector<16x40xf32> to vector<16x4xf32>
    %142 = vector.extract_strided_slice %139 {offsets = [0, 36], sizes = [16, 4], strides = [1, 1]} : vector<16x40xf32> to vector<16x4xf32>
    %143 = tpu.transpose %141, [1, 0] : vector<16x4xf32> -> vector<4x16xf32>
    %144 = vector.extract_strided_slice %140 {offsets = [0, 0], sizes = [16, 8], strides = [1, 1]} : vector<16x32xf32> to vector<16x8xf32>
    %145 = vector.extract_strided_slice %142 {offsets = [0, 0], sizes = [16, 1], strides = [1, 1]} : vector<16x4xf32> to vector<16x1xf32>
    %146 = vector.extract_strided_slice %143 {offsets = [0, 0], sizes = [1, 16], strides = [1, 1]} : vector<4x16xf32> to vector<1x16xf32>
    %147 = vector.broadcast %145 : vector<16x1xf32> to vector<16x16xf32>
    %148 = vector.broadcast %146 : vector<1x16xf32> to vector<16x16xf32>
    %149 = arith.addf %147, %148 : vector<16x16xf32>
    %cst_51 = arith.constant 0.000000e+00 : f32
    %150 = vector.broadcast %cst_51 : f32 to vector<16x16xf32>
    %151 = arith.cmpf ogt, %149, %150 : vector<16x16xf32>
    %cst_52 = arith.constant 2.000000e-01 : f32
    %152 = vector.broadcast %cst_52 : f32 to vector<16x16xf32>
    %153 = arith.mulf %152, %149 : vector<16x16xf32>
    %154 = arith.select %151, %149, %153 : vector<16x16xi1>, vector<16x16xf32>
    %cst_53 = arith.constant -1.000000e+30 : f32
    %155 = vector.broadcast %cst_53 : f32 to vector<16x16xf32>
    %156 = arith.select %3, %154, %155 : vector<16x16xi1>, vector<16x16xf32>
    %cst_54 = arith.constant dense<0xFF800000> : vector<16xf32>
    %157 = vector.multi_reduction <maximumf>, %156, %cst_54 [1] : vector<16x16xf32> to vector<16xf32>
    %158 = vector.shape_cast %157 : vector<16xf32> to vector<16x1xf32>
    %159 = vector.broadcast %158 : vector<16x1xf32> to vector<16x16xf32>
    %160 = arith.subf %156, %159 : vector<16x16xf32>
    %161 = math.exp %160 : vector<16x16xf32>
    %cst_55 = arith.constant dense<0.000000e+00> : vector<16xf32>
    %162 = vector.multi_reduction <add>, %161, %cst_55 [1] : vector<16x16xf32> to vector<16xf32>
    %163 = vector.shape_cast %162 : vector<16xf32> to vector<16x1xf32>
    %164 = vector.broadcast %163 : vector<16x1xf32> to vector<16x16xf32>
    %165 = arith.divf %161, %164 : vector<16x16xf32>
    %166 = arith.truncf %165 : vector<16x16xf32> to vector<16x16xbf16>
    %167 = arith.truncf %144 : vector<16x8xf32> to vector<16x8xbf16>
    %cst_56 = arith.constant dense<0.000000e+00> : vector<16x8xf32>
    %168 = tpu.matmul %166, %167, %cst_56 {dimension_numbers = #tpu.dot_dimension_numbers<[1], [0], [0], [1], [0, 0, 1, 1], [], []>} : vector<16x16xbf16>, vector<16x8xbf16>, vector<16x8xf32> -> vector<16x8xf32>
    %c0_57 = arith.constant 0 : index
    %c0_58 = arith.constant 0 : index
    %169 = vector.load %arg10[%c0_57, %c0_58] : memref<16x32xf32, #tpu.memory_space<vmem>>, vector<16x8xf32>
    tpu.vector_store %arg10[%c0_57, %c0_58], %168 {strides = array<i32>} : memref<16x32xf32, #tpu.memory_space<vmem>>, vector<16x8xf32>,
    %170 = vector.extract_strided_slice %140 {offsets = [0, 8], sizes = [16, 8], strides = [1, 1]} : vector<16x32xf32> to vector<16x8xf32>
    %171 = vector.extract_strided_slice %142 {offsets = [0, 1], sizes = [16, 1], strides = [1, 1]} : vector<16x4xf32> to vector<16x1xf32>
    %172 = vector.extract_strided_slice %143 {offsets = [1, 0], sizes = [1, 16], strides = [1, 1]} : vector<4x16xf32> to vector<1x16xf32>
    %173 = vector.broadcast %171 : vector<16x1xf32> to vector<16x16xf32>
    %174 = vector.broadcast %172 : vector<1x16xf32> to vector<16x16xf32>
    %175 = arith.addf %173, %174 : vector<16x16xf32>
    %cst_59 = arith.constant 0.000000e+00 : f32
    %176 = vector.broadcast %cst_59 : f32 to vector<16x16xf32>
    %177 = arith.cmpf ogt, %175, %176 : vector<16x16xf32>
    %cst_60 = arith.constant 2.000000e-01 : f32
    %178 = vector.broadcast %cst_60 : f32 to vector<16x16xf32>
    %179 = arith.mulf %178, %175 : vector<16x16xf32>
    %180 = arith.select %177, %175, %179 : vector<16x16xi1>, vector<16x16xf32>
    %cst_61 = arith.constant -1.000000e+30 : f32
    %181 = vector.broadcast %cst_61 : f32 to vector<16x16xf32>
    %182 = arith.select %3, %180, %181 : vector<16x16xi1>, vector<16x16xf32>
    %cst_62 = arith.constant dense<0xFF800000> : vector<16xf32>
    %183 = vector.multi_reduction <maximumf>, %182, %cst_62 [1] : vector<16x16xf32> to vector<16xf32>
    %184 = vector.shape_cast %183 : vector<16xf32> to vector<16x1xf32>
    %185 = vector.broadcast %184 : vector<16x1xf32> to vector<16x16xf32>
    %186 = arith.subf %182, %185 : vector<16x16xf32>
    %187 = math.exp %186 : vector<16x16xf32>
    %cst_63 = arith.constant dense<0.000000e+00> : vector<16xf32>
    %188 = vector.multi_reduction <add>, %187, %cst_63 [1] : vector<16x16xf32> to vector<16xf32>
    %189 = vector.shape_cast %188 : vector<16xf32> to vector<16x1xf32>
    %190 = vector.broadcast %189 : vector<16x1xf32> to vector<16x16xf32>
    %191 = arith.divf %187, %190 : vector<16x16xf32>
    %192 = arith.truncf %191 : vector<16x16xf32> to vector<16x16xbf16>
    %193 = arith.truncf %170 : vector<16x8xf32> to vector<16x8xbf16>
    %cst_64 = arith.constant dense<0.000000e+00> : vector<16x8xf32>
    %194 = tpu.matmul %192, %193, %cst_64 {dimension_numbers = #tpu.dot_dimension_numbers<[1], [0], [0], [1], [0, 0, 1, 1], [], []>} : vector<16x16xbf16>, vector<16x8xbf16>, vector<16x8xf32> -> vector<16x8xf32>
    %c0_65 = arith.constant 0 : index
    %c8_66 = arith.constant 8 : index
    %195 = vector.load %arg10[%c0_65, %c8_66] : memref<16x32xf32, #tpu.memory_space<vmem>>, vector<16x8xf32>
    tpu.vector_store %arg10[%c0_65, %c8_66], %194 {strides = array<i32>} : memref<16x32xf32, #tpu.memory_space<vmem>>, vector<16x8xf32>,
    %196 = vector.extract_strided_slice %140 {offsets = [0, 16], sizes = [16, 8], strides = [1, 1]} : vector<16x32xf32> to vector<16x8xf32>
    %197 = vector.extract_strided_slice %142 {offsets = [0, 2], sizes = [16, 1], strides = [1, 1]} : vector<16x4xf32> to vector<16x1xf32>
    %198 = vector.extract_strided_slice %143 {offsets = [2, 0], sizes = [1, 16], strides = [1, 1]} : vector<4x16xf32> to vector<1x16xf32>
    %199 = vector.broadcast %197 : vector<16x1xf32> to vector<16x16xf32>
    %200 = vector.broadcast %198 : vector<1x16xf32> to vector<16x16xf32>
    %201 = arith.addf %199, %200 : vector<16x16xf32>
    %cst_67 = arith.constant 0.000000e+00 : f32
    %202 = vector.broadcast %cst_67 : f32 to vector<16x16xf32>
    %203 = arith.cmpf ogt, %201, %202 : vector<16x16xf32>
    %cst_68 = arith.constant 2.000000e-01 : f32
    %204 = vector.broadcast %cst_68 : f32 to vector<16x16xf32>
    %205 = arith.mulf %204, %201 : vector<16x16xf32>
    %206 = arith.select %203, %201, %205 : vector<16x16xi1>, vector<16x16xf32>
    %cst_69 = arith.constant -1.000000e+30 : f32
    %207 = vector.broadcast %cst_69 : f32 to vector<16x16xf32>
    %208 = arith.select %3, %206, %207 : vector<16x16xi1>, vector<16x16xf32>
    %cst_70 = arith.constant dense<0xFF800000> : vector<16xf32>
    %209 = vector.multi_reduction <maximumf>, %208, %cst_70 [1] : vector<16x16xf32> to vector<16xf32>
    %210 = vector.shape_cast %209 : vector<16xf32> to vector<16x1xf32>
    %211 = vector.broadcast %210 : vector<16x1xf32> to vector<16x16xf32>
    %212 = arith.subf %208, %211 : vector<16x16xf32>
    %213 = math.exp %212 : vector<16x16xf32>
    %cst_71 = arith.constant dense<0.000000e+00> : vector<16xf32>
    %214 = vector.multi_reduction <add>, %213, %cst_71 [1] : vector<16x16xf32> to vector<16xf32>
    %215 = vector.shape_cast %214 : vector<16xf32> to vector<16x1xf32>
    %216 = vector.broadcast %215 : vector<16x1xf32> to vector<16x16xf32>
    %217 = arith.divf %213, %216 : vector<16x16xf32>
    %218 = arith.truncf %217 : vector<16x16xf32> to vector<16x16xbf16>
    %219 = arith.truncf %196 : vector<16x8xf32> to vector<16x8xbf16>
    %cst_72 = arith.constant dense<0.000000e+00> : vector<16x8xf32>
    %220 = tpu.matmul %218, %219, %cst_72 {dimension_numbers = #tpu.dot_dimension_numbers<[1], [0], [0], [1], [0, 0, 1, 1], [], []>} : vector<16x16xbf16>, vector<16x8xbf16>, vector<16x8xf32> -> vector<16x8xf32>
    %c0_73 = arith.constant 0 : index
    %c16_74 = arith.constant 16 : index
    %221 = vector.load %arg10[%c0_73, %c16_74] : memref<16x32xf32, #tpu.memory_space<vmem>>, vector<16x8xf32>
    tpu.vector_store %arg10[%c0_73, %c16_74], %220 {strides = array<i32>} : memref<16x32xf32, #tpu.memory_space<vmem>>, vector<16x8xf32>,
    %222 = vector.extract_strided_slice %140 {offsets = [0, 24], sizes = [16, 8], strides = [1, 1]} : vector<16x32xf32> to vector<16x8xf32>
    %223 = vector.extract_strided_slice %142 {offsets = [0, 3], sizes = [16, 1], strides = [1, 1]} : vector<16x4xf32> to vector<16x1xf32>
    %224 = vector.extract_strided_slice %143 {offsets = [3, 0], sizes = [1, 16], strides = [1, 1]} : vector<4x16xf32> to vector<1x16xf32>
    %225 = vector.broadcast %223 : vector<16x1xf32> to vector<16x16xf32>
    %226 = vector.broadcast %224 : vector<1x16xf32> to vector<16x16xf32>
    %227 = arith.addf %225, %226 : vector<16x16xf32>
    %cst_75 = arith.constant 0.000000e+00 : f32
    %228 = vector.broadcast %cst_75 : f32 to vector<16x16xf32>
    %229 = arith.cmpf ogt, %227, %228 : vector<16x16xf32>
    %cst_76 = arith.constant 2.000000e-01 : f32
    %230 = vector.broadcast %cst_76 : f32 to vector<16x16xf32>
    %231 = arith.mulf %230, %227 : vector<16x16xf32>
    %232 = arith.select %229, %227, %231 : vector<16x16xi1>, vector<16x16xf32>
    %cst_77 = arith.constant -1.000000e+30 : f32
    %233 = vector.broadcast %cst_77 : f32 to vector<16x16xf32>
    %234 = arith.select %3, %232, %233 : vector<16x16xi1>, vector<16x16xf32>
    %cst_78 = arith.constant dense<0xFF800000> : vector<16xf32>
    %235 = vector.multi_reduction <maximumf>, %234, %cst_78 [1] : vector<16x16xf32> to vector<16xf32>
    %236 = vector.shape_cast %235 : vector<16xf32> to vector<16x1xf32>
    %237 = vector.broadcast %236 : vector<16x1xf32> to vector<16x16xf32>
    %238 = arith.subf %234, %237 : vector<16x16xf32>
    %239 = math.exp %238 : vector<16x16xf32>
    %cst_79 = arith.constant dense<0.000000e+00> : vector<16xf32>
    %240 = vector.multi_reduction <add>, %239, %cst_79 [1] : vector<16x16xf32> to vector<16xf32>
    %241 = vector.shape_cast %240 : vector<16xf32> to vector<16x1xf32>
    %242 = vector.broadcast %241 : vector<16x1xf32> to vector<16x16xf32>
    %243 = arith.divf %239, %242 : vector<16x16xf32>
    %244 = arith.truncf %243 : vector<16x16xf32> to vector<16x16xbf16>
    %245 = arith.truncf %222 : vector<16x8xf32> to vector<16x8xbf16>
    %cst_80 = arith.constant dense<0.000000e+00> : vector<16x8xf32>
    %246 = tpu.matmul %244, %245, %cst_80 {dimension_numbers = #tpu.dot_dimension_numbers<[1], [0], [0], [1], [0, 0, 1, 1], [], []>} : vector<16x16xbf16>, vector<16x8xbf16>, vector<16x8xf32> -> vector<16x8xf32>
    %c0_81 = arith.constant 0 : index
    %c24_82 = arith.constant 24 : index
    %247 = vector.load %arg10[%c0_81, %c24_82] : memref<16x32xf32, #tpu.memory_space<vmem>>, vector<16x8xf32>
    tpu.vector_store %arg10[%c0_81, %c24_82], %246 {strides = array<i32>} : memref<16x32xf32, #tpu.memory_space<vmem>>, vector<16x8xf32>,
    %c0_83 = arith.constant 0 : index
    %c0_84 = arith.constant 0 : index
    %248 = vector.load %arg10[%c0_83, %c0_84] : memref<16x32xf32, #tpu.memory_space<vmem>>, vector<16x32xf32>
    %c1_85 = arith.constant 1 : index
    %c0_86 = arith.constant 0 : index
    %c0_87 = arith.constant 0 : index
    %249 = vector.load %arg4[%c1_85, %c0_86, %c0_87] : memref<3x1x32xf32, #tpu.memory_space<vmem>>, vector<1x1x32xf32>
    %250 = vector.shape_cast %249 : vector<1x1x32xf32> to vector<1x32xf32>
    %251 = vector.broadcast %250 : vector<1x32xf32> to vector<16x32xf32>
    %252 = arith.mulf %248, %251 : vector<16x32xf32>
    %c1_88 = arith.constant 1 : index
    %c0_89 = arith.constant 0 : index
    %c0_90 = arith.constant 0 : index
    %253 = vector.load %arg5[%c1_88, %c0_89, %c0_90] : memref<3x1x32xf32, #tpu.memory_space<vmem>>, vector<1x1x32xf32>
    %254 = vector.shape_cast %253 : vector<1x1x32xf32> to vector<1x32xf32>
    %255 = vector.broadcast %254 : vector<1x32xf32> to vector<16x32xf32>
    %256 = arith.addf %252, %255 : vector<16x32xf32>
    %cst_91 = arith.constant 0.000000e+00 : f32
    %257 = vector.broadcast %cst_91 : f32 to vector<16x32xf32>
    %258 = arith.cmpf ogt, %256, %257 : vector<16x32xf32>
    %259 = math.exp %256 : vector<16x32xf32>
    %cst_92 = arith.constant 1.000000e+00 : f32
    %260 = vector.broadcast %cst_92 : f32 to vector<16x32xf32>
    %261 = arith.subf %259, %260 : vector<16x32xf32>
    %262 = arith.select %258, %256, %261 : vector<16x32xi1>, vector<16x32xf32>
    %263 = arith.addf %262, %134 : vector<16x32xf32>
    %264 = arith.truncf %263 : vector<16x32xf32> to vector<16x32xbf16>
    %c2 = arith.constant 2 : index
    %c0_93 = arith.constant 0 : index
    %c0_94 = arith.constant 0 : index
    %265 = vector.load %arg3[%c2, %c0_93, %c0_94] : memref<3x32x40xf32, #tpu.memory_space<vmem>>, vector<1x32x40xf32>
    %266 = vector.shape_cast %265 : vector<1x32x40xf32> to vector<32x40xf32>
    %267 = arith.truncf %266 : vector<32x40xf32> to vector<32x40xbf16>
    %cst_95 = arith.constant dense<0.000000e+00> : vector<16x40xf32>
    %268 = tpu.matmul %264, %267, %cst_95 {dimension_numbers = #tpu.dot_dimension_numbers<[1], [0], [0], [1], [0, 0, 1, 1], [], []>} : vector<16x32xbf16>, vector<32x40xbf16>, vector<16x40xf32> -> vector<16x40xf32>
    %269 = vector.extract_strided_slice %268 {offsets = [0, 0], sizes = [16, 32], strides = [1, 1]} : vector<16x40xf32> to vector<16x32xf32>
    %270 = vector.extract_strided_slice %268 {offsets = [0, 32], sizes = [16, 4], strides = [1, 1]} : vector<16x40xf32> to vector<16x4xf32>
    %271 = vector.extract_strided_slice %268 {offsets = [0, 36], sizes = [16, 4], strides = [1, 1]} : vector<16x40xf32> to vector<16x4xf32>
    %272 = tpu.transpose %270, [1, 0] : vector<16x4xf32> -> vector<4x16xf32>
    %273 = vector.extract_strided_slice %269 {offsets = [0, 0], sizes = [16, 8], strides = [1, 1]} : vector<16x32xf32> to vector<16x8xf32>
    %274 = vector.extract_strided_slice %271 {offsets = [0, 0], sizes = [16, 1], strides = [1, 1]} : vector<16x4xf32> to vector<16x1xf32>
    %275 = vector.extract_strided_slice %272 {offsets = [0, 0], sizes = [1, 16], strides = [1, 1]} : vector<4x16xf32> to vector<1x16xf32>
    %276 = vector.broadcast %274 : vector<16x1xf32> to vector<16x16xf32>
    %277 = vector.broadcast %275 : vector<1x16xf32> to vector<16x16xf32>
    %278 = arith.addf %276, %277 : vector<16x16xf32>
    %cst_96 = arith.constant 0.000000e+00 : f32
    %279 = vector.broadcast %cst_96 : f32 to vector<16x16xf32>
    %280 = arith.cmpf ogt, %278, %279 : vector<16x16xf32>
    %cst_97 = arith.constant 2.000000e-01 : f32
    %281 = vector.broadcast %cst_97 : f32 to vector<16x16xf32>
    %282 = arith.mulf %281, %278 : vector<16x16xf32>
    %283 = arith.select %280, %278, %282 : vector<16x16xi1>, vector<16x16xf32>
    %cst_98 = arith.constant -1.000000e+30 : f32
    %284 = vector.broadcast %cst_98 : f32 to vector<16x16xf32>
    %285 = arith.select %3, %283, %284 : vector<16x16xi1>, vector<16x16xf32>
    %cst_99 = arith.constant dense<0xFF800000> : vector<16xf32>
    %286 = vector.multi_reduction <maximumf>, %285, %cst_99 [1] : vector<16x16xf32> to vector<16xf32>
    %287 = vector.shape_cast %286 : vector<16xf32> to vector<16x1xf32>
    %288 = vector.broadcast %287 : vector<16x1xf32> to vector<16x16xf32>
    %289 = arith.subf %285, %288 : vector<16x16xf32>
    %290 = math.exp %289 : vector<16x16xf32>
    %cst_100 = arith.constant dense<0.000000e+00> : vector<16xf32>
    %291 = vector.multi_reduction <add>, %290, %cst_100 [1] : vector<16x16xf32> to vector<16xf32>
    %292 = vector.shape_cast %291 : vector<16xf32> to vector<16x1xf32>
    %293 = vector.broadcast %292 : vector<16x1xf32> to vector<16x16xf32>
    %294 = arith.divf %290, %293 : vector<16x16xf32>
    %295 = arith.truncf %294 : vector<16x16xf32> to vector<16x16xbf16>
    %296 = arith.truncf %273 : vector<16x8xf32> to vector<16x8xbf16>
    %cst_101 = arith.constant dense<0.000000e+00> : vector<16x8xf32>
    %297 = tpu.matmul %295, %296, %cst_101 {dimension_numbers = #tpu.dot_dimension_numbers<[1], [0], [0], [1], [0, 0, 1, 1], [], []>} : vector<16x16xbf16>, vector<16x8xbf16>, vector<16x8xf32> -> vector<16x8xf32>
    %c0_102 = arith.constant 0 : index
    %c0_103 = arith.constant 0 : index
    %298 = vector.load %arg10[%c0_102, %c0_103] : memref<16x32xf32, #tpu.memory_space<vmem>>, vector<16x8xf32>
    tpu.vector_store %arg10[%c0_102, %c0_103], %297 {strides = array<i32>} : memref<16x32xf32, #tpu.memory_space<vmem>>, vector<16x8xf32>,
    %299 = vector.extract_strided_slice %269 {offsets = [0, 8], sizes = [16, 8], strides = [1, 1]} : vector<16x32xf32> to vector<16x8xf32>
    %300 = vector.extract_strided_slice %271 {offsets = [0, 1], sizes = [16, 1], strides = [1, 1]} : vector<16x4xf32> to vector<16x1xf32>
    %301 = vector.extract_strided_slice %272 {offsets = [1, 0], sizes = [1, 16], strides = [1, 1]} : vector<4x16xf32> to vector<1x16xf32>
    %302 = vector.broadcast %300 : vector<16x1xf32> to vector<16x16xf32>
    %303 = vector.broadcast %301 : vector<1x16xf32> to vector<16x16xf32>
    %304 = arith.addf %302, %303 : vector<16x16xf32>
    %cst_104 = arith.constant 0.000000e+00 : f32
    %305 = vector.broadcast %cst_104 : f32 to vector<16x16xf32>
    %306 = arith.cmpf ogt, %304, %305 : vector<16x16xf32>
    %cst_105 = arith.constant 2.000000e-01 : f32
    %307 = vector.broadcast %cst_105 : f32 to vector<16x16xf32>
    %308 = arith.mulf %307, %304 : vector<16x16xf32>
    %309 = arith.select %306, %304, %308 : vector<16x16xi1>, vector<16x16xf32>
    %cst_106 = arith.constant -1.000000e+30 : f32
    %310 = vector.broadcast %cst_106 : f32 to vector<16x16xf32>
    %311 = arith.select %3, %309, %310 : vector<16x16xi1>, vector<16x16xf32>
    %cst_107 = arith.constant dense<0xFF800000> : vector<16xf32>
    %312 = vector.multi_reduction <maximumf>, %311, %cst_107 [1] : vector<16x16xf32> to vector<16xf32>
    %313 = vector.shape_cast %312 : vector<16xf32> to vector<16x1xf32>
    %314 = vector.broadcast %313 : vector<16x1xf32> to vector<16x16xf32>
    %315 = arith.subf %311, %314 : vector<16x16xf32>
    %316 = math.exp %315 : vector<16x16xf32>
    %cst_108 = arith.constant dense<0.000000e+00> : vector<16xf32>
    %317 = vector.multi_reduction <add>, %316, %cst_108 [1] : vector<16x16xf32> to vector<16xf32>
    %318 = vector.shape_cast %317 : vector<16xf32> to vector<16x1xf32>
    %319 = vector.broadcast %318 : vector<16x1xf32> to vector<16x16xf32>
    %320 = arith.divf %316, %319 : vector<16x16xf32>
    %321 = arith.truncf %320 : vector<16x16xf32> to vector<16x16xbf16>
    %322 = arith.truncf %299 : vector<16x8xf32> to vector<16x8xbf16>
    %cst_109 = arith.constant dense<0.000000e+00> : vector<16x8xf32>
    %323 = tpu.matmul %321, %322, %cst_109 {dimension_numbers = #tpu.dot_dimension_numbers<[1], [0], [0], [1], [0, 0, 1, 1], [], []>} : vector<16x16xbf16>, vector<16x8xbf16>, vector<16x8xf32> -> vector<16x8xf32>
    %c0_110 = arith.constant 0 : index
    %c8_111 = arith.constant 8 : index
    %324 = vector.load %arg10[%c0_110, %c8_111] : memref<16x32xf32, #tpu.memory_space<vmem>>, vector<16x8xf32>
    tpu.vector_store %arg10[%c0_110, %c8_111], %323 {strides = array<i32>} : memref<16x32xf32, #tpu.memory_space<vmem>>, vector<16x8xf32>,
    %325 = vector.extract_strided_slice %269 {offsets = [0, 16], sizes = [16, 8], strides = [1, 1]} : vector<16x32xf32> to vector<16x8xf32>
    %326 = vector.extract_strided_slice %271 {offsets = [0, 2], sizes = [16, 1], strides = [1, 1]} : vector<16x4xf32> to vector<16x1xf32>
    %327 = vector.extract_strided_slice %272 {offsets = [2, 0], sizes = [1, 16], strides = [1, 1]} : vector<4x16xf32> to vector<1x16xf32>
    %328 = vector.broadcast %326 : vector<16x1xf32> to vector<16x16xf32>
    %329 = vector.broadcast %327 : vector<1x16xf32> to vector<16x16xf32>
    %330 = arith.addf %328, %329 : vector<16x16xf32>
    %cst_112 = arith.constant 0.000000e+00 : f32
    %331 = vector.broadcast %cst_112 : f32 to vector<16x16xf32>
    %332 = arith.cmpf ogt, %330, %331 : vector<16x16xf32>
    %cst_113 = arith.constant 2.000000e-01 : f32
    %333 = vector.broadcast %cst_113 : f32 to vector<16x16xf32>
    %334 = arith.mulf %333, %330 : vector<16x16xf32>
    %335 = arith.select %332, %330, %334 : vector<16x16xi1>, vector<16x16xf32>
    %cst_114 = arith.constant -1.000000e+30 : f32
    %336 = vector.broadcast %cst_114 : f32 to vector<16x16xf32>
    %337 = arith.select %3, %335, %336 : vector<16x16xi1>, vector<16x16xf32>
    %cst_115 = arith.constant dense<0xFF800000> : vector<16xf32>
    %338 = vector.multi_reduction <maximumf>, %337, %cst_115 [1] : vector<16x16xf32> to vector<16xf32>
    %339 = vector.shape_cast %338 : vector<16xf32> to vector<16x1xf32>
    %340 = vector.broadcast %339 : vector<16x1xf32> to vector<16x16xf32>
    %341 = arith.subf %337, %340 : vector<16x16xf32>
    %342 = math.exp %341 : vector<16x16xf32>
    %cst_116 = arith.constant dense<0.000000e+00> : vector<16xf32>
    %343 = vector.multi_reduction <add>, %342, %cst_116 [1] : vector<16x16xf32> to vector<16xf32>
    %344 = vector.shape_cast %343 : vector<16xf32> to vector<16x1xf32>
    %345 = vector.broadcast %344 : vector<16x1xf32> to vector<16x16xf32>
    %346 = arith.divf %342, %345 : vector<16x16xf32>
    %347 = arith.truncf %346 : vector<16x16xf32> to vector<16x16xbf16>
    %348 = arith.truncf %325 : vector<16x8xf32> to vector<16x8xbf16>
    %cst_117 = arith.constant dense<0.000000e+00> : vector<16x8xf32>
    %349 = tpu.matmul %347, %348, %cst_117 {dimension_numbers = #tpu.dot_dimension_numbers<[1], [0], [0], [1], [0, 0, 1, 1], [], []>} : vector<16x16xbf16>, vector<16x8xbf16>, vector<16x8xf32> -> vector<16x8xf32>
    %c0_118 = arith.constant 0 : index
    %c16_119 = arith.constant 16 : index
    %350 = vector.load %arg10[%c0_118, %c16_119] : memref<16x32xf32, #tpu.memory_space<vmem>>, vector<16x8xf32>
    tpu.vector_store %arg10[%c0_118, %c16_119], %349 {strides = array<i32>} : memref<16x32xf32, #tpu.memory_space<vmem>>, vector<16x8xf32>,
    %351 = vector.extract_strided_slice %269 {offsets = [0, 24], sizes = [16, 8], strides = [1, 1]} : vector<16x32xf32> to vector<16x8xf32>
    %352 = vector.extract_strided_slice %271 {offsets = [0, 3], sizes = [16, 1], strides = [1, 1]} : vector<16x4xf32> to vector<16x1xf32>
    %353 = vector.extract_strided_slice %272 {offsets = [3, 0], sizes = [1, 16], strides = [1, 1]} : vector<4x16xf32> to vector<1x16xf32>
    %354 = vector.broadcast %352 : vector<16x1xf32> to vector<16x16xf32>
    %355 = vector.broadcast %353 : vector<1x16xf32> to vector<16x16xf32>
    %356 = arith.addf %354, %355 : vector<16x16xf32>
    %cst_120 = arith.constant 0.000000e+00 : f32
    %357 = vector.broadcast %cst_120 : f32 to vector<16x16xf32>
    %358 = arith.cmpf ogt, %356, %357 : vector<16x16xf32>
    %cst_121 = arith.constant 2.000000e-01 : f32
    %359 = vector.broadcast %cst_121 : f32 to vector<16x16xf32>
    %360 = arith.mulf %359, %356 : vector<16x16xf32>
    %361 = arith.select %358, %356, %360 : vector<16x16xi1>, vector<16x16xf32>
    %cst_122 = arith.constant -1.000000e+30 : f32
    %362 = vector.broadcast %cst_122 : f32 to vector<16x16xf32>
    %363 = arith.select %3, %361, %362 : vector<16x16xi1>, vector<16x16xf32>
    %cst_123 = arith.constant dense<0xFF800000> : vector<16xf32>
    %364 = vector.multi_reduction <maximumf>, %363, %cst_123 [1] : vector<16x16xf32> to vector<16xf32>
    %365 = vector.shape_cast %364 : vector<16xf32> to vector<16x1xf32>
    %366 = vector.broadcast %365 : vector<16x1xf32> to vector<16x16xf32>
    %367 = arith.subf %363, %366 : vector<16x16xf32>
    %368 = math.exp %367 : vector<16x16xf32>
    %cst_124 = arith.constant dense<0.000000e+00> : vector<16xf32>
    %369 = vector.multi_reduction <add>, %368, %cst_124 [1] : vector<16x16xf32> to vector<16xf32>
    %370 = vector.shape_cast %369 : vector<16xf32> to vector<16x1xf32>
    %371 = vector.broadcast %370 : vector<16x1xf32> to vector<16x16xf32>
    %372 = arith.divf %368, %371 : vector<16x16xf32>
    %373 = arith.truncf %372 : vector<16x16xf32> to vector<16x16xbf16>
    %374 = arith.truncf %351 : vector<16x8xf32> to vector<16x8xbf16>
    %cst_125 = arith.constant dense<0.000000e+00> : vector<16x8xf32>
    %375 = tpu.matmul %373, %374, %cst_125 {dimension_numbers = #tpu.dot_dimension_numbers<[1], [0], [0], [1], [0, 0, 1, 1], [], []>} : vector<16x16xbf16>, vector<16x8xbf16>, vector<16x8xf32> -> vector<16x8xf32>
    %c0_126 = arith.constant 0 : index
    %c24_127 = arith.constant 24 : index
    %376 = vector.load %arg10[%c0_126, %c24_127] : memref<16x32xf32, #tpu.memory_space<vmem>>, vector<16x8xf32>
    tpu.vector_store %arg10[%c0_126, %c24_127], %375 {strides = array<i32>} : memref<16x32xf32, #tpu.memory_space<vmem>>, vector<16x8xf32>,
    %c0_128 = arith.constant 0 : index
    %c0_129 = arith.constant 0 : index
    %377 = vector.load %arg10[%c0_128, %c0_129] : memref<16x32xf32, #tpu.memory_space<vmem>>, vector<16x32xf32>
    %c2_130 = arith.constant 2 : index
    %c0_131 = arith.constant 0 : index
    %c0_132 = arith.constant 0 : index
    %378 = vector.load %arg4[%c2_130, %c0_131, %c0_132] : memref<3x1x32xf32, #tpu.memory_space<vmem>>, vector<1x1x32xf32>
    %379 = vector.shape_cast %378 : vector<1x1x32xf32> to vector<1x32xf32>
    %380 = vector.broadcast %379 : vector<1x32xf32> to vector<16x32xf32>
    %381 = arith.mulf %377, %380 : vector<16x32xf32>
    %c2_133 = arith.constant 2 : index
    %c0_134 = arith.constant 0 : index
    %c0_135 = arith.constant 0 : index
    %382 = vector.load %arg5[%c2_133, %c0_134, %c0_135] : memref<3x1x32xf32, #tpu.memory_space<vmem>>, vector<1x1x32xf32>
    %383 = vector.shape_cast %382 : vector<1x1x32xf32> to vector<1x32xf32>
    %384 = vector.broadcast %383 : vector<1x32xf32> to vector<16x32xf32>
    %385 = arith.addf %381, %384 : vector<16x32xf32>
    %cst_136 = arith.constant 0.000000e+00 : f32
    %386 = vector.broadcast %cst_136 : f32 to vector<16x32xf32>
    %387 = arith.cmpf ogt, %385, %386 : vector<16x32xf32>
    %388 = math.exp %385 : vector<16x32xf32>
    %cst_137 = arith.constant 1.000000e+00 : f32
    %389 = vector.broadcast %cst_137 : f32 to vector<16x32xf32>
    %390 = arith.subf %388, %389 : vector<16x32xf32>
    %391 = arith.select %387, %385, %390 : vector<16x32xi1>, vector<16x32xf32>
    %392 = arith.addf %391, %263 : vector<16x32xf32>
    %393 = arith.truncf %392 : vector<16x32xf32> to vector<16x32xbf16>
    %c0_138 = arith.constant 0 : index
    %c0_139 = arith.constant 0 : index
    %394 = vector.load %arg6[%c0_138, %c0_139] : memref<32x34xf32, #tpu.memory_space<vmem>>, vector<32x34xf32>
    %395 = arith.truncf %394 : vector<32x34xf32> to vector<32x34xbf16>
    %cst_140 = arith.constant dense<0.000000e+00> : vector<16x34xf32>
    %396 = tpu.matmul %393, %395, %cst_140 {dimension_numbers = #tpu.dot_dimension_numbers<[1], [0], [0], [1], [0, 0, 1, 1], [], []>} : vector<16x32xbf16>, vector<32x34xbf16>, vector<16x34xf32> -> vector<16x34xf32>
    %397 = vector.extract_strided_slice %396 {offsets = [0, 0], sizes = [16, 32], strides = [1, 1]} : vector<16x34xf32> to vector<16x32xf32>
    %398 = vector.extract_strided_slice %396 {offsets = [0, 32], sizes = [16, 1], strides = [1, 1]} : vector<16x34xf32> to vector<16x1xf32>
    %399 = vector.extract_strided_slice %396 {offsets = [0, 33], sizes = [16, 1], strides = [1, 1]} : vector<16x34xf32> to vector<16x1xf32>
    %400 = tpu.transpose %398, [1, 0] : vector<16x1xf32> -> vector<1x16xf32>
    %401 = vector.broadcast %399 : vector<16x1xf32> to vector<16x16xf32>
    %402 = vector.broadcast %400 : vector<1x16xf32> to vector<16x16xf32>
    %403 = arith.addf %401, %402 : vector<16x16xf32>
    %cst_141 = arith.constant 0.000000e+00 : f32
    %404 = vector.broadcast %cst_141 : f32 to vector<16x16xf32>
    %405 = arith.cmpf ogt, %403, %404 : vector<16x16xf32>
    %cst_142 = arith.constant 2.000000e-01 : f32
    %406 = vector.broadcast %cst_142 : f32 to vector<16x16xf32>
    %407 = arith.mulf %406, %403 : vector<16x16xf32>
    %408 = arith.select %405, %403, %407 : vector<16x16xi1>, vector<16x16xf32>
    %cst_143 = arith.constant -1.000000e+30 : f32
    %409 = vector.broadcast %cst_143 : f32 to vector<16x16xf32>
    %410 = arith.select %3, %408, %409 : vector<16x16xi1>, vector<16x16xf32>
    %cst_144 = arith.constant dense<0xFF800000> : vector<16xf32>
    %411 = vector.multi_reduction <maximumf>, %410, %cst_144 [1] : vector<16x16xf32> to vector<16xf32>
    %412 = vector.shape_cast %411 : vector<16xf32> to vector<16x1xf32>
    %413 = vector.broadcast %412 : vector<16x1xf32> to vector<16x16xf32>
    %414 = arith.subf %410, %413 : vector<16x16xf32>
    %415 = math.exp %414 : vector<16x16xf32>
    %cst_145 = arith.constant dense<0.000000e+00> : vector<16xf32>
    %416 = vector.multi_reduction <add>, %415, %cst_145 [1] : vector<16x16xf32> to vector<16xf32>
    %417 = vector.shape_cast %416 : vector<16xf32> to vector<16x1xf32>
    %418 = vector.broadcast %417 : vector<16x1xf32> to vector<16x16xf32>
    %419 = arith.divf %415, %418 : vector<16x16xf32>
    %420 = arith.truncf %419 : vector<16x16xf32> to vector<16x16xbf16>
    %421 = arith.truncf %397 : vector<16x32xf32> to vector<16x32xbf16>
    %cst_146 = arith.constant dense<0.000000e+00> : vector<16x32xf32>
    %422 = tpu.matmul %420, %421, %cst_146 {dimension_numbers = #tpu.dot_dimension_numbers<[1], [0], [0], [1], [0, 0, 1, 1], [], []>} : vector<16x16xbf16>, vector<16x32xbf16>, vector<16x32xf32> -> vector<16x32xf32>
    %c0_147 = arith.constant 0 : index
    %c0_148 = arith.constant 0 : index
    %423 = vector.load %arg7[%c0_147, %c0_148] : memref<1x32xf32, #tpu.memory_space<vmem>>, vector<1x32xf32>
    %424 = vector.broadcast %423 : vector<1x32xf32> to vector<16x32xf32>
    %425 = arith.mulf %422, %424 : vector<16x32xf32>
    %c0_149 = arith.constant 0 : index
    %c0_150 = arith.constant 0 : index
    %426 = vector.load %arg8[%c0_149, %c0_150] : memref<1x32xf32, #tpu.memory_space<vmem>>, vector<1x32xf32>
    %427 = vector.broadcast %426 : vector<1x32xf32> to vector<16x32xf32>
    %428 = arith.addf %425, %427 : vector<16x32xf32>
    %cst_151 = arith.constant 0.000000e+00 : f32
    %429 = vector.broadcast %cst_151 : f32 to vector<16x32xf32>
    %430 = arith.cmpf ogt, %428, %429 : vector<16x32xf32>
    %431 = math.exp %428 : vector<16x32xf32>
    %cst_152 = arith.constant 1.000000e+00 : f32
    %432 = vector.broadcast %cst_152 : f32 to vector<16x32xf32>
    %433 = arith.subf %431, %432 : vector<16x32xf32>
    %434 = arith.select %430, %428, %433 : vector<16x32xi1>, vector<16x32xf32>
    %435 = arith.addf %434, %392 : vector<16x32xf32>
    %cst_153 = arith.constant dense<0xFF800000> : vector<16xf32>
    %436 = vector.multi_reduction <maximumf>, %419, %cst_153 [1] : vector<16x16xf32> to vector<16xf32>
    %437 = vector.shape_cast %436 : vector<16xf32> to vector<16x1xf32>
    %cst_154 = arith.constant 1.000000e+00 : f32
    %438 = vector.broadcast %cst_154 : f32 to vector<16x1xf32>
    %439 = arith.subf %438, %437 : vector<16x1xf32>
    %cst_155 = arith.constant dense<0.000000e+00> : vector<1xf32>
    %440 = vector.multi_reduction <add>, %439, %cst_155 [0] : vector<16x1xf32> to vector<1xf32>
    %441 = vector.shape_cast %440 : vector<1xf32> to vector<1x1xf32>
    %cst_156 = arith.constant 1.000000e+00 : f32
    %442 = vector.broadcast %cst_156 : f32 to vector<1x1xf32>
    %443 = arith.mulf %442, %441 : vector<1x1xf32>
    %cst_157 = arith.constant dense<0.000000e+00> : vector<32xf32>
    %444 = vector.multi_reduction <add>, %435, %cst_157 [0] : vector<16x32xf32> to vector<32xf32>
    %445 = vector.shape_cast %444 : vector<32xf32> to vector<1x32xf32>
    %cst_158 = arith.constant 1.600000e+01 : f32
    %446 = vector.broadcast %cst_158 : f32 to vector<1x32xf32>
    %447 = arith.divf %445, %446 : vector<1x32xf32>
    %448 = tpu.concatenate %447, %443 in 1 : vector<1x32xf32>, vector<1x1xf32> -> vector<1x33xf32>
    %c0_159 = arith.constant 0 : index
    %c0_160 = arith.constant 0 : index
    %c0_161 = arith.constant 0 : index
    %449 = vector.load %arg9[%c0_159, %c0_160, %c0_161] : memref<1x1x33xf32, #tpu.memory_space<vmem>>, vector<1x1x33xf32>
    %450 = vector.shape_cast %449 : vector<1x1x33xf32> to vector<1x33xf32>
    %451 = vector.shape_cast %448 : vector<1x33xf32> to vector<1x1x33xf32>
    tpu.vector_store %arg9[%c0_159, %c0_160, %c0_161], %451 {strides = array<i32>} : memref<1x1x33xf32, #tpu.memory_space<vmem>>, vector<1x1x33xf32>,
    return
  }
  func.func @transform_0(%arg0: i32) -> (i32, i32, i32) {
    %c0_i32 = arith.constant 0 : i32
    %c0_i32_0 = arith.constant 0 : i32
    %c0_i32_1 = arith.constant 0 : i32
    return %arg0, %c0_i32, %c0_i32_0 : i32, i32, i32
  }
  func.func @transform_1(%arg0: i32) -> (i32, i32, i32) {
    %c0_i32 = arith.constant 0 : i32
    %c0_i32_0 = arith.constant 0 : i32
    %c0_i32_1 = arith.constant 0 : i32
    return %arg0, %c0_i32, %c0_i32_0 : i32, i32, i32
  }
  func.func @transform_2(%arg0: i32) -> (i32, i32, i32) {
    %c0_i32 = arith.constant 0 : i32
    %c0_i32_0 = arith.constant 0 : i32
    %c0_i32_1 = arith.constant 0 : i32
    %c0_i32_2 = arith.constant 0 : i32
    return %c0_i32, %c0_i32_0, %c0_i32_1 : i32, i32, i32
  }
  func.func @transform_3(%arg0: i32) -> (i32, i32, i32) {
    %c0_i32 = arith.constant 0 : i32
    %c0_i32_0 = arith.constant 0 : i32
    %c0_i32_1 = arith.constant 0 : i32
    %c0_i32_2 = arith.constant 0 : i32
    return %c0_i32, %c0_i32_0, %c0_i32_1 : i32, i32, i32
  }
  func.func @transform_4(%arg0: i32) -> (i32, i32, i32) {
    %c0_i32 = arith.constant 0 : i32
    %c0_i32_0 = arith.constant 0 : i32
    %c0_i32_1 = arith.constant 0 : i32
    %c0_i32_2 = arith.constant 0 : i32
    return %c0_i32, %c0_i32_0, %c0_i32_1 : i32, i32, i32
  }
  func.func @transform_5(%arg0: i32) -> (i32, i32) {
    %c0_i32 = arith.constant 0 : i32
    %c0_i32_0 = arith.constant 0 : i32
    %c0_i32_1 = arith.constant 0 : i32
    return %c0_i32, %c0_i32_0 : i32, i32
  }
  func.func @transform_6(%arg0: i32) -> (i32, i32) {
    %c0_i32 = arith.constant 0 : i32
    %c0_i32_0 = arith.constant 0 : i32
    %c0_i32_1 = arith.constant 0 : i32
    return %c0_i32, %c0_i32_0 : i32, i32
  }
  func.func @transform_7(%arg0: i32) -> (i32, i32) {
    %c0_i32 = arith.constant 0 : i32
    %c0_i32_0 = arith.constant 0 : i32
    %c0_i32_1 = arith.constant 0 : i32
    return %c0_i32, %c0_i32_0 : i32, i32
  }
  func.func @transform_8(%arg0: i32) -> (i32, i32, i32) {
    %c0_i32 = arith.constant 0 : i32
    %c0_i32_0 = arith.constant 0 : i32
    %c0_i32_1 = arith.constant 0 : i32
    return %arg0, %c0_i32, %c0_i32_0 : i32, i32, i32
  }
}

</mosaic_0001>

<llo_original>
// kernel: forward.1
$region0: #{forward.1}
  #allocation0 [shape = 'u32[]', space=smem, size = 0x4, offset = 0x4, fixed_abs, tag = 'smem constant byte address 0x4 - core index']
  #allocation1 [shape = 'u32[144,128]{1,0:T(1,128)}', space=vmem, size = 0x12000, scoped, tag = 'internal scratch']
  #allocation2 [shape = 'f32[16,32]{1,0:T(8,128)}', space=vmem, size = 0x2000, scoped, tag = 'scratch operand']
  %s0 = inlined_call_operand.vmem [shape: f32[2,16,32], index: 0, kind: input, shape index: {}]
  %s1 = inlined_call_operand.vmem [shape: f32[2,16,16], index: 1, kind: input, shape index: {}]
  %s2 = inlined_call_operand.vmem [shape: f32[3,32,40], index: 2, kind: input, shape index: {}]
  %s3 = inlined_call_operand.vmem [shape: f32[3,1,32], index: 3, kind: input, shape index: {}]
  %s4 = inlined_call_operand.vmem [shape: f32[3,1,32], index: 4, kind: input, shape index: {}]
  %s5 = inlined_call_operand.vmem [shape: f32[32,34], index: 5, kind: input, shape index: {}]
  %s6 = inlined_call_operand.vmem [shape: f32[1,32], index: 6, kind: input, shape index: {}]
  %s7 = inlined_call_operand.vmem [shape: f32[1,32], index: 7, kind: input, shape index: {}]
  %s8 = inlined_call_operand.vmem [shape: f32[2,1,33], index: 8, kind: output, shape index: {}]
  %s9 = sld [smem:[#allocation0]]
  $region65: #{forward.1} parent=0
    _
  %s11 = ssub.s32 1, %s9
  %s12 = scalar_select 0, %s11, %s9
  loop: start=0, step=1, limit=4
  $region2: #{forward.1} parent=0 // loop_pre_header
    _
  $region3: #{forward.1} parent=0 // loop_header
    %s14 = sphi 0, %s18
    %p15 = scmp.ge.s32.totalorder %s14, 4
    %s24 = sphi 0, %s26
    %s27 = sphi 0, %s24
    %s28 = sphi 0, %s27
    %s44 = sphi 0, %s28
    %s50 = sphi 0, %s52
    %s53 = sphi 0, %s50
    %s54 = sphi 0, %s53
    %s70 = sphi 0, %s54
    %s74 = sphi 0, %s74
    %s76 = sphi 0, %s74
    %s77 = sphi 0, %s76
    %s91 = sphi 0, %s77
    %s95 = sphi 0, %s95
    %s97 = sphi 0, %s95
    %s98 = sphi 0, %s97
    %s112 = sphi 0, %s98
    %s116 = sphi 0, %s116
    %s118 = sphi 0, %s116
    %s119 = sphi 0, %s118
    %s133 = sphi 0, %s119
    %s137 = sphi 0, %s137
    %s139 = sphi 0, %s137
    %s140 = sphi 0, %s139
    %s154 = sphi 0, %s140
    %s158 = sphi 0, %s158
    %s160 = sphi 0, %s158
    %s161 = sphi 0, %s160
    %s175 = sphi 0, %s161
    %s179 = sphi 0, %s179
    %s181 = sphi 0, %s179
    %s182 = sphi 0, %s181
    %s196 = sphi 0, %s182
    %s202 = sphi 0, %s204
    %s205 = sphi 0, %s202
    %s206 = sphi 0, %s205
    %s222 = sphi 0, %s206
  $region4: #{forward.1} parent=0 // loop_header_branch
    %17 = sbr.rel (%p15) target = $region8
  $region5: #{forward.1} parent=0 // loop_body
    %s19 = ssub.s32 %s14, 1
    %s20 = ssub.s32 %s14, 2
    %s21 = sadd.s32 %s14, 1
    %s22 = ssub.s32 %s14, %s21
    %p23 = scmp.eq.s32.totalorder %s22, 0
    %s25 = sadd.s32 %s24, 1
    %s26 = scalar_select %p23, %s24, %s25
    %p29 = pneg %p23
    %p30 = scmp.eq.s32.totalorder %s14, 1
    %p31 = por %p29, %p30
    %p32 = scmp.ne.s32.totalorder %s24, %s27
    %p33 = scmp.eq.s32.totalorder %s14, 0
    %p34 = por %p32, %p33
    %p35 = scmp.ne.s32.totalorder %s24, %s27
    %p36 = scmp.eq.s32.totalorder %s19, 1
    %p37 = por %p35, %p36
    %p38 = scmp.ne.s32.totalorder %s27, %s28
    %p39 = scmp.eq.s32.totalorder %s19, 0
    %p40 = por %p38, %p39
    %p41 = scmp.ne.s32.totalorder %s27, %s28
    %p42 = scmp.eq.s32.totalorder %s20, 1
    %p43 = por %p41, %p42
    %p45 = scmp.ne.s32.totalorder %s28, %s44
    %p46 = scmp.eq.s32.totalorder %s20, 0
    %p47 = por %p45, %p46
    %s48 = ssub.s32 %s14, %s21
    %p49 = scmp.eq.s32.totalorder %s48, 0
    %s51 = sadd.s32 %s50, 1
    %s52 = scalar_select %p49, %s50, %s51
    %p55 = pneg %p49
    %p56 = scmp.eq.s32.totalorder %s14, 1
    %p57 = por %p55, %p56
    %p58 = scmp.ne.s32.totalorder %s50, %s53
    %p59 = scmp.eq.s32.totalorder %s14, 0
    %p60 = por %p58, %p59
    %p61 = scmp.ne.s32.totalorder %s50, %s53
    %p62 = scmp.eq.s32.totalorder %s19, 1
    %p63 = por %p61, %p62
    %p64 = scmp.ne.s32.totalorder %s53, %s54
    %p65 = scmp.eq.s32.totalorder %s19, 0
    %p66 = por %p64, %p65
    %p67 = scmp.ne.s32.totalorder %s53, %s54
    %p68 = scmp.eq.s32.totalorder %s20, 1
    %p69 = por %p67, %p68
    %p71 = scmp.ne.s32.totalorder %s54, %s70
    %p72 = scmp.eq.s32.totalorder %s20, 0
    %p73 = por %p71, %p72
    %s75 = sadd.s32 %s74, 1
    %p78 = scmp.eq.s32.totalorder %s14, 1
    %p79 = scmp.ne.s32.totalorder %s74, %s76
    %p80 = scmp.eq.s32.totalorder %s14, 0
    %p81 = por %p79, %p80
    %p82 = scmp.ne.s32.totalorder %s74, %s76
    %p83 = scmp.eq.s32.totalorder %s19, 1
    %p84 = por %p82, %p83
    %p85 = scmp.ne.s32.totalorder %s76, %s77
    %p86 = scmp.eq.s32.totalorder %s19, 0
    %p87 = por %p85, %p86
    %p88 = scmp.ne.s32.totalorder %s76, %s77
    %p89 = scmp.eq.s32.totalorder %s20, 1
    %p90 = por %p88, %p89
    %p92 = scmp.ne.s32.totalorder %s77, %s91
    %p93 = scmp.eq.s32.totalorder %s20, 0
    %p94 = por %p92, %p93
    %s96 = sadd.s32 %s95, 1
    %p99 = scmp.eq.s32.totalorder %s14, 1
    %p100 = scmp.ne.s32.totalorder %s95, %s97
    %p101 = scmp.eq.s32.totalorder %s14, 0
    %p102 = por %p100, %p101
    %p103 = scmp.ne.s32.totalorder %s95, %s97
    %p104 = scmp.eq.s32.totalorder %s19, 1
    %p105 = por %p103, %p104
    %p106 = scmp.ne.s32.totalorder %s97, %s98
    %p107 = scmp.eq.s32.totalorder %s19, 0
    %p108 = por %p106, %p107
    %p109 = scmp.ne.s32.totalorder %s97, %s98
    %p110 = scmp.eq.s32.totalorder %s20, 1
    %p111 = por %p109, %p110
    %p113 = scmp.ne.s32.totalorder %s98, %s112
    %p114 = scmp.eq.s32.totalorder %s20, 0
    %p115 = por %p113, %p114
    %s117 = sadd.s32 %s116, 1
    %p120 = scmp.eq.s32.totalorder %s14, 1
    %p121 = scmp.ne.s32.totalorder %s116, %s118
    %p122 = scmp.eq.s32.totalorder %s14, 0
    %p123 = por %p121, %p122
    %p124 = scmp.ne.s32.totalorder %s116, %s118
    %p125 = scmp.eq.s32.totalorder %s19, 1
    %p126 = por %p124, %p125
    %p127 = scmp.ne.s32.totalorder %s118, %s119
    %p128 = scmp.eq.s32.totalorder %s19, 0
    %p129 = por %p127, %p128
    %p130 = scmp.ne.s32.totalorder %s118, %s119
    %p131 = scmp.eq.s32.totalorder %s20, 1
    %p132 = por %p130, %p131
    %p134 = scmp.ne.s32.totalorder %s119, %s133
    %p135 = scmp.eq.s32.totalorder %s20, 0
    %p136 = por %p134, %p135
    %s138 = sadd.s32 %s137, 1
    %p141 = scmp.eq.s32.totalorder %s14, 1
    %p142 = scmp.ne.s32.totalorder %s137, %s139
    %p143 = scmp.eq.s32.totalorder %s14, 0
    %p144 = por %p142, %p143
    %p145 = scmp.ne.s32.totalorder %s137, %s139
    %p146 = scmp.eq.s32.totalorder %s19, 1
    %p147 = por %p145, %p146
    %p148 = scmp.ne.s32.totalorder %s139, %s140
    %p149 = scmp.eq.s32.totalorder %s19, 0
    %p150 = por %p148, %p149
    %p151 = scmp.ne.s32.totalorder %s139, %s140
    %p152 = scmp.eq.s32.totalorder %s20, 1
    %p153 = por %p151, %p152
    %p155 = scmp.ne.s32.totalorder %s140, %s154
    %p156 = scmp.eq.s32.totalorder %s20, 0
    %p157 = por %p155, %p156
    %s159 = sadd.s32 %s158, 1
    %p162 = scmp.eq.s32.totalorder %s14, 1
    %p163 = scmp.ne.s32.totalorder %s158, %s160
    %p164 = scmp.eq.s32.totalorder %s14, 0
    %p165 = por %p163, %p164
    %p166 = scmp.ne.s32.totalorder %s158, %s160
    %p167 = scmp.eq.s32.totalorder %s19, 1
    %p168 = por %p166, %p167
    %p169 = scmp.ne.s32.totalorder %s160, %s161
    %p170 = scmp.eq.s32.totalorder %s19, 0
    %p171 = por %p169, %p170
    %p172 = scmp.ne.s32.totalorder %s160, %s161
    %p173 = scmp.eq.s32.totalorder %s20, 1
    %p174 = por %p172, %p173
    %p176 = scmp.ne.s32.totalorder %s161, %s175
    %p177 = scmp.eq.s32.totalorder %s20, 0
    %p178 = por %p176, %p177
    %s180 = sadd.s32 %s179, 1
    %p183 = scmp.eq.s32.totalorder %s14, 1
    %p184 = scmp.ne.s32.totalorder %s179, %s181
    %p185 = scmp.eq.s32.totalorder %s14, 0
    %p186 = por %p184, %p185
    %p187 = scmp.ne.s32.totalorder %s179, %s181
    %p188 = scmp.eq.s32.totalorder %s19, 1
    %p189 = por %p187, %p188
    %p190 = scmp.ne.s32.totalorder %s181, %s182
    %p191 = scmp.eq.s32.totalorder %s19, 0
    %p192 = por %p190, %p191
    %p193 = scmp.ne.s32.totalorder %s181, %s182
    %p194 = scmp.eq.s32.totalorder %s20, 1
    %p195 = por %p193, %p194
    %p197 = scmp.ne.s32.totalorder %s182, %s196
    %p198 = scmp.eq.s32.totalorder %s20, 0
    %p199 = por %p197, %p198
    %s200 = ssub.s32 %s14, %s21
    %p201 = scmp.eq.s32.totalorder %s200, 0
    %s203 = sadd.s32 %s202, 1
    %s204 = scalar_select %p201, %s202, %s203
    %p207 = pneg %p201
    %p208 = scmp.eq.s32.totalorder %s14, 1
    %p209 = por %p207, %p208
    %p210 = scmp.ne.s32.totalorder %s202, %s205
    %p211 = scmp.eq.s32.totalorder %s14, 0
    %p212 = por %p210, %p211
    %p213 = scmp.ne.s32.totalorder %s202, %s205
    %p214 = scmp.eq.s32.totalorder %s19, 1
    %p215 = por %p213, %p214
    %p216 = scmp.ne.s32.totalorder %s205, %s206
    %p217 = scmp.eq.s32.totalorder %s19, 0
    %p218 = por %p216, %p217
    %p219 = scmp.ne.s32.totalorder %s205, %s206
    %p220 = scmp.eq.s32.totalorder %s20, 1
    %p221 = por %p219, %p220
    %p223 = scmp.ne.s32.totalorder %s206, %s222
    %p224 = scmp.eq.s32.totalorder %s20, 0
    %p225 = por %p223, %p224
    %p226 = scmp.le.s32.totalorder 1, %s14
    %p227 = scmp.lt.s32.totalorder %s14, 3
    %p228 = pnand %p226, %p227
    %p229 = pneg %p228
    // Predicated region
    $region9: #{forward.1} parent=5 // pred_check
      _
    $region10: #{forward.1} parent=5 // pred_check_branch
      %231 = sbr.rel (%p228) target = $region12
    $region11: #{forward.1} parent=5 // pred_region
      %s232 = ssub.s32 %s14, 1
      // Predicated region
      $region13: #{forward.1} parent=11 // pred_check
        %p233 = pneg %p87
      $region14: #{forward.1} parent=11 // pred_check_branch
        %235 = sbr.rel (%p233) target = $region16
      $region15: #{forward.1} parent=11 // pred_region
        _
      $region16: #{forward.1} parent=11 // pred_fallthru
        _
      // Predicated region
      $region17: #{forward.1} parent=11 // pred_check
        %p236 = pneg %p108
      $region18: #{forward.1} parent=11 // pred_check_branch
        %238 = sbr.rel (%p236) target = $region20
      $region19: #{forward.1} parent=11 // pred_region
        _
      $region20: #{forward.1} parent=11 // pred_fallthru
        _
      // Predicated region
      $region21: #{forward.1} parent=11 // pred_check
        %p239 = pneg %p129
      $region22: #{forward.1} parent=11 // pred_check_branch
        %241 = sbr.rel (%p239) target = $region24
      $region23: #{forward.1} parent=11 // pred_region
        _
      $region24: #{forward.1} parent=11 // pred_fallthru
        _
      // Predicated region
      $region25: #{forward.1} parent=11 // pred_check
        %p242 = pneg %p150
      $region26: #{forward.1} parent=11 // pred_check_branch
        %244 = sbr.rel (%p242) target = $region28
      $region27: #{forward.1} parent=11 // pred_region
        _
      $region28: #{forward.1} parent=11 // pred_fallthru
        _
      // Predicated region
      $region29: #{forward.1} parent=11 // pred_check
        %p245 = pneg %p171
      $region30: #{forward.1} parent=11 // pred_check_branch
        %247 = sbr.rel (%p245) target = $region32
      $region31: #{forward.1} parent=11 // pred_region
        _
      $region32: #{forward.1} parent=11 // pred_fallthru
        _
      // Predicated region
      $region33: #{forward.1} parent=11 // pred_check
        %p248 = pneg %p192
      $region34: #{forward.1} parent=11 // pred_check_branch
        %250 = sbr.rel (%p248) target = $region36
      $region35: #{forward.1} parent=11 // pred_region
        _
      $region36: #{forward.1} parent=11 // pred_fallthru
        _
    $region12: #{forward.1} parent=5 // pred_fallthru
      _
    %p251 = scmp.lt.s32.totalorder %s14, 2
    // Predicated region
    $region37: #{forward.1} parent=5 // pred_check
      %p252 = pneg %p251
    $region38: #{forward.1} parent=5 // pred_check_branch
      %254 = sbr.rel (%p252) target = $region40
    $region39: #{forward.1} parent=5 // pred_region
      // Predicated region
      $region41: #{forward.1} parent=39 // pred_check
        %p255 = pneg %p34
      $region42: #{forward.1} parent=39 // pred_check_branch
        %257 = sbr.rel (%p255) target = $region44
      $region43: #{forward.1} parent=39 // pred_region
        %p258 = scmp.lt.s32.totalorder %s14, 1
        %s259 = scalar_select %p258, %s14, 1
        %s260 = smul.addr %s259, 2
        %s261 = smul.addr %s260, 8
        %s262 = scalar_lea.vmem %s0, %s261
      $region44: #{forward.1} parent=39 // pred_fallthru
        _
      // Predicated region
      $region45: #{forward.1} parent=39 // pred_check
        %p263 = pneg %p60
      $region46: #{forward.1} parent=39 // pred_check_branch
        %265 = sbr.rel (%p263) target = $region48
      $region47: #{forward.1} parent=39 // pred_region
        %p266 = scmp.lt.s32.totalorder %s14, 1
        %s267 = scalar_select %p266, %s14, 1
        %s268 = smul.addr %s267, 2
        %s269 = smul.addr %s268, 8
        %s270 = scalar_lea.vmem %s1, %s269
      $region48: #{forward.1} parent=39 // pred_fallthru
        _
    $region40: #{forward.1} parent=5 // pred_fallthru
      _
    %p271 = scmp.le.s32.totalorder 1, %s14
    %p272 = scmp.lt.s32.totalorder %s14, 3
    %p273 = pnand %p271, %p272
    %p274 = pneg %p273
    // Predicated region
    $region49: #{forward.1} parent=5 // pred_check
      _
    $region50: #{forward.1} parent=5 // pred_check_branch
      %276 = sbr.rel (%p273) target = $region52
    $region51: #{forward.1} parent=5 // pred_region
      %s277 = ssub.s32 %s14, 1
      %p278 = scmp.lt.s32.totalorder %s19, 1
      %s279 = scalar_select %p278, %s19, 1
      %s280 = smul.addr %s279, 2
      %s281 = smul.addr %s280, 8
      %s282 = scalar_lea.vmem %s0, %s281
      %p283 = pneg %p40
      %p284 = pneg %p37
      %p285 = scmp.lt.s32.totalorder %s19, 1
      %s286 = scalar_select %p285, %s19, 1
      %s287 = smul.addr %s286, 2
      %s288 = smul.addr %s287, 8
      %s289 = scalar_lea.vmem %s1, %s288
      %p290 = pneg %p66
      %p291 = pneg %p63
      %p292 = pneg %p87
      %p293 = pneg %p84
      %p294 = pneg %p108
      %p295 = pneg %p105
      %p296 = pneg %p129
      %p297 = pneg %p126
      %p298 = pneg %p150
      %p299 = pneg %p147
      %p300 = pneg %p171
      %p301 = pneg %p168
      %p302 = pneg %p192
      %p303 = pneg %p189
      %p304 = pneg %p218
      %p305 = pneg %p215
      %p306 = scmp.lt.s32.totalorder %s19, 1
      %s307 = scalar_select %p306, %s19, 1
      %s308 = scalar_lea.vmem %s8, %s307
      %p309 = scmp.lt.s32.totalorder %s19, 1
      %s310 = scalar_select %p309, %s19, 1
      %s311 = smul.addr %s310, 2
      %s312 = smul.addr %s311, 8
      %s313 = scalar_lea.vmem %s0, %s312
      %p314 = scmp.lt.s32.totalorder %s19, 1
      %s315 = scalar_select %p314, %s19, 1
      %s316 = smul.addr %s315, 2
      %s317 = smul.addr %s316, 8
      %s318 = scalar_lea.vmem %s1, %s317
      %p319 = scmp.lt.s32.totalorder %s19, 1
      %s320 = scalar_select %p319, %s19, 1
      %s321 = scalar_lea.vmem %s8, %s320
      %v323 = vld [vmem:[%s318] sm:$0xff]
      %v324 = vld [vmem:[%s318 + $0x8] sm:$0xff]
      %vm325 = vcmp.gt.f32.partialorder %v323, 0.0
      %vm326 = vcmp.gt.f32.partialorder %v324, 0.0
      %v327 = vld [vmem:[%s313] sm:$0xff]
      %v328 = vld [vmem:[%s313 + $0x8] sm:$0xff]
      %v329 = vpack.c.bf16 %v328, %v327
      %v330 = vld [vmem:[%s2] sm:$0xff]
      %v331 = vld [vmem:[%s2 + $0x8] sm:$0xff]
      %v332 = vld [vmem:[%s2 + $0x10] sm:$0xff]
      %v333 = vld [vmem:[%s2 + $0x18] sm:$0xff]
      %v334 = vpack.c.bf16 %v331, %v330
      %v335 = vpack.c.bf16 %v333, %v332
      %vm336 = vcmask 261120
      %v338 = vsel %vm336, %v329, 0
      %340 = vmatprep.subr.bf16.mxu0 0
      %341 = vmatpush1.bf16.msra.mxu0 0
      %342 = vmatprep.subr.bf16.mxu0 0
      %343 = vmatpush1.bf16.msra.mxu0 0
      %344 = vmatprep.subr.bf16.mxu0 0
      %345 = vmatpush1.bf16.msra.mxu0 0
      %346 = vmatprep.subr.bf16.mxu0 0
      %347 = vmatpush1.bf16.msra.mxu0 0
      %348 = vmatprep.subr.bf16.mxu0 0
      %349 = vmatpush1.bf16.msra.mxu0 0
      %350 = vmatprep.subr.bf16.mxu0 0
      %351 = vmatpush1.bf16.msra.mxu0 0
      %352 = vmatprep.subr.bf16.mxu0 0
      %353 = vmatpush1.bf16.msra.mxu0 %v335
      %354 = vmatprep.subr.bf16.mxu0 0
      %355 = vmatpush1.bf16.msra.mxu0 %v334
      %356 = vmatprep.subr.bf16.mxu0 0
      %357 = vmatpush2.bf16.msra.mxu0 0
      %358 = vmatprep.subr.bf16.mxu0 0
      %359 = vmatpush2.bf16.msra.mxu0 0
      %360 = vmatprep.subr.bf16.mxu0 0
      %361 = vmatpush2.bf16.msra.mxu0 0
      %362 = vmatprep.subr.bf16.mxu0 0
      %363 = vmatpush2.bf16.msra.mxu0 0
      %364 = vmatprep.subr.bf16.mxu0 0
      %365 = vmatpush2.bf16.msra.mxu0 0
      %366 = vmatprep.subr.bf16.mxu0 0
      %367 = vmatpush2.bf16.msra.mxu0 0
      %368 = vmatprep.subr.bf16.mxu0 0
      %369 = vmatpush2.bf16.msra.mxu0 0
      %370 = vmatprep.subr.bf16.mxu0 0
      %371 = vmatpush2.bf16.msra.mxu0 0
      %372 = vmatprep.mubr.bf16.mxu0 0
      %373 = vmatmul.mubr.bf16.gmra.mxu0 %v338
      %v374 = vpop.f32.mrf.mxu0
      %v375 = vadd.f32 0.0, %v374
      %v376 = vpop.f32.mrf.mxu0
      %v377 = vpop.f32.mrf.mxu0
      %v378 = vadd.f32 0.0, %v377
      %v379 = vpop.f32.mrf.mxu0
      %380 = vdwg.mxu0
      %383 = vrot.lane.b32.xlu0 %v375, 96
      %v384 = vpop.permute.xlu0 %383
      %385 = vrot.lane.b32.xlu0 %v378, 96
      %v386 = vpop.permute.xlu0 %385
      %389 = vxpose.xlu0.b32.start [1/16] %v384, 128
      %390 = vxpose.xlu0.b32.cont [2/16] %v386, 128
      %391 = vxpose.xlu0.b32.cont [3/16] 0.0, 128
      %392 = vxpose.xlu0.b32.cont [4/16] 0.0, 128
      %393 = vxpose.xlu0.b32.cont [5/16] 0.0, 128
      %394 = vxpose.xlu0.b32.cont [6/16] 0.0, 128
      %395 = vxpose.xlu0.b32.cont [7/16] 0.0, 128
      %396 = vxpose.xlu0.b32.cont [8/16] 0.0, 128
      %397 = vxpose.xlu0.b32.cont [9/16] 0.0, 128
      %398 = vxpose.xlu0.b32.cont [10/16] 0.0, 128
      %399 = vxpose.xlu0.b32.cont [11/16] 0.0, 128
      %400 = vxpose.xlu0.b32.cont [12/16] 0.0, 128
      %401 = vxpose.xlu0.b32.cont [13/16] 0.0, 128
      %402 = vxpose.xlu0.b32.cont [14/16] 0.0, 128
      %403 = vxpose.xlu0.b32.cont [15/16] 0.0, 128
      %404 = vxpose.xlu0.b32.end [16/16] 0.0, 128
      %v405 = vpop.trf.xlu0
      %v406 = vpop.trf.xlu0
      %v407 = vpop.trf.xlu0
      %v408 = vpop.trf.xlu0
      %v409 = vpop.trf.xlu0
      %v410 = vpop.trf.xlu0
      %v411 = vpop.trf.xlu0
      %v412 = vpop.trf.xlu0
      %v413 = vpop.trf.xlu0
      %v414 = vpop.trf.xlu0
      %v415 = vpop.trf.xlu0
      %v416 = vpop.trf.xlu0
      %v417 = vpop.trf.xlu0
      %v418 = vpop.trf.xlu0
      %v419 = vpop.trf.xlu0
      %v420 = vpop.trf.xlu0
      %421 = vset.pattern.permute.xlu0 36
      %422 = vperm.xlu0 %421, %v375
      %v423 = vpop.permute.xlu0 %422
      %425 = vset.pattern.permute.xlu0 36
      %426 = vperm.xlu0 %425, %v378
      %v427 = vpop.permute.xlu0 %426
      %v429 = vlaneseq
      %v430 = vshrl.u32 %v429, 7
      %v431 = vsub.s32 0, %v430
      %v432 = vrot.slane %v405, %v431
      %v433 = vadd.f32 %v423, %v432
      %v434 = vadd.f32 %v427, %v432
      %vm435 = vcmp.gt.f32.partialorder %v433, 0.0
      %vm436 = vcmp.gt.f32.partialorder %v434, 0.0
      %v437 = vmul.f32 %v433, 0.2
      %v438 = vmul.f32 %v434, 0.2
      %v439 = vsel %vm435, %v433, %v437
      %v440 = vsel %vm436, %v434, %v438
      %v441 = vsel %vm325, %v439, -1e+30
      %v442 = vsel %vm326, %v440, -1e+30
      %vm443 = vcmask 130048
      %v444 = vsel %vm443, %v441, -inf
      %445 = vmax.xlane.f32.xlu0 %v444
      %v446 = vpop.xlane.xlu0 %445
      %v447 = vsel %vm443, %v442, -inf
      %448 = vmax.xlane.f32.xlu0 %v447
      %v449 = vpop.xlane.xlu0 %448
      %v450 = vsub.f32 %v441, %v446
      %v451 = vsub.f32 %v442, %v449
      %v452 = vmul.f32 %v450, 1.442695
      %v453 = vpow.pop %v452
      %v454 = vmul.f32 %v451, 1.442695
      %v455 = vpow.pop %v454
      %v456 = vsel %vm443, %v453, 0.0
      %457 = vadd.xlane.f32.xlu0 %v456
      %v458 = vpop.xlane.xlu0 %457
      %v459 = vsel %vm443, %v455, 0.0
      %460 = vadd.xlane.f32.xlu0 %v459
      %v461 = vpop.xlane.xlu0 %460
      %v462 = vrcp.pop %v458
      %v463 = vmul.f32 %v453, %v462
      %v464 = vrcp.pop %v461
      %v465 = vmul.f32 %v455, %v464
      %v466 = vpack.c.bf16 %v465, %v463
      %v467 = vpack.c.bf16 %v378, %v375
      %v469 = vsel %vm443, %v466, 0
      %471 = vmatprep.subr.bf16.mxu0 0
      %472 = vmatpush1.bf16.msra.mxu0 0
      %473 = vmatprep.subr.bf16.mxu0 0
      %474 = vmatpush1.bf16.msra.mxu0 0
      %475 = vmatprep.subr.bf16.mxu0 0
      %476 = vmatpush1.bf16.msra.mxu0 0
      %477 = vmatprep.subr.bf16.mxu0 0
      %478 = vmatpush1.bf16.msra.mxu0 0
      %479 = vmatprep.subr.bf16.mxu0 0
      %480 = vmatpush1.bf16.msra.mxu0 0
      %481 = vmatprep.subr.bf16.mxu0 0
      %482 = vmatpush1.bf16.msra.mxu0 0
      %483 = vmatprep.subr.bf16.mxu0 0
      %484 = vmatpush1.bf16.msra.mxu0 0
      %485 = vmatprep.subr.bf16.mxu0 0
      %486 = vmatpush1.bf16.msra.mxu0 %v467
      %487 = vmatprep.subr.bf16.mxu0 0
      %488 = vmatpush2.bf16.msra.mxu0 0
      %489 = vmatprep.subr.bf16.mxu0 0
      %490 = vmatpush2.bf16.msra.mxu0 0
      %491 = vmatprep.subr.bf16.mxu0 0
      %492 = vmatpush2.bf16.msra.mxu0 0
      %493 = vmatprep.subr.bf16.mxu0 0
      %494 = vmatpush2.bf16.msra.mxu0 0
      %495 = vmatprep.subr.bf16.mxu0 0
      %496 = vmatpush2.bf16.msra.mxu0 0
      %497 = vmatprep.subr.bf16.mxu0 0
      %498 = vmatpush2.bf16.msra.mxu0 0
      %499 = vmatprep.subr.bf16.mxu0 0
      %500 = vmatpush2.bf16.msra.mxu0 0
      %501 = vmatprep.subr.bf16.mxu0 0
      %502 = vmatpush2.bf16.msra.mxu0 0
      %503 = vmatprep.mubr.bf16.mxu0 0
      %504 = vmatmul.mubr.bf16.gmra.mxu0 %v469
      %v505 = vpop.f32.mrf.mxu0
      %v506 = vadd.f32 0.0, %v505
      %v507 = vpop.f32.mrf.mxu0
      %v508 = vpop.f32.mrf.mxu0
      %v509 = vadd.f32 0.0, %v508
      %v510 = vpop.f32.mrf.mxu0
      %511 = vdwg.mxu0
      %vm512 = vcmask 64512
      %513 = vst.msk [vmem:[#allocation2] sm:$0xff] %vm512, %v506
      %514 = vst.msk [vmem:[#allocation2 + $0x8] sm:$0xff] %vm512, %v509
      %515 = vset.pattern.permute.xlu0 37
      %516 = vperm.xlu0 %515, %v375
      %v517 = vpop.permute.xlu0 %516
      %519 = vset.pattern.permute.xlu0 37
      %520 = vperm.xlu0 %519, %v378
      %v521 = vpop.permute.xlu0 %520
      %v523 = vlaneseq
      %v524 = vshrl.u32 %v523, 7
      %v525 = vsub.s32 1, %v524
      %v526 = vrot.slane %v405, %v525
      %v527 = vadd.f32 %v517, %v526
      %v528 = vadd.f32 %v521, %v526
      %vm529 = vcmp.gt.f32.partialorder %v527, 0.0
      %vm530 = vcmp.gt.f32.partialorder %v528, 0.0
      %v531 = vmul.f32 %v527, 0.2
      %v532 = vmul.f32 %v528, 0.2
      %v533 = vsel %vm529, %v527, %v531
      %v534 = vsel %vm530, %v528, %v532
      %v535 = vsel %vm325, %v533, -1e+30
      %v536 = vsel %vm326, %v534, -1e+30
      %v537 = vsel %vm443, %v535, -inf
      %538 = vmax.xlane.f32.xlu0 %v537
      %v539 = vpop.xlane.xlu0 %538
      %v540 = vsel %vm443, %v536, -inf
      %541 = vmax.xlane.f32.xlu0 %v540
      %v542 = vpop.xlane.xlu0 %541
      %v543 = vsub.f32 %v535, %v539
      %v544 = vsub.f32 %v536, %v542
      %v545 = vmul.f32 %v543, 1.442695
      %v546 = vpow.pop %v545
      %v547 = vmul.f32 %v544, 1.442695
      %v548 = vpow.pop %v547
      %v549 = vsel %vm443, %v546, 0.0
      %550 = vadd.xlane.f32.xlu0 %v549
      %v551 = vpop.xlane.xlu0 %550
      %v552 = vsel %vm443, %v548, 0.0
      %553 = vadd.xlane.f32.xlu0 %v552
      %v554 = vpop.xlane.xlu0 %553
      %v555 = vrcp.pop %v551
      %v556 = vmul.f32 %v546, %v555
      %v557 = vrcp.pop %v554
      %v558 = vmul.f32 %v548, %v557
      %v559 = vpack.c.bf16 %v558, %v556
      %561 = vrot.lane.b32.xlu0 %v467, 120
      %v562 = vpop.permute.xlu0 %561
      %v565 = vsel %vm443, %v559, 0
      %567 = vmatprep.subr.bf16.mxu0 0
      %568 = vmatpush1.bf16.msra.mxu0 0
      %569 = vmatprep.subr.bf16.mxu0 0
      %570 = vmatpush1.bf16.msra.mxu0 0
      %571 = vmatprep.subr.bf16.mxu0 0
      %572 = vmatpush1.bf16.msra.mxu0 0
      %573 = vmatprep.subr.bf16.mxu0 0
      %574 = vmatpush1.bf16.msra.mxu0 0
      %575 = vmatprep.subr.bf16.mxu0 0
      %576 = vmatpush1.bf16.msra.mxu0 0
      %577 = vmatprep.subr.bf16.mxu0 0
      %578 = vmatpush1.bf16.msra.mxu0 0
      %579 = vmatprep.subr.bf16.mxu0 0
      %580 = vmatpush1.bf16.msra.mxu0 0
      %581 = vmatprep.subr.bf16.mxu0 0
      %582 = vmatpush1.bf16.msra.mxu0 %v562
      %583 = vmatprep.subr.bf16.mxu0 0
      %584 = vmatpush2.bf16.msra.mxu0 0
      %585 = vmatprep.subr.bf16.mxu0 0
      %586 = vmatpush2.bf16.msra.mxu0 0
      %587 = vmatprep.subr.bf16.mxu0 0
      %588 = vmatpush2.bf16.msra.mxu0 0
      %589 = vmatprep.subr.bf16.mxu0 0
      %590 = vmatpush2.bf16.msra.mxu0 0
      %591 = vmatprep.subr.bf16.mxu0 0
      %592 = vmatpush2.bf16.msra.mxu0 0
      %593 = vmatprep.subr.bf16.mxu0 0
      %594 = vmatpush2.bf16.msra.mxu0 0
      %595 = vmatprep.subr.bf16.mxu0 0
      %596 = vmatpush2.bf16.msra.mxu0 0
      %597 = vmatprep.subr.bf16.mxu0 0
      %598 = vmatpush2.bf16.msra.mxu0 0
      %599 = vmatprep.mubr.bf16.mxu0 0
      %600 = vmatmul.mubr.bf16.gmra.mxu0 %v565
      %v601 = vpop.f32.mrf.mxu0
      %v602 = vadd.f32 0.0, %v601
      %v603 = vpop.f32.mrf.mxu0
      %v604 = vpop.f32.mrf.mxu0
      %v605 = vadd.f32 0.0, %v604
      %v606 = vpop.f32.mrf.mxu0
      %607 = vdwg.mxu0
      %610 = vrot.lane.b32.xlu0 %v602, 8
      %v611 = vpop.permute.xlu0 %610
      %612 = vrot.lane.b32.xlu0 %v605, 8
      %v613 = vpop.permute.xlu0 %612
      %vm616 = vcmask 130112
      %617 = vst.msk [vmem:[#allocation2] sm:$0xff] %vm616, %v611
      %618 = vst.msk [vmem:[#allocation2 + $0x8] sm:$0xff] %vm616, %v613
      %619 = vset.pattern.permute.xlu0 38
      %620 = vperm.xlu0 %619, %v375
      %v621 = vpop.permute.xlu0 %620
      %623 = vset.pattern.permute.xlu0 38
      %624 = vperm.xlu0 %623, %v378
      %v625 = vpop.permute.xlu0 %624
      %v627 = vlaneseq
      %v628 = vshrl.u32 %v627, 7
      %v629 = vsub.s32 2, %v628
      %v630 = vrot.slane %v405, %v629
      %v631 = vadd.f32 %v621, %v630
      %v632 = vadd.f32 %v625, %v630
      %vm633 = vcmp.gt.f32.partialorder %v631, 0.0
      %vm634 = vcmp.gt.f32.partialorder %v632, 0.0
      %v635 = vmul.f32 %v631, 0.2
      %v636 = vmul.f32 %v632, 0.2
      %v637 = vsel %vm633, %v631, %v635
      %v638 = vsel %vm634, %v632, %v636
      %v639 = vsel %vm325, %v637, -1e+30
      %v640 = vsel %vm326, %v638, -1e+30
      %v641 = vsel %vm443, %v639, -inf
      %642 = vmax.xlane.f32.xlu0 %v641
      %v643 = vpop.xlane.xlu0 %642
      %v644 = vsel %vm443, %v640, -inf
      %645 = vmax.xlane.f32.xlu0 %v644
      %v646 = vpop.xlane.xlu0 %645
      %v647 = vsub.f32 %v639, %v643
      %v648 = vsub.f32 %v640, %v646
      %v649 = vmul.f32 %v647, 1.442695
      %v650 = vpow.pop %v649
      %v651 = vmul.f32 %v648, 1.442695
      %v652 = vpow.pop %v651
      %v653 = vsel %vm443, %v650, 0.0
      %654 = vadd.xlane.f32.xlu0 %v653
      %v655 = vpop.xlane.xlu0 %654
      %v656 = vsel %vm443, %v652, 0.0
      %657 = vadd.xlane.f32.xlu0 %v656
      %v658 = vpop.xlane.xlu0 %657
      %v659 = vrcp.pop %v655
      %v660 = vmul.f32 %v650, %v659
      %v661 = vrcp.pop %v658
      %v662 = vmul.f32 %v652, %v661
      %v663 = vpack.c.bf16 %v662, %v660
      %664 = vrot.lane.b32.xlu0 %v467, 112
      %v665 = vpop.permute.xlu0 %664
      %v668 = vsel %vm443, %v663, 0
      %670 = vmatprep.subr.bf16.mxu0 0
      %671 = vmatpush1.bf16.msra.mxu0 0
      %672 = vmatprep.subr.bf16.mxu0 0
      %673 = vmatpush1.bf16.msra.mxu0 0
      %674 = vmatprep.subr.bf16.mxu0 0
      %675 = vmatpush1.bf16.msra.mxu0 0
      %676 = vmatprep.subr.bf16.mxu0 0
      %677 = vmatpush1.bf16.msra.mxu0 0
      %678 = vmatprep.subr.bf16.mxu0 0
      %679 = vmatpush1.bf16.msra.mxu0 0
      %680 = vmatprep.subr.bf16.mxu0 0
      %681 = vmatpush1.bf16.msra.mxu0 0
      %682 = vmatprep.subr.bf16.mxu0 0
      %683 = vmatpush1.bf16.msra.mxu0 0
      %684 = vmatprep.subr.bf16.mxu0 0
      %685 = vmatpush1.bf16.msra.mxu0 %v665
      %686 = vmatprep.subr.bf16.mxu0 0
      %687 = vmatpush2.bf16.msra.mxu0 0
      %688 = vmatprep.subr.bf16.mxu0 0
      %689 = vmatpush2.bf16.msra.mxu0 0
      %690 = vmatprep.subr.bf16.mxu0 0
      %691 = vmatpush2.bf16.msra.mxu0 0
      %692 = vmatprep.subr.bf16.mxu0 0
      %693 = vmatpush2.bf16.msra.mxu0 0
      %694 = vmatprep.subr.bf16.mxu0 0
      %695 = vmatpush2.bf16.msra.mxu0 0
      %696 = vmatprep.subr.bf16.mxu0 0
      %697 = vmatpush2.bf16.msra.mxu0 0
      %698 = vmatprep.subr.bf16.mxu0 0
      %699 = vmatpush2.bf16.msra.mxu0 0
      %700 = vmatprep.subr.bf16.mxu0 0
      %701 = vmatpush2.bf16.msra.mxu0 0
      %702 = vmatprep.mubr.bf16.mxu0 0
      %703 = vmatmul.mubr.bf16.gmra.mxu0 %v668
      %v704 = vpop.f32.mrf.mxu0
      %v705 = vadd.f32 0.0, %v704
      %v706 = vpop.f32.mrf.mxu0
      %v707 = vpop.f32.mrf.mxu0
      %v708 = vadd.f32 0.0, %v707
      %v709 = vpop.f32.mrf.mxu0
      %710 = vdwg.mxu0
      %713 = vrot.lane.b32.xlu0 %v705, 16
      %v714 = vpop.permute.xlu0 %713
      %715 = vrot.lane.b32.xlu0 %v708, 16
      %v716 = vpop.permute.xlu0 %715
      %vm719 = vcmask 195712
      %720 = vst.msk [vmem:[#allocation2] sm:$0xff] %vm719, %v714
      %721 = vst.msk [vmem:[#allocation2 + $0x8] sm:$0xff] %vm719, %v716
      %722 = vset.pattern.permute.xlu0 39
      %723 = vperm.xlu0 %722, %v375
      %v724 = vpop.permute.xlu0 %723
      %726 = vset.pattern.permute.xlu0 39
      %727 = vperm.xlu0 %726, %v378
      %v728 = vpop.permute.xlu0 %727
      %v730 = vlaneseq
      %v731 = vshrl.u32 %v730, 7
      %v732 = vsub.s32 3, %v731
      %v733 = vrot.slane %v405, %v732
      %v734 = vadd.f32 %v724, %v733
      %v735 = vadd.f32 %v728, %v733
      %vm736 = vcmp.gt.f32.partialorder %v734, 0.0
      %vm737 = vcmp.gt.f32.partialorder %v735, 0.0
      %v738 = vmul.f32 %v734, 0.2
      %v739 = vmul.f32 %v735, 0.2
      %v740 = vsel %vm736, %v734, %v738
      %v741 = vsel %vm737, %v735, %v739
      %v742 = vsel %vm325, %v740, -1e+30
      %v743 = vsel %vm326, %v741, -1e+30
      %v744 = vsel %vm443, %v742, -inf
      %745 = vmax.xlane.f32.xlu0 %v744
      %v746 = vpop.xlane.xlu0 %745
      %v747 = vsel %vm443, %v743, -inf
      %748 = vmax.xlane.f32.xlu0 %v747
      %v749 = vpop.xlane.xlu0 %748
      %v750 = vsub.f32 %v742, %v746
      %v751 = vsub.f32 %v743, %v749
      %v752 = vmul.f32 %v750, 1.442695
      %v753 = vpow.pop %v752
      %v754 = vmul.f32 %v751, 1.442695
      %v755 = vpow.pop %v754
      %v756 = vsel %vm443, %v753, 0.0
      %757 = vadd.xlane.f32.xlu0 %v756
      %v758 = vpop.xlane.xlu0 %757
      %v759 = vsel %vm443, %v755, 0.0
      %760 = vadd.xlane.f32.xlu0 %v759
      %v761 = vpop.xlane.xlu0 %760
      %v762 = vrcp.pop %v758
      %v763 = vmul.f32 %v753, %v762
      %v764 = vrcp.pop %v761
      %v765 = vmul.f32 %v755, %v764
      %v766 = vpack.c.bf16 %v765, %v763
      %767 = vrot.lane.b32.xlu0 %v467, 104
      %v768 = vpop.permute.xlu0 %767
      %v771 = vsel %vm443, %v766, 0
      %773 = vmatprep.subr.bf16.mxu0 0
      %774 = vmatpush1.bf16.msra.mxu0 0
      %775 = vmatprep.subr.bf16.mxu0 0
      %776 = vmatpush1.bf16.msra.mxu0 0
      %777 = vmatprep.subr.bf16.mxu0 0
      %778 = vmatpush1.bf16.msra.mxu0 0
      %779 = vmatprep.subr.bf16.mxu0 0
      %780 = vmatpush1.bf16.msra.mxu0 0
      %781 = vmatprep.subr.bf16.mxu0 0
      %782 = vmatpush1.bf16.msra.mxu0 0
      %783 = vmatprep.subr.bf16.mxu0 0
      %784 = vmatpush1.bf16.msra.mxu0 0
      %785 = vmatprep.subr.bf16.mxu0 0
      %786 = vmatpush1.bf16.msra.mxu0 0
      %787 = vmatprep.subr.bf16.mxu0 0
      %788 = vmatpush1.bf16.msra.mxu0 %v768
      %789 = vmatprep.subr.bf16.mxu0 0
      %790 = vmatpush2.bf16.msra.mxu0 0
      %791 = vmatprep.subr.bf16.mxu0 0
      %792 = vmatpush2.bf16.msra.mxu0 0
      %793 = vmatprep.subr.bf16.mxu0 0
      %794 = vmatpush2.bf16.msra.mxu0 0
      %795 = vmatprep.subr.bf16.mxu0 0
      %796 = vmatpush2.bf16.msra.mxu0 0
      %797 = vmatprep.subr.bf16.mxu0 0
      %798 = vmatpush2.bf16.msra.mxu0 0
      %799 = vmatprep.subr.bf16.mxu0 0
      %800 = vmatpush2.bf16.msra.mxu0 0
      %801 = vmatprep.subr.bf16.mxu0 0
      %802 = vmatpush2.bf16.msra.mxu0 0
      %803 = vmatprep.subr.bf16.mxu0 0
      %804 = vmatpush2.bf16.msra.mxu0 0
      %805 = vmatprep.mubr.bf16.mxu0 0
      %806 = vmatmul.mubr.bf16.gmra.mxu0 %v771
      %v807 = vpop.f32.mrf.mxu0
      %v808 = vadd.f32 0.0, %v807
      %v809 = vpop.f32.mrf.mxu0
      %v810 = vpop.f32.mrf.mxu0
      %v811 = vadd.f32 0.0, %v810
      %v812 = vpop.f32.mrf.mxu0
      %813 = vdwg.mxu0
      %816 = vrot.lane.b32.xlu0 %v808, 24
      %v817 = vpop.permute.xlu0 %816
      %818 = vrot.lane.b32.xlu0 %v811, 24
      %v819 = vpop.permute.xlu0 %818
      %vm822 = vcmask 261312
      %823 = vst.msk [vmem:[#allocation2] sm:$0xff] %vm822, %v817
      %824 = vst.msk [vmem:[#allocation2 + $0x8] sm:$0xff] %vm822, %v819
      %v825 = vld [vmem:[#allocation2] sm:$0xff]
      %v826 = vld [vmem:[#allocation2 + $0x8] sm:$0xff]
      %v827 = vld [vmem:[%s3] sm:$0x1]
      %v829 = vlaneseq
      %v830 = vshrl.u32 %v829, 7
      %v831 = vsub.s32 0, %v830
      %v832 = vrot.slane %v827, %v831
      %v834 = vmul.f32 %v825, %v832
      %v835 = vmul.f32 %v826, %v832
      %v836 = vld [vmem:[%s4] sm:$0x1]
      %v838 = vlaneseq
      %v839 = vshrl.u32 %v838, 7
      %v840 = vsub.s32 0, %v839
      %v841 = vrot.slane %v836, %v840
      %v843 = vadd.f32 %v834, %v841
      %v844 = vadd.f32 %v835, %v841
      %vm845 = vcmp.gt.f32.partialorder %v843, 0.0
      %vm846 = vcmp.gt.f32.partialorder %v844, 0.0
      %v847 = vmul.f32 %v843, 1.442695
      %v848 = vpow.pop %v847
      %v849 = vmul.f32 %v844, 1.442695
      %v850 = vpow.pop %v849
      %v851 = vsub.f32 %v848, 1.0
      %v852 = vsub.f32 %v850, 1.0
      %v853 = vsel %vm845, %v843, %v851
      %v854 = vsel %vm846, %v844, %v852
      %v855 = vadd.f32 %v853, %v327
      %v856 = vadd.f32 %v854, %v328
      %v857 = vpack.c.bf16 %v856, %v855
      %s858 = scalar_lea.vmem %s2, 32
      %v859 = vld [vmem:[%s858] sm:$0xff]
      %v860 = vld [vmem:[%s858 + $0x8] sm:$0xff]
      %v861 = vld [vmem:[%s858 + $0x10] sm:$0xff]
      %v862 = vld [vmem:[%s858 + $0x18] sm:$0xff]
      %v863 = vpack.c.bf16 %v860, %v859
      %v864 = vpack.c.bf16 %v862, %v861
      %v866 = vsel %vm336, %v857, 0
      %868 = vmatprep.subr.bf16.mxu0 0
      %869 = vmatpush1.bf16.msra.mxu0 0
      %870 = vmatprep.subr.bf16.mxu0 0
      %871 = vmatpush1.bf16.msra.mxu0 0
      %872 = vmatprep.subr.bf16.mxu0 0
      %873 = vmatpush1.bf16.msra.mxu0 0
      %874 = vmatprep.subr.bf16.mxu0 0
      %875 = vmatpush1.bf16.msra.mxu0 0
      %876 = vmatprep.subr.bf16.mxu0 0
      %877 = vmatpush1.bf16.msra.mxu0 0
      %878 = vmatprep.subr.bf16.mxu0 0
      %879 = vmatpush1.bf16.msra.mxu0 0
      %880 = vmatprep.subr.bf16.mxu0 0
      %881 = vmatpush1.bf16.msra.mxu0 %v864
      %882 = vmatprep.subr.bf16.mxu0 0
      %883 = vmatpush1.bf16.msra.mxu0 %v863
      %884 = vmatprep.subr.bf16.mxu0 0
      %885 = vmatpush2.bf16.msra.mxu0 0
      %886 = vmatprep.subr.bf16.mxu0 0
      %887 = vmatpush2.bf16.msra.mxu0 0
      %888 = vmatprep.subr.bf16.mxu0 0
      %889 = vmatpush2.bf16.msra.mxu0 0
      %890 = vmatprep.subr.bf16.mxu0 0
      %891 = vmatpush2.bf16.msra.mxu0 0
      %892 = vmatprep.subr.bf16.mxu0 0
      %893 = vmatpush2.bf16.msra.mxu0 0
      %894 = vmatprep.subr.bf16.mxu0 0
      %895 = vmatpush2.bf16.msra.mxu0 0
      %896 = vmatprep.subr.bf16.mxu0 0
      %897 = vmatpush2.bf16.msra.mxu0 0
      %898 = vmatprep.subr.bf16.mxu0 0
      %899 = vmatpush2.bf16.msra.mxu0 0
      %900 = vmatprep.mubr.bf16.mxu0 0
      %901 = vmatmul.mubr.bf16.gmra.mxu0 %v866
      %v902 = vpop.f32.mrf.mxu0
      %v903 = vadd.f32 0.0, %v902
      %v904 = vpop.f32.mrf.mxu0
      %v905 = vpop.f32.mrf.mxu0
      %v906 = vadd.f32 0.0, %v905
      %v907 = vpop.f32.mrf.mxu0
      %908 = vdwg.mxu0
      %911 = vrot.lane.b32.xlu0 %v903, 96
      %v912 = vpop.permute.xlu0 %911
      %913 = vrot.lane.b32.xlu0 %v906, 96
      %v914 = vpop.permute.xlu0 %913
      %917 = vxpose.xlu0.b32.start [1/16] %v912, 128
      %918 = vxpose.xlu0.b32.cont [2/16] %v914, 128
      %919 = vxpose.xlu0.b32.cont [3/16] 0.0, 128
      %920 = vxpose.xlu0.b32.cont [4/16] 0.0, 128
      %921 = vxpose.xlu0.b32.cont [5/16] 0.0, 128
      %922 = vxpose.xlu0.b32.cont [6/16] 0.0, 128
      %923 = vxpose.xlu0.b32.cont [7/16] 0.0, 128
      %924 = vxpose.xlu0.b32.cont [8/16] 0.0, 128
      %925 = vxpose.xlu0.b32.cont [9/16] 0.0, 128
      %926 = vxpose.xlu0.b32.cont [10/16] 0.0, 128
      %927 = vxpose.xlu0.b32.cont [11/16] 0.0, 128
      %928 = vxpose.xlu0.b32.cont [12/16] 0.0, 128
      %929 = vxpose.xlu0.b32.cont [13/16] 0.0, 128
      %930 = vxpose.xlu0.b32.cont [14/16] 0.0, 128
      %931 = vxpose.xlu0.b32.cont [15/16] 0.0, 128
      %932 = vxpose.xlu0.b32.end [16/16] 0.0, 128
      %v933 = vpop.trf.xlu0
      %v934 = vpop.trf.xlu0
      %v935 = vpop.trf.xlu0
      %v936 = vpop.trf.xlu0
      %v937 = vpop.trf.xlu0
      %v938 = vpop.trf.xlu0
      %v939 = vpop.trf.xlu0
      %v940 = vpop.trf.xlu0
      %v941 = vpop.trf.xlu0
      %v942 = vpop.trf.xlu0
      %v943 = vpop.trf.xlu0
      %v944 = vpop.trf.xlu0
      %v945 = vpop.trf.xlu0
      %v946 = vpop.trf.xlu0
      %v947 = vpop.trf.xlu0
      %v948 = vpop.trf.xlu0
      %949 = vset.pattern.permute.xlu0 36
      %950 = vperm.xlu0 %949, %v903
      %v951 = vpop.permute.xlu0 %950
      %953 = vset.pattern.permute.xlu0 36
      %954 = vperm.xlu0 %953, %v906
      %v955 = vpop.permute.xlu0 %954
      %v957 = vlaneseq
      %v958 = vshrl.u32 %v957, 7
      %v959 = vsub.s32 0, %v958
      %v960 = vrot.slane %v933, %v959
      %v961 = vadd.f32 %v951, %v960
      %v962 = vadd.f32 %v955, %v960
      %vm963 = vcmp.gt.f32.partialorder %v961, 0.0
      %vm964 = vcmp.gt.f32.partialorder %v962, 0.0
      %v965 = vmul.f32 %v961, 0.2
      %v966 = vmul.f32 %v962, 0.2
      %v967 = vsel %vm963, %v961, %v965
      %v968 = vsel %vm964, %v962, %v966
      %v969 = vsel %vm325, %v967, -1e+30
      %v970 = vsel %vm326, %v968, -1e+30
      %v971 = vsel %vm443, %v969, -inf
      %972 = vmax.xlane.f32.xlu0 %v971
      %v973 = vpop.xlane.xlu0 %972
      %v974 = vsel %vm443, %v970, -inf
      %975 = vmax.xlane.f32.xlu0 %v974
      %v976 = vpop.xlane.xlu0 %975
      %v977 = vsub.f32 %v969, %v973
      %v978 = vsub.f32 %v970, %v976
      %v979 = vmul.f32 %v977, 1.442695
      %v980 = vpow.pop %v979
      %v981 = vmul.f32 %v978, 1.442695
      %v982 = vpow.pop %v981
      %v983 = vsel %vm443, %v980, 0.0
      %984 = vadd.xlane.f32.xlu0 %v983
      %v985 = vpop.xlane.xlu0 %984
      %v986 = vsel %vm443, %v982, 0.0
      %987 = vadd.xlane.f32.xlu0 %v986
      %v988 = vpop.xlane.xlu0 %987
      %v989 = vrcp.pop %v985
      %v990 = vmul.f32 %v980, %v989
      %v991 = vrcp.pop %v988
      %v992 = vmul.f32 %v982, %v991
      %v993 = vpack.c.bf16 %v992, %v990
      %v994 = vpack.c.bf16 %v906, %v903
      %v996 = vsel %vm443, %v993, 0
      %998 = vmatprep.subr.bf16.mxu0 0
      %999 = vmatpush1.bf16.msra.mxu0 0
      %1000 = vmatprep.subr.bf16.mxu0 0
      %1001 = vmatpush1.bf16.msra.mxu0 0
      %1002 = vmatprep.subr.bf16.mxu0 0
      %1003 = vmatpush1.bf16.msra.mxu0 0
      %1004 = vmatprep.subr.bf16.mxu0 0
      %1005 = vmatpush1.bf16.msra.mxu0 0
      %1006 = vmatprep.subr.bf16.mxu0 0
      %1007 = vmatpush1.bf16.msra.mxu0 0
      %1008 = vmatprep.subr.bf16.mxu0 0
      %1009 = vmatpush1.bf16.msra.mxu0 0
      %1010 = vmatprep.subr.bf16.mxu0 0
      %1011 = vmatpush1.bf16.msra.mxu0 0
      %1012 = vmatprep.subr.bf16.mxu0 0
      %1013 = vmatpush1.bf16.msra.mxu0 %v994
      %1014 = vmatprep.subr.bf16.mxu0 0
      %1015 = vmatpush2.bf16.msra.mxu0 0
      %1016 = vmatprep.subr.bf16.mxu0 0
      %1017 = vmatpush2.bf16.msra.mxu0 0
      %1018 = vmatprep.subr.bf16.mxu0 0
      %1019 = vmatpush2.bf16.msra.mxu0 0
      %1020 = vmatprep.subr.bf16.mxu0 0
      %1021 = vmatpush2.bf16.msra.mxu0 0
      %1022 = vmatprep.subr.bf16.mxu0 0
      %1023 = vmatpush2.bf16.msra.mxu0 0
      %1024 = vmatprep.subr.bf16.mxu0 0
      %1025 = vmatpush2.bf16.msra.mxu0 0
      %1026 = vmatprep.subr.bf16.mxu0 0
      %1027 = vmatpush2.bf16.msra.mxu0 0
      %1028 = vmatprep.subr.bf16.mxu0 0
      %1029 = vmatpush2.bf16.msra.mxu0 0
      %1030 = vmatprep.mubr.bf16.mxu0 0
      %1031 = vmatmul.mubr.bf16.gmra.mxu0 %v996
      %v1032 = vpop.f32.mrf.mxu0
      %v1033 = vadd.f32 0.0, %v1032
      %v1034 = vpop.f32.mrf.mxu0
      %v1035 = vpop.f32.mrf.mxu0
      %v1036 = vadd.f32 0.0, %v1035
      %v1037 = vpop.f32.mrf.mxu0
      %1038 = vdwg.mxu0
      %1039 = vst.msk [vmem:[#allocation2] sm:$0xff] %vm512, %v1033
      %1040 = vst.msk [vmem:[#allocation2 + $0x8] sm:$0xff] %vm512, %v1036
      %1041 = vset.pattern.permute.xlu0 37
      %1042 = vperm.xlu0 %1041, %v903
      %v1043 = vpop.permute.xlu0 %1042
      %1045 = vset.pattern.permute.xlu0 37
      %1046 = vperm.xlu0 %1045, %v906
      %v1047 = vpop.permute.xlu0 %1046
      %v1049 = vlaneseq
      %v1050 = vshrl.u32 %v1049, 7
      %v1051 = vsub.s32 1, %v1050
      %v1052 = vrot.slane %v933, %v1051
      %v1053 = vadd.f32 %v1043, %v1052
      %v1054 = vadd.f32 %v1047, %v1052
      %vm1055 = vcmp.gt.f32.partialorder %v1053, 0.0
      %vm1056 = vcmp.gt.f32.partialorder %v1054, 0.0
      %v1057 = vmul.f32 %v1053, 0.2
      %v1058 = vmul.f32 %v1054, 0.2
      %v1059 = vsel %vm1055, %v1053, %v1057
      %v1060 = vsel %vm1056, %v1054, %v1058
      %v1061 = vsel %vm325, %v1059, -1e+30
      %v1062 = vsel %vm326, %v1060, -1e+30
      %v1063 = vsel %vm443, %v1061, -inf
      %1064 = vmax.xlane.f32.xlu0 %v1063
      %v1065 = vpop.xlane.xlu0 %1064
      %v1066 = vsel %vm443, %v1062, -inf
      %1067 = vmax.xlane.f32.xlu0 %v1066
      %v1068 = vpop.xlane.xlu0 %1067
      %v1069 = vsub.f32 %v1061, %v1065
      %v1070 = vsub.f32 %v1062, %v1068
      %v1071 = vmul.f32 %v1069, 1.442695
      %v1072 = vpow.pop %v1071
      %v1073 = vmul.f32 %v1070, 1.442695
      %v1074 = vpow.pop %v1073
      %v1075 = vsel %vm443, %v1072, 0.0
      %1076 = vadd.xlane.f32.xlu0 %v1075
      %v1077 = vpop.xlane.xlu0 %1076
      %v1078 = vsel %vm443, %v1074, 0.0
      %1079 = vadd.xlane.f32.xlu0 %v1078
      %v1080 = vpop.xlane.xlu0 %1079
      %v1081 = vrcp.pop %v1077
      %v1082 = vmul.f32 %v1072, %v1081
      %v1083 = vrcp.pop %v1080
      %v1084 = vmul.f32 %v1074, %v1083
      %v1085 = vpack.c.bf16 %v1084, %v1082
      %1087 = vrot.lane.b32.xlu0 %v994, 120
      %v1088 = vpop.permute.xlu0 %1087
      %v1091 = vsel %vm443, %v1085, 0
      %1093 = vmatprep.subr.bf16.mxu0 0
      %1094 = vmatpush1.bf16.msra.mxu0 0
      %1095 = vmatprep.subr.bf16.mxu0 0
      %1096 = vmatpush1.bf16.msra.mxu0 0
      %1097 = vmatprep.subr.bf16.mxu0 0
      %1098 = vmatpush1.bf16.msra.mxu0 0
      %1099 = vmatprep.subr.bf16.mxu0 0
      %1100 = vmatpush1.bf16.msra.mxu0 0
      %1101 = vmatprep.subr.bf16.mxu0 0
      %1102 = vmatpush1.bf16.msra.mxu0 0
      %1103 = vmatprep.subr.bf16.mxu0 0
      %1104 = vmatpush1.bf16.msra.mxu0 0
      %1105 = vmatprep.subr.bf16.mxu0 0
      %1106 = vmatpush1.bf16.msra.mxu0 0
      %1107 = vmatprep.subr.bf16.mxu0 0
      %1108 = vmatpush1.bf16.msra.mxu0 %v1088
      %1109 = vmatprep.subr.bf16.mxu0 0
      %1110 = vmatpush2.bf16.msra.mxu0 0
      %1111 = vmatprep.subr.bf16.mxu0 0
      %1112 = vmatpush2.bf16.msra.mxu0 0
      %1113 = vmatprep.subr.bf16.mxu0 0
      %1114 = vmatpush2.bf16.msra.mxu0 0
      %1115 = vmatprep.subr.bf16.mxu0 0
      %1116 = vmatpush2.bf16.msra.mxu0 0
      %1117 = vmatprep.subr.bf16.mxu0 0
      %1118 = vmatpush2.bf16.msra.mxu0 0
      %1119 = vmatprep.subr.bf16.mxu0 0
      %1120 = vmatpush2.bf16.msra.mxu0 0
      %1121 = vmatprep.subr.bf16.mxu0 0
      %1122 = vmatpush2.bf16.msra.mxu0 0
      %1123 = vmatprep.subr.bf16.mxu0 0
      %1124 = vmatpush2.bf16.msra.mxu0 0
      %1125 = vmatprep.mubr.bf16.mxu0 0
      %1126 = vmatmul.mubr.bf16.gmra.mxu0 %v1091
      %v1127 = vpop.f32.mrf.mxu0
      %v1128 = vadd.f32 0.0, %v1127
      %v1129 = vpop.f32.mrf.mxu0
      %v1130 = vpop.f32.mrf.mxu0
      %v1131 = vadd.f32 0.0, %v1130
      %v1132 = vpop.f32.mrf.mxu0
      %1133 = vdwg.mxu0
      %1136 = vrot.lane.b32.xlu0 %v1128, 8
      %v1137 = vpop.permute.xlu0 %1136
      %1138 = vrot.lane.b32.xlu0 %v1131, 8
      %v1139 = vpop.permute.xlu0 %1138
      %1142 = vst.msk [vmem:[#allocation2] sm:$0xff] %vm616, %v1137
      %1143 = vst.msk [vmem:[#allocation2 + $0x8] sm:$0xff] %vm616, %v1139
      %1144 = vset.pattern.permute.xlu0 38
      %1145 = vperm.xlu0 %1144, %v903
      %v1146 = vpop.permute.xlu0 %1145
      %1148 = vset.pattern.permute.xlu0 38
      %1149 = vperm.xlu0 %1148, %v906
      %v1150 = vpop.permute.xlu0 %1149
      %v1152 = vlaneseq
      %v1153 = vshrl.u32 %v1152, 7
      %v1154 = vsub.s32 2, %v1153
      %v1155 = vrot.slane %v933, %v1154
      %v1156 = vadd.f32 %v1146, %v1155
      %v1157 = vadd.f32 %v1150, %v1155
      %vm1158 = vcmp.gt.f32.partialorder %v1156, 0.0
      %vm1159 = vcmp.gt.f32.partialorder %v1157, 0.0
      %v1160 = vmul.f32 %v1156, 0.2
      %v1161 = vmul.f32 %v1157, 0.2
      %v1162 = vsel %vm1158, %v1156, %v1160
      %v1163 = vsel %vm1159, %v1157, %v1161
      %v1164 = vsel %vm325, %v1162, -1e+30
      %v1165 = vsel %vm326, %v1163, -1e+30
      %v1166 = vsel %vm443, %v1164, -inf
      %1167 = vmax.xlane.f32.xlu0 %v1166
      %v1168 = vpop.xlane.xlu0 %1167
      %v1169 = vsel %vm443, %v1165, -inf
      %1170 = vmax.xlane.f32.xlu0 %v1169
      %v1171 = vpop.xlane.xlu0 %1170
      %v1172 = vsub.f32 %v1164, %v1168
      %v1173 = vsub.f32 %v1165, %v1171
      %v1174 = vmul.f32 %v1172, 1.442695
      %v1175 = vpow.pop %v1174
      %v1176 = vmul.f32 %v1173, 1.442695
      %v1177 = vpow.pop %v1176
      %v1178 = vsel %vm443, %v1175, 0.0
      %1179 = vadd.xlane.f32.xlu0 %v1178
      %v1180 = vpop.xlane.xlu0 %1179
      %v1181 = vsel %vm443, %v1177, 0.0
      %1182 = vadd.xlane.f32.xlu0 %v1181
      %v1183 = vpop.xlane.xlu0 %1182
      %v1184 = vrcp.pop %v1180
      %v1185 = vmul.f32 %v1175, %v1184
      %v1186 = vrcp.pop %v1183
      %v1187 = vmul.f32 %v1177, %v1186
      %v1188 = vpack.c.bf16 %v1187, %v1185
      %1189 = vrot.lane.b32.xlu0 %v994, 112
      %v1190 = vpop.permute.xlu0 %1189
      %v1193 = vsel %vm443, %v1188, 0
      %1195 = vmatprep.subr.bf16.mxu0 0
      %1196 = vmatpush1.bf16.msra.mxu0 0
      %1197 = vmatprep.subr.bf16.mxu0 0
      %1198 = vmatpush1.bf16.msra.mxu0 0
      %1199 = vmatprep.subr.bf16.mxu0 0
      %1200 = vmatpush1.bf16.msra.mxu0 0
      %1201 = vmatprep.subr.bf16.mxu0 0
      %1202 = vmatpush1.bf16.msra.mxu0 0
      %1203 = vmatprep.subr.bf16.mxu0 0
      %1204 = vmatpush1.bf16.msra.mxu0 0
      %1205 = vmatprep.subr.bf16.mxu0 0
      %1206 = vmatpush1.bf16.msra.mxu0 0
      %1207 = vmatprep.subr.bf16.mxu0 0
      %1208 = vmatpush1.bf16.msra.mxu0 0
      %1209 = vmatprep.subr.bf16.mxu0 0
      %1210 = vmatpush1.bf16.msra.mxu0 %v1190
      %1211 = vmatprep.subr.bf16.mxu0 0
      %1212 = vmatpush2.bf16.msra.mxu0 0
      %1213 = vmatprep.subr.bf16.mxu0 0
      %1214 = vmatpush2.bf16.msra.mxu0 0
      %1215 = vmatprep.subr.bf16.mxu0 0
      %1216 = vmatpush2.bf16.msra.mxu0 0
      %1217 = vmatprep.subr.bf16.mxu0 0
      %1218 = vmatpush2.bf16.msra.mxu0 0
      %1219 = vmatprep.subr.bf16.mxu0 0
      %1220 = vmatpush2.bf16.msra.mxu0 0
      %1221 = vmatprep.subr.bf16.mxu0 0
      %1222 = vmatpush2.bf16.msra.mxu0 0
      %1223 = vmatprep.subr.bf16.mxu0 0
      %1224 = vmatpush2.bf16.msra.mxu0 0
      %1225 = vmatprep.subr.bf16.mxu0 0
      %1226 = vmatpush2.bf16.msra.mxu0 0
      %1227 = vmatprep.mubr.bf16.mxu0 0
      %1228 = vmatmul.mubr.bf16.gmra.mxu0 %v1193
      %v1229 = vpop.f32.mrf.mxu0
      %v1230 = vadd.f32 0.0, %v1229
      %v1231 = vpop.f32.mrf.mxu0
      %v1232 = vpop.f32.mrf.mxu0
      %v1233 = vadd.f32 0.0, %v1232
      %v1234 = vpop.f32.mrf.mxu0
      %1235 = vdwg.mxu0
      %1238 = vrot.lane.b32.xlu0 %v1230, 16
      %v1239 = vpop.permute.xlu0 %1238
      %1240 = vrot.lane.b32.xlu0 %v1233, 16
      %v1241 = vpop.permute.xlu0 %1240
      %1244 = vst.msk [vmem:[#allocation2] sm:$0xff] %vm719, %v1239
      %1245 = vst.msk [vmem:[#allocation2 + $0x8] sm:$0xff] %vm719, %v1241
      %1246 = vset.pattern.permute.xlu0 39
      %1247 = vperm.xlu0 %1246, %v903
      %v1248 = vpop.permute.xlu0 %1247
      %1250 = vset.pattern.permute.xlu0 39
      %1251 = vperm.xlu0 %1250, %v906
      %v1252 = vpop.permute.xlu0 %1251
      %v1254 = vlaneseq
      %v1255 = vshrl.u32 %v1254, 7
      %v1256 = vsub.s32 3, %v1255
      %v1257 = vrot.slane %v933, %v1256
      %v1258 = vadd.f32 %v1248, %v1257
      %v1259 = vadd.f32 %v1252, %v1257
      %vm1260 = vcmp.gt.f32.partialorder %v1258, 0.0
      %vm1261 = vcmp.gt.f32.partialorder %v1259, 0.0
      %v1262 = vmul.f32 %v1258, 0.2
      %v1263 = vmul.f32 %v1259, 0.2
      %v1264 = vsel %vm1260, %v1258, %v1262
      %v1265 = vsel %vm1261, %v1259, %v1263
      %v1266 = vsel %vm325, %v1264, -1e+30
      %v1267 = vsel %vm326, %v1265, -1e+30
      %v1268 = vsel %vm443, %v1266, -inf
      %1269 = vmax.xlane.f32.xlu0 %v1268
      %v1270 = vpop.xlane.xlu0 %1269
      %v1271 = vsel %vm443, %v1267, -inf
      %1272 = vmax.xlane.f32.xlu0 %v1271
      %v1273 = vpop.xlane.xlu0 %1272
      %v1274 = vsub.f32 %v1266, %v1270
      %v1275 = vsub.f32 %v1267, %v1273
      %v1276 = vmul.f32 %v1274, 1.442695
      %v1277 = vpow.pop %v1276
      %v1278 = vmul.f32 %v1275, 1.442695
      %v1279 = vpow.pop %v1278
      %v1280 = vsel %vm443, %v1277, 0.0
      %1281 = vadd.xlane.f32.xlu0 %v1280
      %v1282 = vpop.xlane.xlu0 %1281
      %v1283 = vsel %vm443, %v1279, 0.0
      %1284 = vadd.xlane.f32.xlu0 %v1283
      %v1285 = vpop.xlane.xlu0 %1284
      %v1286 = vrcp.pop %v1282
      %v1287 = vmul.f32 %v1277, %v1286
      %v1288 = vrcp.pop %v1285
      %v1289 = vmul.f32 %v1279, %v1288
      %v1290 = vpack.c.bf16 %v1289, %v1287
      %1291 = vrot.lane.b32.xlu0 %v994, 104
      %v1292 = vpop.permute.xlu0 %1291
      %v1295 = vsel %vm443, %v1290, 0
      %1297 = vmatprep.subr.bf16.mxu0 0
      %1298 = vmatpush1.bf16.msra.mxu0 0
      %1299 = vmatprep.subr.bf16.mxu0 0
      %1300 = vmatpush1.bf16.msra.mxu0 0
      %1301 = vmatprep.subr.bf16.mxu0 0
      %1302 = vmatpush1.bf16.msra.mxu0 0
      %1303 = vmatprep.subr.bf16.mxu0 0
      %1304 = vmatpush1.bf16.msra.mxu0 0
      %1305 = vmatprep.subr.bf16.mxu0 0
      %1306 = vmatpush1.bf16.msra.mxu0 0
      %1307 = vmatprep.subr.bf16.mxu0 0
      %1308 = vmatpush1.bf16.msra.mxu0 0
      %1309 = vmatprep.subr.bf16.mxu0 0
      %1310 = vmatpush1.bf16.msra.mxu0 0
      %1311 = vmatprep.subr.bf16.mxu0 0
      %1312 = vmatpush1.bf16.msra.mxu0 %v1292
      %1313 = vmatprep.subr.bf16.mxu0 0
      %1314 = vmatpush2.bf16.msra.mxu0 0
      %1315 = vmatprep.subr.bf16.mxu0 0
      %1316 = vmatpush2.bf16.msra.mxu0 0
      %1317 = vmatprep.subr.bf16.mxu0 0
      %1318 = vmatpush2.bf16.msra.mxu0 0
      %1319 = vmatprep.subr.bf16.mxu0 0
      %1320 = vmatpush2.bf16.msra.mxu0 0
      %1321 = vmatprep.subr.bf16.mxu0 0
      %1322 = vmatpush2.bf16.msra.mxu0 0
      %1323 = vmatprep.subr.bf16.mxu0 0
      %1324 = vmatpush2.bf16.msra.mxu0 0
      %1325 = vmatprep.subr.bf16.mxu0 0
      %1326 = vmatpush2.bf16.msra.mxu0 0
      %1327 = vmatprep.subr.bf16.mxu0 0
      %1328 = vmatpush2.bf16.msra.mxu0 0
      %1329 = vmatprep.mubr.bf16.mxu0 0
      %1330 = vmatmul.mubr.bf16.gmra.mxu0 %v1295
      %v1331 = vpop.f32.mrf.mxu0
      %v1332 = vadd.f32 0.0, %v1331
      %v1333 = vpop.f32.mrf.mxu0
      %v1334 = vpop.f32.mrf.mxu0
      %v1335 = vadd.f32 0.0, %v1334
      %v1336 = vpop.f32.mrf.mxu0
      %1337 = vdwg.mxu0
      %1340 = vrot.lane.b32.xlu0 %v1332, 24
      %v1341 = vpop.permute.xlu0 %1340
      %1342 = vrot.lane.b32.xlu0 %v1335, 24
      %v1343 = vpop.permute.xlu0 %1342
      %1346 = vst.msk [vmem:[#allocation2] sm:$0xff] %vm822, %v1341
      %1347 = vst.msk [vmem:[#allocation2 + $0x8] sm:$0xff] %vm822, %v1343
      %v1348 = vld [vmem:[#allocation2] sm:$0xff]
      %v1349 = vld [vmem:[#allocation2 + $0x8] sm:$0xff]
      %s1350 = scalar_lea.vmem %s3, 1
      %v1351 = vld [vmem:[%s1350] sm:$0x1]
      %v1353 = vlaneseq
      %v1354 = vshrl.u32 %v1353, 7
      %v1355 = vsub.s32 0, %v1354
      %v1356 = vrot.slane %v1351, %v1355
      %v1358 = vmul.f32 %v1348, %v1356
      %v1359 = vmul.f32 %v1349, %v1356
      %s1360 = scalar_lea.vmem %s4, 1
      %v1361 = vld [vmem:[%s1360] sm:$0x1]
      %v1363 = vlaneseq
      %v1364 = vshrl.u32 %v1363, 7
      %v1365 = vsub.s32 0, %v1364
      %v1366 = vrot.slane %v1361, %v1365
      %v1368 = vadd.f32 %v1358, %v1366
      %v1369 = vadd.f32 %v1359, %v1366
      %vm1370 = vcmp.gt.f32.partialorder %v1368, 0.0
      %vm1371 = vcmp.gt.f32.partialorder %v1369, 0.0
      %v1372 = vmul.f32 %v1368, 1.442695
      %v1373 = vpow.pop %v1372
      %v1374 = vmul.f32 %v1369, 1.442695
      %v1375 = vpow.pop %v1374
      %v1376 = vsub.f32 %v1373, 1.0
      %v1377 = vsub.f32 %v1375, 1.0
      %v1378 = vsel %vm1370, %v1368, %v1376
      %v1379 = vsel %vm1371, %v1369, %v1377
      %v1380 = vadd.f32 %v1378, %v855
      %v1381 = vadd.f32 %v1379, %v856
      %v1382 = vpack.c.bf16 %v1381, %v1380
      %s1383 = scalar_lea.vmem %s2, 64
      %v1384 = vld [vmem:[%s1383] sm:$0xff]
      %v1385 = vld [vmem:[%s1383 + $0x8] sm:$0xff]
      %v1386 = vld [vmem:[%s1383 + $0x10] sm:$0xff]
      %v1387 = vld [vmem:[%s1383 + $0x18] sm:$0xff]
      %v1388 = vpack.c.bf16 %v1385, %v1384
      %v1389 = vpack.c.bf16 %v1387, %v1386
      %v1391 = vsel %vm336, %v1382, 0
      %1393 = vmatprep.subr.bf16.mxu0 0
      %1394 = vmatpush1.bf16.msra.mxu0 0
      %1395 = vmatprep.subr.bf16.mxu0 0
      %1396 = vmatpush1.bf16.msra.mxu0 0
      %1397 = vmatprep.subr.bf16.mxu0 0
      %1398 = vmatpush1.bf16.msra.mxu0 0
      %1399 = vmatprep.subr.bf16.mxu0 0
      %1400 = vmatpush1.bf16.msra.mxu0 0
      %1401 = vmatprep.subr.bf16.mxu0 0
      %1402 = vmatpush1.bf16.msra.mxu0 0
      %1403 = vmatprep.subr.bf16.mxu0 0
      %1404 = vmatpush1.bf16.msra.mxu0 0
      %1405 = vmatprep.subr.bf16.mxu0 0
      %1406 = vmatpush1.bf16.msra.mxu0 %v1389
      %1407 = vmatprep.subr.bf16.mxu0 0
      %1408 = vmatpush1.bf16.msra.mxu0 %v1388
      %1409 = vmatprep.subr.bf16.mxu0 0
      %1410 = vmatpush2.bf16.msra.mxu0 0
      %1411 = vmatprep.subr.bf16.mxu0 0
      %1412 = vmatpush2.bf16.msra.mxu0 0
      %1413 = vmatprep.subr.bf16.mxu0 0
      %1414 = vmatpush2.bf16.msra.mxu0 0
      %1415 = vmatprep.subr.bf16.mxu0 0
      %1416 = vmatpush2.bf16.msra.mxu0 0
      %1417 = vmatprep.subr.bf16.mxu0 0
      %1418 = vmatpush2.bf16.msra.mxu0 0
      %1419 = vmatprep.subr.bf16.mxu0 0
      %1420 = vmatpush2.bf16.msra.mxu0 0
      %1421 = vmatprep.subr.bf16.mxu0 0
      %1422 = vmatpush2.bf16.msra.mxu0 0
      %1423 = vmatprep.subr.bf16.mxu0 0
      %1424 = vmatpush2.bf16.msra.mxu0 0
      %1425 = vmatprep.mubr.bf16.mxu0 0
      %1426 = vmatmul.mubr.bf16.gmra.mxu0 %v1391
      %v1427 = vpop.f32.mrf.mxu0
      %v1428 = vadd.f32 0.0, %v1427
      %v1429 = vpop.f32.mrf.mxu0
      %v1430 = vpop.f32.mrf.mxu0
      %v1431 = vadd.f32 0.0, %v1430
      %v1432 = vpop.f32.mrf.mxu0
      %1433 = vdwg.mxu0
      %1436 = vrot.lane.b32.xlu0 %v1428, 96
      %v1437 = vpop.permute.xlu0 %1436
      %1438 = vrot.lane.b32.xlu0 %v1431, 96
      %v1439 = vpop.permute.xlu0 %1438
      %1442 = vxpose.xlu0.b32.start [1/16] %v1437, 128
      %1443 = vxpose.xlu0.b32.cont [2/16] %v1439, 128
      %1444 = vxpose.xlu0.b32.cont [3/16] 0.0, 128
      %1445 = vxpose.xlu0.b32.cont [4/16] 0.0, 128
      %1446 = vxpose.xlu0.b32.cont [5/16] 0.0, 128
      %1447 = vxpose.xlu0.b32.cont [6/16] 0.0, 128
      %1448 = vxpose.xlu0.b32.cont [7/16] 0.0, 128
      %1449 = vxpose.xlu0.b32.cont [8/16] 0.0, 128
      %1450 = vxpose.xlu0.b32.cont [9/16] 0.0, 128
      %1451 = vxpose.xlu0.b32.cont [10/16] 0.0, 128
      %1452 = vxpose.xlu0.b32.cont [11/16] 0.0, 128
      %1453 = vxpose.xlu0.b32.cont [12/16] 0.0, 128
      %1454 = vxpose.xlu0.b32.cont [13/16] 0.0, 128
      %1455 = vxpose.xlu0.b32.cont [14/16] 0.0, 128
      %1456 = vxpose.xlu0.b32.cont [15/16] 0.0, 128
      %1457 = vxpose.xlu0.b32.end [16/16] 0.0, 128
      %v1458 = vpop.trf.xlu0
      %v1459 = vpop.trf.xlu0
      %v1460 = vpop.trf.xlu0
      %v1461 = vpop.trf.xlu0
      %v1462 = vpop.trf.xlu0
      %v1463 = vpop.trf.xlu0
      %v1464 = vpop.trf.xlu0
      %v1465 = vpop.trf.xlu0
      %v1466 = vpop.trf.xlu0
      %v1467 = vpop.trf.xlu0
      %v1468 = vpop.trf.xlu0
      %v1469 = vpop.trf.xlu0
      %v1470 = vpop.trf.xlu0
      %v1471 = vpop.trf.xlu0
      %v1472 = vpop.trf.xlu0
      %v1473 = vpop.trf.xlu0
      %1474 = vset.pattern.permute.xlu0 36
      %1475 = vperm.xlu0 %1474, %v1428
      %v1476 = vpop.permute.xlu0 %1475
      %1478 = vset.pattern.permute.xlu0 36
      %1479 = vperm.xlu0 %1478, %v1431
      %v1480 = vpop.permute.xlu0 %1479
      %v1482 = vlaneseq
      %v1483 = vshrl.u32 %v1482, 7
      %v1484 = vsub.s32 0, %v1483
      %v1485 = vrot.slane %v1458, %v1484
      %v1486 = vadd.f32 %v1476, %v1485
      %v1487 = vadd.f32 %v1480, %v1485
      %vm1488 = vcmp.gt.f32.partialorder %v1486, 0.0
      %vm1489 = vcmp.gt.f32.partialorder %v1487, 0.0
      %v1490 = vmul.f32 %v1486, 0.2
      %v1491 = vmul.f32 %v1487, 0.2
      %v1492 = vsel %vm1488, %v1486, %v1490
      %v1493 = vsel %vm1489, %v1487, %v1491
      %v1494 = vsel %vm325, %v1492, -1e+30
      %v1495 = vsel %vm326, %v1493, -1e+30
      %v1496 = vsel %vm443, %v1494, -inf
      %1497 = vmax.xlane.f32.xlu0 %v1496
      %v1498 = vpop.xlane.xlu0 %1497
      %v1499 = vsel %vm443, %v1495, -inf
      %1500 = vmax.xlane.f32.xlu0 %v1499
      %v1501 = vpop.xlane.xlu0 %1500
      %v1502 = vsub.f32 %v1494, %v1498
      %v1503 = vsub.f32 %v1495, %v1501
      %v1504 = vmul.f32 %v1502, 1.442695
      %v1505 = vpow.pop %v1504
      %v1506 = vmul.f32 %v1503, 1.442695
      %v1507 = vpow.pop %v1506
      %v1508 = vsel %vm443, %v1505, 0.0
      %1509 = vadd.xlane.f32.xlu0 %v1508
      %v1510 = vpop.xlane.xlu0 %1509
      %v1511 = vsel %vm443, %v1507, 0.0
      %1512 = vadd.xlane.f32.xlu0 %v1511
      %v1513 = vpop.xlane.xlu0 %1512
      %v1514 = vrcp.pop %v1510
      %v1515 = vmul.f32 %v1505, %v1514
      %v1516 = vrcp.pop %v1513
      %v1517 = vmul.f32 %v1507, %v1516
      %v1518 = vpack.c.bf16 %v1517, %v1515
      %v1519 = vpack.c.bf16 %v1431, %v1428
      %v1521 = vsel %vm443, %v1518, 0
      %1523 = vmatprep.subr.bf16.mxu0 0
      %1524 = vmatpush1.bf16.msra.mxu0 0
      %1525 = vmatprep.subr.bf16.mxu0 0
      %1526 = vmatpush1.bf16.msra.mxu0 0
      %1527 = vmatprep.subr.bf16.mxu0 0
      %1528 = vmatpush1.bf16.msra.mxu0 0
      %1529 = vmatprep.subr.bf16.mxu0 0
      %1530 = vmatpush1.bf16.msra.mxu0 0
      %1531 = vmatprep.subr.bf16.mxu0 0
      %1532 = vmatpush1.bf16.msra.mxu0 0
      %1533 = vmatprep.subr.bf16.mxu0 0
      %1534 = vmatpush1.bf16.msra.mxu0 0
      %1535 = vmatprep.subr.bf16.mxu0 0
      %1536 = vmatpush1.bf16.msra.mxu0 0
      %1537 = vmatprep.subr.bf16.mxu0 0
      %1538 = vmatpush1.bf16.msra.mxu0 %v1519
      %1539 = vmatprep.subr.bf16.mxu0 0
      %1540 = vmatpush2.bf16.msra.mxu0 0
      %1541 = vmatprep.subr.bf16.mxu0 0
      %1542 = vmatpush2.bf16.msra.mxu0 0
      %1543 = vmatprep.subr.bf16.mxu0 0
      %1544 = vmatpush2.bf16.msra.mxu0 0
      %1545 = vmatprep.subr.bf16.mxu0 0
      %1546 = vmatpush2.bf16.msra.mxu0 0
      %1547 = vmatprep.subr.bf16.mxu0 0
      %1548 = vmatpush2.bf16.msra.mxu0 0
      %1549 = vmatprep.subr.bf16.mxu0 0
      %1550 = vmatpush2.bf16.msra.mxu0 0
      %1551 = vmatprep.subr.bf16.mxu0 0
      %1552 = vmatpush2.bf16.msra.mxu0 0
      %1553 = vmatprep.subr.bf16.mxu0 0
      %1554 = vmatpush2.bf16.msra.mxu0 0
      %1555 = vmatprep.mubr.bf16.mxu0 0
      %1556 = vmatmul.mubr.bf16.gmra.mxu0 %v1521
      %v1557 = vpop.f32.mrf.mxu0
      %v1558 = vadd.f32 0.0, %v1557
      %v1559 = vpop.f32.mrf.mxu0
      %v1560 = vpop.f32.mrf.mxu0
      %v1561 = vadd.f32 0.0, %v1560
      %v1562 = vpop.f32.mrf.mxu0
      %1563 = vdwg.mxu0
      %1564 = vst.msk [vmem:[#allocation2] sm:$0xff] %vm512, %v1558
      %1565 = vst.msk [vmem:[#allocation2 + $0x8] sm:$0xff] %vm512, %v1561
      %1566 = vset.pattern.permute.xlu0 37
      %1567 = vperm.xlu0 %1566, %v1428
      %v1568 = vpop.permute.xlu0 %1567
      %1570 = vset.pattern.permute.xlu0 37
      %1571 = vperm.xlu0 %1570, %v1431
      %v1572 = vpop.permute.xlu0 %1571
      %v1574 = vlaneseq
      %v1575 = vshrl.u32 %v1574, 7
      %v1576 = vsub.s32 1, %v1575
      %v1577 = vrot.slane %v1458, %v1576
      %v1578 = vadd.f32 %v1568, %v1577
      %v1579 = vadd.f32 %v1572, %v1577
      %vm1580 = vcmp.gt.f32.partialorder %v1578, 0.0
      %vm1581 = vcmp.gt.f32.partialorder %v1579, 0.0
      %v1582 = vmul.f32 %v1578, 0.2
      %v1583 = vmul.f32 %v1579, 0.2
      %v1584 = vsel %vm1580, %v1578, %v1582
      %v1585 = vsel %vm1581, %v1579, %v1583
      %v1586 = vsel %vm325, %v1584, -1e+30
      %v1587 = vsel %vm326, %v1585, -1e+30
      %v1588 = vsel %vm443, %v1586, -inf
      %1589 = vmax.xlane.f32.xlu0 %v1588
      %v1590 = vpop.xlane.xlu0 %1589
      %v1591 = vsel %vm443, %v1587, -inf
      %1592 = vmax.xlane.f32.xlu0 %v1591
      %v1593 = vpop.xlane.xlu0 %1592
      %v1594 = vsub.f32 %v1586, %v1590
      %v1595 = vsub.f32 %v1587, %v1593
      %v1596 = vmul.f32 %v1594, 1.442695
      %v1597 = vpow.pop %v1596
      %v1598 = vmul.f32 %v1595, 1.442695
      %v1599 = vpow.pop %v1598
      %v1600 = vsel %vm443, %v1597, 0.0
      %1601 = vadd.xlane.f32.xlu0 %v1600
      %v1602 = vpop.xlane.xlu0 %1601
      %v1603 = vsel %vm443, %v1599, 0.0
      %1604 = vadd.xlane.f32.xlu0 %v1603
      %v1605 = vpop.xlane.xlu0 %1604
      %v1606 = vrcp.pop %v1602
      %v1607 = vmul.f32 %v1597, %v1606
      %v1608 = vrcp.pop %v1605
      %v1609 = vmul.f32 %v1599, %v1608
      %v1610 = vpack.c.bf16 %v1609, %v1607
      %1612 = vrot.lane.b32.xlu0 %v1519, 120
      %v1613 = vpop.permute.xlu0 %1612
      %v1616 = vsel %vm443, %v1610, 0
      %1618 = vmatprep.subr.bf16.mxu0 0
      %1619 = vmatpush1.bf16.msra.mxu0 0
      %1620 = vmatprep.subr.bf16.mxu0 0
      %1621 = vmatpush1.bf16.msra.mxu0 0
      %1622 = vmatprep.subr.bf16.mxu0 0
      %1623 = vmatpush1.bf16.msra.mxu0 0
      %1624 = vmatprep.subr.bf16.mxu0 0
      %1625 = vmatpush1.bf16.msra.mxu0 0
      %1626 = vmatprep.subr.bf16.mxu0 0
      %1627 = vmatpush1.bf16.msra.mxu0 0
      %1628 = vmatprep.subr.bf16.mxu0 0
      %1629 = vmatpush1.bf16.msra.mxu0 0
      %1630 = vmatprep.subr.bf16.mxu0 0
      %1631 = vmatpush1.bf16.msra.mxu0 0
      %1632 = vmatprep.subr.bf16.mxu0 0
      %1633 = vmatpush1.bf16.msra.mxu0 %v1613
      %1634 = vmatprep.subr.bf16.mxu0 0
      %1635 = vmatpush2.bf16.msra.mxu0 0
      %1636 = vmatprep.subr.bf16.mxu0 0
      %1637 = vmatpush2.bf16.msra.mxu0 0
      %1638 = vmatprep.subr.bf16.mxu0 0
      %1639 = vmatpush2.bf16.msra.mxu0 0
      %1640 = vmatprep.subr.bf16.mxu0 0
      %1641 = vmatpush2.bf16.msra.mxu0 0
      %1642 = vmatprep.subr.bf16.mxu0 0
      %1643 = vmatpush2.bf16.msra.mxu0 0
      %1644 = vmatprep.subr.bf16.mxu0 0
      %1645 = vmatpush2.bf16.msra.mxu0 0
      %1646 = vmatprep.subr.bf16.mxu0 0
      %1647 = vmatpush2.bf16.msra.mxu0 0
      %1648 = vmatprep.subr.bf16.mxu0 0
      %1649 = vmatpush2.bf16.msra.mxu0 0
      %1650 = vmatprep.mubr.bf16.mxu0 0
      %1651 = vmatmul.mubr.bf16.gmra.mxu0 %v1616
      %v1652 = vpop.f32.mrf.mxu0
      %v1653 = vadd.f32 0.0, %v1652
      %v1654 = vpop.f32.mrf.mxu0
      %v1655 = vpop.f32.mrf.mxu0
      %v1656 = vadd.f32 0.0, %v1655
      %v1657 = vpop.f32.mrf.mxu0
      %1658 = vdwg.mxu0
      %1661 = vrot.lane.b32.xlu0 %v1653, 8
      %v1662 = vpop.permute.xlu0 %1661
      %1663 = vrot.lane.b32.xlu0 %v1656, 8
      %v1664 = vpop.permute.xlu0 %1663
      %1667 = vst.msk [vmem:[#allocation2] sm:$0xff] %vm616, %v1662
      %1668 = vst.msk [vmem:[#allocation2 + $0x8] sm:$0xff] %vm616, %v1664
      %1669 = vset.pattern.permute.xlu0 38
      %1670 = vperm.xlu0 %1669, %v1428
      %v1671 = vpop.permute.xlu0 %1670
      %1673 = vset.pattern.permute.xlu0 38
      %1674 = vperm.xlu0 %1673, %v1431
      %v1675 = vpop.permute.xlu0 %1674
      %v1677 = vlaneseq
      %v1678 = vshrl.u32 %v1677, 7
      %v1679 = vsub.s32 2, %v1678
      %v1680 = vrot.slane %v1458, %v1679
      %v1681 = vadd.f32 %v1671, %v1680
      %v1682 = vadd.f32 %v1675, %v1680
      %vm1683 = vcmp.gt.f32.partialorder %v1681, 0.0
      %vm1684 = vcmp.gt.f32.partialorder %v1682, 0.0
      %v1685 = vmul.f32 %v1681, 0.2
      %v1686 = vmul.f32 %v1682, 0.2
      %v1687 = vsel %vm1683, %v1681, %v1685
      %v1688 = vsel %vm1684, %v1682, %v1686
      %v1689 = vsel %vm325, %v1687, -1e+30
      %v1690 = vsel %vm326, %v1688, -1e+30
      %v1691 = vsel %vm443, %v1689, -inf
      %1692 = vmax.xlane.f32.xlu0 %v1691
      %v1693 = vpop.xlane.xlu0 %1692
      %v1694 = vsel %vm443, %v1690, -inf
      %1695 = vmax.xlane.f32.xlu0 %v1694
      %v1696 = vpop.xlane.xlu0 %1695
      %v1697 = vsub.f32 %v1689, %v1693
      %v1698 = vsub.f32 %v1690, %v1696
      %v1699 = vmul.f32 %v1697, 1.442695
      %v1700 = vpow.pop %v1699
      %v1701 = vmul.f32 %v1698, 1.442695
      %v1702 = vpow.pop %v1701
      %v1703 = vsel %vm443, %v1700, 0.0
      %1704 = vadd.xlane.f32.xlu0 %v1703
      %v1705 = vpop.xlane.xlu0 %1704
      %v1706 = vsel %vm443, %v1702, 0.0
      %1707 = vadd.xlane.f32.xlu0 %v1706
      %v1708 = vpop.xlane.xlu0 %1707
      %v1709 = vrcp.pop %v1705
      %v1710 = vmul.f32 %v1700, %v1709
      %v1711 = vrcp.pop %v1708
      %v1712 = vmul.f32 %v1702, %v1711
      %v1713 = vpack.c.bf16 %v1712, %v1710
      %1714 = vrot.lane.b32.xlu0 %v1519, 112
      %v1715 = vpop.permute.xlu0 %1714
      %v1718 = vsel %vm443, %v1713, 0
      %1720 = vmatprep.subr.bf16.mxu0 0
      %1721 = vmatpush1.bf16.msra.mxu0 0
      %1722 = vmatprep.subr.bf16.mxu0 0
      %1723 = vmatpush1.bf16.msra.mxu0 0
      %1724 = vmatprep.subr.bf16.mxu0 0
      %1725 = vmatpush1.bf16.msra.mxu0 0
      %1726 = vmatprep.subr.bf16.mxu0 0
      %1727 = vmatpush1.bf16.msra.mxu0 0
      %1728 = vmatprep.subr.bf16.mxu0 0
      %1729 = vmatpush1.bf16.msra.mxu0 0
      %1730 = vmatprep.subr.bf16.mxu0 0
      %1731 = vmatpush1.bf16.msra.mxu0 0
      %1732 = vmatprep.subr.bf16.mxu0 0
      %1733 = vmatpush1.bf16.msra.mxu0 0
      %1734 = vmatprep.subr.bf16.mxu0 0
      %1735 = vmatpush1.bf16.msra.mxu0 %v1715
      %1736 = vmatprep.subr.bf16.mxu0 0
      %1737 = vmatpush2.bf16.msra.mxu0 0
      %1738 = vmatprep.subr.bf16.mxu0 0
      %1739 = vmatpush2.bf16.msra.mxu0 0
      %1740 = vmatprep.subr.bf16.mxu0 0
      %1741 = vmatpush2.bf16.msra.mxu0 0
      %1742 = vmatprep.subr.bf16.mxu0 0
      %1743 = vmatpush2.bf16.msra.mxu0 0
      %1744 = vmatprep.subr.bf16.mxu0 0
      %1745 = vmatpush2.bf16.msra.mxu0 0
      %1746 = vmatprep.subr.bf16.mxu0 0
      %1747 = vmatpush2.bf16.msra.mxu0 0
      %1748 = vmatprep.subr.bf16.mxu0 0
      %1749 = vmatpush2.bf16.msra.mxu0 0
      %1750 = vmatprep.subr.bf16.mxu0 0
      %1751 = vmatpush2.bf16.msra.mxu0 0
      %1752 = vmatprep.mubr.bf16.mxu0 0
      %1753 = vmatmul.mubr.bf16.gmra.mxu0 %v1718
      %v1754 = vpop.f32.mrf.mxu0
      %v1755 = vadd.f32 0.0, %v1754
      %v1756 = vpop.f32.mrf.mxu0
      %v1757 = vpop.f32.mrf.mxu0
      %v1758 = vadd.f32 0.0, %v1757
      %v1759 = vpop.f32.mrf.mxu0
      %1760 = vdwg.mxu0
      %1763 = vrot.lane.b32.xlu0 %v1755, 16
      %v1764 = vpop.permute.xlu0 %1763
      %1765 = vrot.lane.b32.xlu0 %v1758, 16
      %v1766 = vpop.permute.xlu0 %1765
      %1769 = vst.msk [vmem:[#allocation2] sm:$0xff] %vm719, %v1764
      %1770 = vst.msk [vmem:[#allocation2 + $0x8] sm:$0xff] %vm719, %v1766
      %1771 = vset.pattern.permute.xlu0 39
      %1772 = vperm.xlu0 %1771, %v1428
      %v1773 = vpop.permute.xlu0 %1772
      %1775 = vset.pattern.permute.xlu0 39
      %1776 = vperm.xlu0 %1775, %v1431
      %v1777 = vpop.permute.xlu0 %1776
      %v1779 = vlaneseq
      %v1780 = vshrl.u32 %v1779, 7
      %v1781 = vsub.s32 3, %v1780
      %v1782 = vrot.slane %v1458, %v1781
      %v1783 = vadd.f32 %v1773, %v1782
      %v1784 = vadd.f32 %v1777, %v1782
      %vm1785 = vcmp.gt.f32.partialorder %v1783, 0.0
      %vm1786 = vcmp.gt.f32.partialorder %v1784, 0.0
      %v1787 = vmul.f32 %v1783, 0.2
      %v1788 = vmul.f32 %v1784, 0.2
      %v1789 = vsel %vm1785, %v1783, %v1787
      %v1790 = vsel %vm1786, %v1784, %v1788
      %v1791 = vsel %vm325, %v1789, -1e+30
      %v1792 = vsel %vm326, %v1790, -1e+30
      %v1793 = vsel %vm443, %v1791, -inf
      %1794 = vmax.xlane.f32.xlu0 %v1793
      %v1795 = vpop.xlane.xlu0 %1794
      %v1796 = vsel %vm443, %v1792, -inf
      %1797 = vmax.xlane.f32.xlu0 %v1796
      %v1798 = vpop.xlane.xlu0 %1797
      %v1799 = vsub.f32 %v1791, %v1795
      %v1800 = vsub.f32 %v1792, %v1798
      %v1801 = vmul.f32 %v1799, 1.442695
      %v1802 = vpow.pop %v1801
      %v1803 = vmul.f32 %v1800, 1.442695
      %v1804 = vpow.pop %v1803
      %v1805 = vsel %vm443, %v1802, 0.0
      %1806 = vadd.xlane.f32.xlu0 %v1805
      %v1807 = vpop.xlane.xlu0 %1806
      %v1808 = vsel %vm443, %v1804, 0.0
      %1809 = vadd.xlane.f32.xlu0 %v1808
      %v1810 = vpop.xlane.xlu0 %1809
      %v1811 = vrcp.pop %v1807
      %v1812 = vmul.f32 %v1802, %v1811
      %v1813 = vrcp.pop %v1810
      %v1814 = vmul.f32 %v1804, %v1813
      %v1815 = vpack.c.bf16 %v1814, %v1812
      %1816 = vrot.lane.b32.xlu0 %v1519, 104
      %v1817 = vpop.permute.xlu0 %1816
      %v1820 = vsel %vm443, %v1815, 0
      %1822 = vmatprep.subr.bf16.mxu0 0
      %1823 = vmatpush1.bf16.msra.mxu0 0
      %1824 = vmatprep.subr.bf16.mxu0 0
      %1825 = vmatpush1.bf16.msra.mxu0 0
      %1826 = vmatprep.subr.bf16.mxu0 0
      %1827 = vmatpush1.bf16.msra.mxu0 0
      %1828 = vmatprep.subr.bf16.mxu0 0
      %1829 = vmatpush1.bf16.msra.mxu0 0
      %1830 = vmatprep.subr.bf16.mxu0 0
      %1831 = vmatpush1.bf16.msra.mxu0 0
      %1832 = vmatprep.subr.bf16.mxu0 0
      %1833 = vmatpush1.bf16.msra.mxu0 0
      %1834 = vmatprep.subr.bf16.mxu0 0
      %1835 = vmatpush1.bf16.msra.mxu0 0
      %1836 = vmatprep.subr.bf16.mxu0 0
      %1837 = vmatpush1.bf16.msra.mxu0 %v1817
      %1838 = vmatprep.subr.bf16.mxu0 0
      %1839 = vmatpush2.bf16.msra.mxu0 0
      %1840 = vmatprep.subr.bf16.mxu0 0
      %1841 = vmatpush2.bf16.msra.mxu0 0
      %1842 = vmatprep.subr.bf16.mxu0 0
      %1843 = vmatpush2.bf16.msra.mxu0 0
      %1844 = vmatprep.subr.bf16.mxu0 0
      %1845 = vmatpush2.bf16.msra.mxu0 0
      %1846 = vmatprep.subr.bf16.mxu0 0
      %1847 = vmatpush2.bf16.msra.mxu0 0
      %1848 = vmatprep.subr.bf16.mxu0 0
      %1849 = vmatpush2.bf16.msra.mxu0 0
      %1850 = vmatprep.subr.bf16.mxu0 0
      %1851 = vmatpush2.bf16.msra.mxu0 0
      %1852 = vmatprep.subr.bf16.mxu0 0
      %1853 = vmatpush2.bf16.msra.mxu0 0
      %1854 = vmatprep.mubr.bf16.mxu0 0
      %1855 = vmatmul.mubr.bf16.gmra.mxu0 %v1820
      %v1856 = vpop.f32.mrf.mxu0
      %v1857 = vadd.f32 0.0, %v1856
      %v1858 = vpop.f32.mrf.mxu0
      %v1859 = vpop.f32.mrf.mxu0
      %v1860 = vadd.f32 0.0, %v1859
      %v1861 = vpop.f32.mrf.mxu0
      %1862 = vdwg.mxu0
      %1865 = vrot.lane.b32.xlu0 %v1857, 24
      %v1866 = vpop.permute.xlu0 %1865
      %1867 = vrot.lane.b32.xlu0 %v1860, 24
      %v1868 = vpop.permute.xlu0 %1867
      %1871 = vst.msk [vmem:[#allocation2] sm:$0xff] %vm822, %v1866
      %1872 = vst.msk [vmem:[#allocation2 + $0x8] sm:$0xff] %vm822, %v1868
      %v1873 = vld [vmem:[#allocation2] sm:$0xff]
      %v1874 = vld [vmem:[#allocation2 + $0x8] sm:$0xff]
      %s1875 = scalar_lea.vmem %s3, 2
      %v1876 = vld [vmem:[%s1875] sm:$0x1]
      %v1878 = vlaneseq
      %v1879 = vshrl.u32 %v1878, 7
      %v1880 = vsub.s32 0, %v1879
      %v1881 = vrot.slane %v1876, %v1880
      %v1883 = vmul.f32 %v1873, %v1881
      %v1884 = vmul.f32 %v1874, %v1881
      %s1885 = scalar_lea.vmem %s4, 2
      %v1886 = vld [vmem:[%s1885] sm:$0x1]
      %v1888 = vlaneseq
      %v1889 = vshrl.u32 %v1888, 7
      %v1890 = vsub.s32 0, %v1889
      %v1891 = vrot.slane %v1886, %v1890
      %v1893 = vadd.f32 %v1883, %v1891
      %v1894 = vadd.f32 %v1884, %v1891
      %vm1895 = vcmp.gt.f32.partialorder %v1893, 0.0
      %vm1896 = vcmp.gt.f32.partialorder %v1894, 0.0
      %v1897 = vmul.f32 %v1893, 1.442695
      %v1898 = vpow.pop %v1897
      %v1899 = vmul.f32 %v1894, 1.442695
      %v1900 = vpow.pop %v1899
      %v1901 = vsub.f32 %v1898, 1.0
      %v1902 = vsub.f32 %v1900, 1.0
      %v1903 = vsel %vm1895, %v1893, %v1901
      %v1904 = vsel %vm1896, %v1894, %v1902
      %v1905 = vadd.f32 %v1903, %v1380
      %v1906 = vadd.f32 %v1904, %v1381
      %v1907 = vpack.c.bf16 %v1906, %v1905
      %v1908 = vld [vmem:[%s5] sm:$0xff]
      %v1909 = vld [vmem:[%s5 + $0x8] sm:$0xff]
      %v1910 = vld [vmem:[%s5 + $0x10] sm:$0xff]
      %v1911 = vld [vmem:[%s5 + $0x18] sm:$0xff]
      %v1912 = vpack.c.bf16 %v1909, %v1908
      %v1913 = vpack.c.bf16 %v1911, %v1910
      %v1915 = vsel %vm336, %v1907, 0
      %1917 = vmatprep.subr.bf16.mxu0 0
      %1918 = vmatpush1.bf16.msra.mxu0 0
      %1919 = vmatprep.subr.bf16.mxu0 0
      %1920 = vmatpush1.bf16.msra.mxu0 0
      %1921 = vmatprep.subr.bf16.mxu0 0
      %1922 = vmatpush1.bf16.msra.mxu0 0
      %1923 = vmatprep.subr.bf16.mxu0 0
      %1924 = vmatpush1.bf16.msra.mxu0 0
      %1925 = vmatprep.subr.bf16.mxu0 0
      %1926 = vmatpush1.bf16.msra.mxu0 0
      %1927 = vmatprep.subr.bf16.mxu0 0
      %1928 = vmatpush1.bf16.msra.mxu0 0
      %1929 = vmatprep.subr.bf16.mxu0 0
      %1930 = vmatpush1.bf16.msra.mxu0 %v1913
      %1931 = vmatprep.subr.bf16.mxu0 0
      %1932 = vmatpush1.bf16.msra.mxu0 %v1912
      %1933 = vmatprep.subr.bf16.mxu0 0
      %1934 = vmatpush2.bf16.msra.mxu0 0
      %1935 = vmatprep.subr.bf16.mxu0 0
      %1936 = vmatpush2.bf16.msra.mxu0 0
      %1937 = vmatprep.subr.bf16.mxu0 0
      %1938 = vmatpush2.bf16.msra.mxu0 0
      %1939 = vmatprep.subr.bf16.mxu0 0
      %1940 = vmatpush2.bf16.msra.mxu0 0
      %1941 = vmatprep.subr.bf16.mxu0 0
      %1942 = vmatpush2.bf16.msra.mxu0 0
      %1943 = vmatprep.subr.bf16.mxu0 0
      %1944 = vmatpush2.bf16.msra.mxu0 0
      %1945 = vmatprep.subr.bf16.mxu0 0
      %1946 = vmatpush2.bf16.msra.mxu0 0
      %1947 = vmatprep.subr.bf16.mxu0 0
      %1948 = vmatpush2.bf16.msra.mxu0 0
      %1949 = vmatprep.mubr.bf16.mxu0 0
      %1950 = vmatmul.mubr.bf16.gmra.mxu0 %v1915
      %v1951 = vpop.f32.mrf.mxu0
      %v1952 = vadd.f32 0.0, %v1951
      %v1953 = vpop.f32.mrf.mxu0
      %v1954 = vpop.f32.mrf.mxu0
      %v1955 = vadd.f32 0.0, %v1954
      %v1956 = vpop.f32.mrf.mxu0
      %1957 = vdwg.mxu0
      %1960 = vrot.lane.b32.xlu0 %v1952, 96
      %v1961 = vpop.permute.xlu0 %1960
      %1962 = vrot.lane.b32.xlu0 %v1955, 96
      %v1963 = vpop.permute.xlu0 %1962
      %1966 = vxpose.xlu0.b32.start [1/16] %v1961, 128
      %1967 = vxpose.xlu0.b32.cont [2/16] %v1963, 128
      %1968 = vxpose.xlu0.b32.cont [3/16] 0.0, 128
      %1969 = vxpose.xlu0.b32.cont [4/16] 0.0, 128
      %1970 = vxpose.xlu0.b32.cont [5/16] 0.0, 128
      %1971 = vxpose.xlu0.b32.cont [6/16] 0.0, 128
      %1972 = vxpose.xlu0.b32.cont [7/16] 0.0, 128
      %1973 = vxpose.xlu0.b32.cont [8/16] 0.0, 128
      %1974 = vxpose.xlu0.b32.cont [9/16] 0.0, 128
      %1975 = vxpose.xlu0.b32.cont [10/16] 0.0, 128
      %1976 = vxpose.xlu0.b32.cont [11/16] 0.0, 128
      %1977 = vxpose.xlu0.b32.cont [12/16] 0.0, 128
      %1978 = vxpose.xlu0.b32.cont [13/16] 0.0, 128
      %1979 = vxpose.xlu0.b32.cont [14/16] 0.0, 128
      %1980 = vxpose.xlu0.b32.cont [15/16] 0.0, 128
      %1981 = vxpose.xlu0.b32.end [16/16] 0.0, 128
      %v1982 = vpop.trf.xlu0
      %v1983 = vpop.trf.xlu0
      %v1984 = vpop.trf.xlu0
      %v1985 = vpop.trf.xlu0
      %v1986 = vpop.trf.xlu0
      %v1987 = vpop.trf.xlu0
      %v1988 = vpop.trf.xlu0
      %v1989 = vpop.trf.xlu0
      %v1990 = vpop.trf.xlu0
      %v1991 = vpop.trf.xlu0
      %v1992 = vpop.trf.xlu0
      %v1993 = vpop.trf.xlu0
      %v1994 = vpop.trf.xlu0
      %v1995 = vpop.trf.xlu0
      %v1996 = vpop.trf.xlu0
      %v1997 = vpop.trf.xlu0
      %1998 = vset.pattern.permute.xlu0 33
      %1999 = vperm.xlu0 %1998, %v1952
      %v2000 = vpop.permute.xlu0 %1999
      %2002 = vset.pattern.permute.xlu0 33
      %2003 = vperm.xlu0 %2002, %v1955
      %v2004 = vpop.permute.xlu0 %2003
      %v2006 = vlaneseq
      %v2007 = vshrl.u32 %v2006, 7
      %v2008 = vsub.s32 0, %v2007
      %v2009 = vrot.slane %v1982, %v2008
      %v2010 = vadd.f32 %v2000, %v2009
      %v2011 = vadd.f32 %v2004, %v2009
      %vm2012 = vcmp.gt.f32.partialorder %v2010, 0.0
      %vm2013 = vcmp.gt.f32.partialorder %v2011, 0.0
      %v2014 = vmul.f32 %v2010, 0.2
      %v2015 = vmul.f32 %v2011, 0.2
      %v2016 = vsel %vm2012, %v2010, %v2014
      %v2017 = vsel %vm2013, %v2011, %v2015
      %v2018 = vsel %vm325, %v2016, -1e+30
      %v2019 = vsel %vm326, %v2017, -1e+30
      %v2020 = vsel %vm443, %v2018, -inf
      %2021 = vmax.xlane.f32.xlu0 %v2020
      %v2022 = vpop.xlane.xlu0 %2021
      %v2023 = vsel %vm443, %v2019, -inf
      %2024 = vmax.xlane.f32.xlu0 %v2023
      %v2025 = vpop.xlane.xlu0 %2024
      %v2026 = vsub.f32 %v2018, %v2022
      %v2027 = vsub.f32 %v2019, %v2025
      %v2028 = vmul.f32 %v2026, 1.442695
      %v2029 = vpow.pop %v2028
      %v2030 = vmul.f32 %v2027, 1.442695
      %v2031 = vpow.pop %v2030
      %v2032 = vsel %vm443, %v2029, 0.0
      %2033 = vadd.xlane.f32.xlu0 %v2032
      %v2034 = vpop.xlane.xlu0 %2033
      %v2035 = vsel %vm443, %v2031, 0.0
      %2036 = vadd.xlane.f32.xlu0 %v2035
      %v2037 = vpop.xlane.xlu0 %2036
      %v2038 = vrcp.pop %v2034
      %v2039 = vmul.f32 %v2029, %v2038
      %v2040 = vrcp.pop %v2037
      %v2041 = vmul.f32 %v2031, %v2040
      %v2042 = vpack.c.bf16 %v2041, %v2039
      %v2043 = vpack.c.bf16 %v1955, %v1952
      %v2045 = vsel %vm443, %v2042, 0
      %2047 = vmatprep.subr.bf16.mxu0 0
      %2048 = vmatpush1.bf16.msra.mxu0 0
      %2049 = vmatprep.subr.bf16.mxu0 0
      %2050 = vmatpush1.bf16.msra.mxu0 0
      %2051 = vmatprep.subr.bf16.mxu0 0
      %2052 = vmatpush1.bf16.msra.mxu0 0
      %2053 = vmatprep.subr.bf16.mxu0 0
      %2054 = vmatpush1.bf16.msra.mxu0 0
      %2055 = vmatprep.subr.bf16.mxu0 0
      %2056 = vmatpush1.bf16.msra.mxu0 0
      %2057 = vmatprep.subr.bf16.mxu0 0
      %2058 = vmatpush1.bf16.msra.mxu0 0
      %2059 = vmatprep.subr.bf16.mxu0 0
      %2060 = vmatpush1.bf16.msra.mxu0 0
      %2061 = vmatprep.subr.bf16.mxu0 0
      %2062 = vmatpush1.bf16.msra.mxu0 %v2043
      %2063 = vmatprep.subr.bf16.mxu0 0
      %2064 = vmatpush2.bf16.msra.mxu0 0
      %2065 = vmatprep.subr.bf16.mxu0 0
      %2066 = vmatpush2.bf16.msra.mxu0 0
      %2067 = vmatprep.subr.bf16.mxu0 0
      %2068 = vmatpush2.bf16.msra.mxu0 0
      %2069 = vmatprep.subr.bf16.mxu0 0
      %2070 = vmatpush2.bf16.msra.mxu0 0
      %2071 = vmatprep.subr.bf16.mxu0 0
      %2072 = vmatpush2.bf16.msra.mxu0 0
      %2073 = vmatprep.subr.bf16.mxu0 0
      %2074 = vmatpush2.bf16.msra.mxu0 0
      %2075 = vmatprep.subr.bf16.mxu0 0
      %2076 = vmatpush2.bf16.msra.mxu0 0
      %2077 = vmatprep.subr.bf16.mxu0 0
      %2078 = vmatpush2.bf16.msra.mxu0 0
      %2079 = vmatprep.mubr.bf16.mxu0 0
      %2080 = vmatmul.mubr.bf16.gmra.mxu0 %v2045
      %v2081 = vpop.f32.mrf.mxu0
      %v2082 = vadd.f32 0.0, %v2081
      %v2083 = vpop.f32.mrf.mxu0
      %v2084 = vpop.f32.mrf.mxu0
      %v2085 = vadd.f32 0.0, %v2084
      %v2086 = vpop.f32.mrf.mxu0
      %2087 = vdwg.mxu0
      %v2088 = vld [vmem:[%s6] sm:$0x1]
      %v2090 = vlaneseq
      %v2091 = vshrl.u32 %v2090, 7
      %v2092 = vsub.s32 0, %v2091
      %v2093 = vrot.slane %v2088, %v2092
      %v2095 = vmul.f32 %v2082, %v2093
      %v2096 = vmul.f32 %v2085, %v2093
      %v2097 = vld [vmem:[%s7] sm:$0x1]
      %v2099 = vlaneseq
      %v2100 = vshrl.u32 %v2099, 7
      %v2101 = vsub.s32 0, %v2100
      %v2102 = vrot.slane %v2097, %v2101
      %v2104 = vadd.f32 %v2095, %v2102
      %v2105 = vadd.f32 %v2096, %v2102
      %vm2106 = vcmp.gt.f32.partialorder %v2104, 0.0
      %vm2107 = vcmp.gt.f32.partialorder %v2105, 0.0
      %v2108 = vmul.f32 %v2104, 1.442695
      %v2109 = vpow.pop %v2108
      %v2110 = vmul.f32 %v2105, 1.442695
      %v2111 = vpow.pop %v2110
      %v2112 = vsub.f32 %v2109, 1.0
      %v2113 = vsub.f32 %v2111, 1.0
      %v2114 = vsel %vm2106, %v2104, %v2112
      %v2115 = vsel %vm2107, %v2105, %v2113
      %v2116 = vadd.f32 %v2114, %v1905
      %v2117 = vadd.f32 %v2115, %v1906
      %v2118 = vsel %vm443, %v2039, -inf
      %2119 = vmax.xlane.f32.xlu0 %v2118
      %v2120 = vpop.xlane.xlu0 %2119
      %v2121 = vsel %vm443, %v2041, -inf
      %2122 = vmax.xlane.f32.xlu0 %v2121
      %v2123 = vpop.xlane.xlu0 %2122
      %v2124 = vsub.f32 1.0, %v2120
      %v2125 = vsub.f32 1.0, %v2123
      %v2126 = vadd.f32 %v2124, %v2125
      %v2127 = vrot.slane %v2126, 4
      %v2128 = vadd.f32 %v2126, %v2127
      %v2129 = vrot.slane %v2128, 2
      %v2130 = vadd.f32 %v2128, %v2129
      %v2131 = vrot.slane %v2130, 1
      %v2132 = vadd.f32 %v2130, %v2131
      %v2133 = vsel %vm336, %v2116, 0.0
      %v2134 = vsel %vm336, %v2117, 0.0
      %v2135 = vadd.f32 %v2133, %v2134
      %v2136 = vrot.slane %v2135, 4
      %v2137 = vadd.f32 %v2135, %v2136
      %v2138 = vrot.slane %v2137, 2
      %v2139 = vadd.f32 %v2137, %v2138
      %v2140 = vrot.slane %v2139, 1
      %v2141 = vadd.f32 %v2139, %v2140
      %v2142 = vrcp.pop 16.0
      %v2143 = vmul.f32 %v2141, %v2142
      %v2144 = vsel %vm336, %v2143, %v2132
      %vm2145 = vcmask 262144
      %2146 = vst.msk [vmem:[%s321] sm:$0x1] %vm2145, %v2144
      %p2147 = scmp.lt.s32.totalorder %s19, 1
      %s2148 = scalar_select %p2147, %s19, 1
      %s2149 = scalar_lea.vmem %s8, %s2148
      // Predicated region
      $region53: #{forward.1} parent=51 // pred_check
        %p2150 = pneg %p215
      $region54: #{forward.1} parent=51 // pred_check_branch
        %2152 = sbr.rel (%p2150) target = $region56
      $region55: #{forward.1} parent=51 // pred_region
        _
      $region56: #{forward.1} parent=51 // pred_fallthru
        _
    $region52: #{forward.1} parent=5 // pred_fallthru
      _
    %p2153 = scmp.le.s32.totalorder 2, %s14
    // Predicated region
    $region57: #{forward.1} parent=5 // pred_check
      %p2154 = pneg %p2153
    $region58: #{forward.1} parent=5 // pred_check_branch
      %2156 = sbr.rel (%p2154) target = $region60
    $region59: #{forward.1} parent=5 // pred_region
      %s2157 = ssub.s32 %s14, 2
      // Predicated region
      $region61: #{forward.1} parent=59 // pred_check
        %p2158 = pneg %p221
      $region62: #{forward.1} parent=59 // pred_check_branch
        %2160 = sbr.rel (%p2158) target = $region64
      $region63: #{forward.1} parent=59 // pred_region
        %p2161 = scmp.lt.s32.totalorder %s20, 1
        %s2162 = scalar_select %p2161, %s20, 1
        %s2163 = scalar_lea.vmem %s8, %s2162
      $region64: #{forward.1} parent=59 // pred_fallthru
        _
    $region60: #{forward.1} parent=5 // pred_fallthru
      _
  $region6: #{forward.1} parent=0 // loop_footer
    %s18 = sadd.s32 1, %s14
  $region7: #{forward.1} parent=0 // loop_footer_branch
    %13 = sbr.rel target = $region3
  $region8: #{forward.1} parent=0 // loop_exit
    _

</llo_original>
